<compile_context>
chip_gen: v6e
topology: v6e:2x2x1
jax: 0.10.0
libtpu: 0.0.40
codegen_flags: <defaults>
</compile_context>

<pallas_src>
import functools

import jax
import jax.numpy as jnp
from jax.experimental import pallas as pl
from jax.experimental.pallas import tpu as pltpu

D_IN = 784          # input features
HIDDEN = 600        # real hidden width
NUM_CLASSES = 10    # real class count
H_PAD = 640         # 600 -> 5 * 128 (lane-aligned hidden / fc2-K dim)
C_PAD = 128         # 10  -> 128     (lane-dense logits / output block)
NEG_BIG = -1e30     # bias for padded classes -> exp() underflows to exactly 0
TILE_B = 128        # batch tile (multiple of 8; sweep 128/256/512 on v6e/v7x)


def mlp_kernel(x_ref, w1_ref, b1_ref, w2_ref, b2_ref, o_ref):
    # fc1 (bf16 MXU inputs, f32 accumulation) + bias
    x = x_ref[...]                                              # (TILE_B, 784) bf16
    h = jnp.dot(x, w1_ref[...], preferred_element_type=jnp.float32)
    h = h + b1_ref[...]                                         # (TILE_B, 640) f32
    # sigmoid: exp on EUP, divide replaced by EUP approx reciprocal
    h = pl.reciprocal(1.0 + jnp.exp(-h), approx=True)
    # fc2 (padded K=640, padded N=128); padded hidden rows of W2 are zero so
    # they contribute nothing, padded class columns get bias -1e30.
    logits = jnp.dot(h.astype(jnp.bfloat16), w2_ref[...],
                     preferred_element_type=jnp.float32)
    logits = logits + b2_ref[...]                               # (TILE_B, 128) f32
    # numerically stable softmax over the class axis (lane-dense width 128)
    m = jnp.max(logits, axis=-1, keepdims=True)
    e = jnp.exp(logits - m)                                     # padded classes -> 0
    o_ref[...] = e * pl.reciprocal(jnp.sum(e, axis=-1, keepdims=True), approx=True)


def prepare_params(w1_t, b1, w2_t, b2):
    """Pad (in,out)-layout f32 params to lane-aligned shapes; weights -> bf16."""
    w1p = jnp.zeros((D_IN, H_PAD), jnp.bfloat16).at[:, :HIDDEN].set(
        w1_t.astype(jnp.bfloat16))
    b1p = jnp.zeros((1, H_PAD), jnp.float32).at[:, :HIDDEN].set(
        b1.reshape(1, HIDDEN).astype(jnp.float32))
    w2p = jnp.zeros((H_PAD, C_PAD), jnp.bfloat16).at[:HIDDEN, :NUM_CLASSES].set(
        w2_t.astype(jnp.bfloat16))
    b2p = jnp.full((1, C_PAD), NEG_BIG, jnp.float32).at[:, :NUM_CLASSES].set(
        b2.reshape(1, NUM_CLASSES).astype(jnp.float32))
    return w1p, b1p, w2p, b2p


@functools.partial(jax.jit, static_argnames=("tile_b",))
def mlp_forward(x, params, *, tile_b=TILE_B):
    w1p, b1p, w2p, b2p = params
    B = x.shape[0]
    num_tiles = pl.cdiv(B, tile_b)
    b_pad = num_tiles * tile_b

    xb = x.astype(jnp.bfloat16)
    if b_pad != B:
        xb = jnp.pad(xb, ((0, b_pad - B), (0, 0)))

    flops = 2 * b_pad * (D_IN * H_PAD + H_PAD * C_PAD)
    transcendentals = b_pad * (H_PAD + C_PAD)                   # exp in sigmoid+softmax
    bytes_accessed = (xb.size * 2 + w1p.size * 2 + w2p.size * 2
                      + b1p.size * 4 + b2p.size * 4 + b_pad * C_PAD * 4)

    out_padded = pl.pallas_call(
        mlp_kernel,
        out_shape=jax.ShapeDtypeStruct((b_pad, C_PAD), jnp.float32),
        grid=(num_tiles,),
        in_specs=[
            pl.BlockSpec((tile_b, D_IN), lambda i: (i, 0)),     # x tile, pipelined
            pl.BlockSpec((D_IN, H_PAD), lambda i: (0, 0)),      # W1 resident
            pl.BlockSpec((1, H_PAD), lambda i: (0, 0)),         # b1 resident
            pl.BlockSpec((H_PAD, C_PAD), lambda i: (0, 0)),     # W2 resident
            pl.BlockSpec((1, C_PAD), lambda i: (0, 0)),         # b2 resident
        ],
        out_specs=pl.BlockSpec((tile_b, C_PAD), lambda i: (i, 0)),
        compiler_params=pltpu.CompilerParams(
            dimension_semantics=("parallel",),                  # 2 TCs on v7x
            vmem_limit_bytes=32 * 1024 * 1024,
        ),
        cost_estimate=pl.CostEstimate(
            flops=int(flops),
            transcendentals=int(transcendentals),
            bytes_accessed=int(bytes_accessed),
        ),
    )(xb, w1p, b1p, w2p, b2p)

    # Strip batch padding and the padded classes.
    return out_padded[:B, :NUM_CLASSES]


def init_params(key):
    """Deterministic init matching nn.Linear's U(-1/sqrt(fan_in), 1/sqrt(fan_in)).
    Stored as (in, out) — already transposed relative to PyTorch's (out, in)."""
    k1, k2, k3, k4 = jax.random.split(key, 4)
    lim1 = 1.0 / jnp.sqrt(float(D_IN))
    lim2 = 1.0 / jnp.sqrt(float(HIDDEN))
    w1_t = jax.random.uniform(k1, (D_IN, HIDDEN), jnp.float32, -lim1, lim1)
    b1 = jax.random.uniform(k2, (1, HIDDEN), jnp.float32, -lim1, lim1)
    w2_t = jax.random.uniform(k3, (HIDDEN, NUM_CLASSES), jnp.float32, -lim2, lim2)
    b2 = jax.random.uniform(k4, (1, NUM_CLASSES), jnp.float32, -lim2, lim2)
    return w1_t, b1, w2_t, b2


if __name__ == "__main__":
    key = jax.random.PRNGKey(0)
    kx, kp = jax.random.split(key)

    # Batch not a multiple of TILE_B, and > one tile, to exercise padding +
    # multi-step (pipelined / megacore-parallel) grid.
    B = 200
    x = jax.random.normal(kx, (B, D_IN), jnp.float32)
    w1_t, b1, w2_t, b2 = init_params(kp)
    params = prepare_params(w1_t, b1, w2_t, b2)

    out = mlp_forward(x, params)
    out = jax.block_until_ready(out)

    # Pure-JAX f32 reference (same math as the PyTorch module); kernel uses
    # bf16 MXU inputs + approx reciprocals, so compare with a loose tolerance.
    h_ref = jax.nn.sigmoid(x @ w1_t + b1)
    ref = jax.nn.softmax(h_ref @ w2_t + b2, axis=1)

    assert out.shape == (B, NUM_CLASSES)
    assert jnp.allclose(out, ref, atol=2e-2, rtol=2e-2), (
        f"max abs err {jnp.max(jnp.abs(out - ref))}")
    assert jnp.allclose(jnp.sum(out, axis=1), 1.0, atol=5e-3)

    print("KERNEL_OK")
</pallas_src>

<mosaic_0001>
module attributes {stable_mosaic.version = 11 : i64} {
  func.func @mlp_kernel(%arg0: i32, %arg1: memref<128x784xbf16, #tpu.memory_space<vmem>>, %arg2: memref<784x640xbf16, #tpu.memory_space<vmem>>, %arg3: memref<1x640xf32, #tpu.memory_space<vmem>>, %arg4: memref<640x128xbf16, #tpu.memory_space<vmem>>, %arg5: memref<1x128xf32, #tpu.memory_space<vmem>>, %arg6: memref<128x128xf32, #tpu.memory_space<vmem>>) attributes {dimension_semantics = [#tpu.dimension_semantics<parallel>], iteration_bounds = array<i64: 2>, scalar_prefetch = 0 : i64, scratch_operands = 0 : i64, tpu.core_type = #tpu.core_type<tc>, window_params = [{transform_indices = @transform_0, window_bounds = array<i64: 128, 784>}, {pipeline_mode = #tpu.pipeline_mode<synchronous>, transform_indices = @transform_1, window_bounds = array<i64: 784, 640>}, {pipeline_mode = #tpu.pipeline_mode<synchronous>, transform_indices = @transform_2, window_bounds = array<i64: 1, 640>}, {pipeline_mode = #tpu.pipeline_mode<synchronous>, transform_indices = @transform_3, window_bounds = array<i64: 640, 128>}, {pipeline_mode = #tpu.pipeline_mode<synchronous>, transform_indices = @transform_4, window_bounds = array<i64: 1, 128>}, {transform_indices = @transform_5, window_bounds = array<i64: 128, 128>}]} {
    %c0 = arith.constant 0 : index
    %c0_0 = arith.constant 0 : index
    %0 = vector.load %arg1[%c0, %c0_0] : memref<128x784xbf16, #tpu.memory_space<vmem>>, vector<128x784xbf16>
    %c0_1 = arith.constant 0 : index
    %c0_2 = arith.constant 0 : index
    %1 = vector.load %arg2[%c0_1, %c0_2] : memref<784x640xbf16, #tpu.memory_space<vmem>>, vector<784x640xbf16>
    %cst = arith.constant dense<0.000000e+00> : vector<128x640xf32>
    %2 = tpu.matmul %0, %1, %cst {dimension_numbers = #tpu.dot_dimension_numbers<[1], [0], [0], [1], [0, 0, 1, 1], [], []>} : vector<128x784xbf16>, vector<784x640xbf16>, vector<128x640xf32> -> vector<128x640xf32>
    %c0_3 = arith.constant 0 : index
    %c0_4 = arith.constant 0 : index
    %3 = vector.load %arg3[%c0_3, %c0_4] : memref<1x640xf32, #tpu.memory_space<vmem>>, vector<1x640xf32>
    %4 = vector.broadcast %3 : vector<1x640xf32> to vector<128x640xf32>
    %5 = arith.addf %2, %4 : vector<128x640xf32>
    %cst_5 = arith.constant 0.000000e+00 : f32
    %6 = vector.broadcast %cst_5 : f32 to vector<128x640xf32>
    %7 = arith.subf %6, %5 : vector<128x640xf32>
    %8 = math.exp %7 : vector<128x640xf32>
    %cst_6 = arith.constant 1.000000e+00 : f32
    %9 = vector.broadcast %cst_6 : f32 to vector<128x640xf32>
    %10 = arith.addf %9, %8 : vector<128x640xf32>
    %11 = tpu.reciprocal %10 {approx = true} : vector<128x640xf32> -> vector<128x640xf32>
    %12 = arith.truncf %11 : vector<128x640xf32> to vector<128x640xbf16>
    %c0_7 = arith.constant 0 : index
    %c0_8 = arith.constant 0 : index
    %13 = vector.load %arg4[%c0_7, %c0_8] : memref<640x128xbf16, #tpu.memory_space<vmem>>, vector<640x128xbf16>
    %cst_9 = arith.constant dense<0.000000e+00> : vector<128x128xf32>
    %14 = tpu.matmul %12, %13, %cst_9 {dimension_numbers = #tpu.dot_dimension_numbers<[1], [0], [0], [1], [0, 0, 1, 1], [], []>} : vector<128x640xbf16>, vector<640x128xbf16>, vector<128x128xf32> -> vector<128x128xf32>
    %c0_10 = arith.constant 0 : index
    %c0_11 = arith.constant 0 : index
    %15 = vector.load %arg5[%c0_10, %c0_11] : memref<1x128xf32, #tpu.memory_space<vmem>>, vector<1x128xf32>
    %16 = vector.broadcast %15 : vector<1x128xf32> to vector<128x128xf32>
    %17 = arith.addf %14, %16 : vector<128x128xf32>
    %cst_12 = arith.constant dense<0xFF800000> : vector<128xf32>
    %18 = vector.multi_reduction <maximumf>, %17, %cst_12 [1] : vector<128x128xf32> to vector<128xf32>
    %19 = vector.shape_cast %18 : vector<128xf32> to vector<128x1xf32>
    %20 = vector.broadcast %19 : vector<128x1xf32> to vector<128x128xf32>
    %21 = arith.subf %17, %20 : vector<128x128xf32>
    %22 = math.exp %21 : vector<128x128xf32>
    %cst_13 = arith.constant dense<0.000000e+00> : vector<128xf32>
    %23 = vector.multi_reduction <add>, %22, %cst_13 [1] : vector<128x128xf32> to vector<128xf32>
    %24 = vector.shape_cast %23 : vector<128xf32> to vector<128x1xf32>
    %25 = tpu.reciprocal %24 {approx = true} : vector<128x1xf32> -> vector<128x1xf32>
    %26 = vector.broadcast %25 : vector<128x1xf32> to vector<128x128xf32>
    %27 = arith.mulf %22, %26 : vector<128x128xf32>
    %c0_14 = arith.constant 0 : index
    %c0_15 = arith.constant 0 : index
    %28 = vector.load %arg6[%c0_14, %c0_15] : memref<128x128xf32, #tpu.memory_space<vmem>>, vector<128x128xf32>
    tpu.vector_store %arg6[%c0_14, %c0_15], %27 {strides = array<i32>} : memref<128x128xf32, #tpu.memory_space<vmem>>, vector<128x128xf32>,
    return
  }
  func.func @transform_0(%arg0: i32) -> (i32, i32) {
    %c0_i32 = arith.constant 0 : i32
    %c0_i32_0 = arith.constant 0 : i32
    return %arg0, %c0_i32 : i32, i32
  }
  func.func @transform_1(%arg0: i32) -> (i32, i32) {
    %c0_i32 = arith.constant 0 : i32
    %c0_i32_0 = arith.constant 0 : i32
    %c0_i32_1 = arith.constant 0 : i32
    return %c0_i32, %c0_i32_0 : i32, i32
  }
  func.func @transform_2(%arg0: i32) -> (i32, i32) {
    %c0_i32 = arith.constant 0 : i32
    %c0_i32_0 = arith.constant 0 : i32
    %c0_i32_1 = arith.constant 0 : i32
    return %c0_i32, %c0_i32_0 : i32, i32
  }
  func.func @transform_3(%arg0: i32) -> (i32, i32) {
    %c0_i32 = arith.constant 0 : i32
    %c0_i32_0 = arith.constant 0 : i32
    %c0_i32_1 = arith.constant 0 : i32
    return %c0_i32, %c0_i32_0 : i32, i32
  }
  func.func @transform_4(%arg0: i32) -> (i32, i32) {
    %c0_i32 = arith.constant 0 : i32
    %c0_i32_0 = arith.constant 0 : i32
    %c0_i32_1 = arith.constant 0 : i32
    return %c0_i32, %c0_i32_0 : i32, i32
  }
  func.func @transform_5(%arg0: i32) -> (i32, i32) {
    %c0_i32 = arith.constant 0 : i32
    %c0_i32_0 = arith.constant 0 : i32
    return %arg0, %c0_i32 : i32, i32
  }
}

</mosaic_0001>

<llo_original>
// kernel: mlp_forward.1
$region0: #{mlp_forward.1}
  #allocation0 [shape = 'u32[]', space=smem, size = 0x4, offset = 0x4, fixed_abs, tag = 'smem constant byte address 0x4 - core index']
  #allocation1 [shape = 'u32[144,128]{1,0:T(1,128)}', space=vmem, size = 0x12000, scoped, tag = 'internal scratch']
  %s0 = inlined_call_operand.vmem [shape: bf16[256,784], index: 0, kind: input, shape index: {}]
  %s1 = inlined_call_operand.vmem [shape: bf16[784,640], index: 1, kind: input, shape index: {}]
  %s2 = inlined_call_operand.vmem [shape: f32[1,640], index: 2, kind: input, shape index: {}]
  %s3 = inlined_call_operand.vmem [shape: bf16[640,128], index: 3, kind: input, shape index: {}]
  %s4 = inlined_call_operand.vmem [shape: f32[1,128], index: 4, kind: input, shape index: {}]
  %s5 = inlined_call_operand.vmem [shape: f32[256,128], index: 5, kind: output, shape index: {}]
  %s6 = sld [smem:[#allocation0]]
  $region53: #{mlp_forward.1} parent=0
    _
  %s8 = ssub.s32 1, %s6
  %s9 = scalar_select 0, %s8, %s6
  loop: start=0, step=1, limit=4
  $region2: #{mlp_forward.1} parent=0 // loop_pre_header
    _
  $region3: #{mlp_forward.1} parent=0 // loop_header
    %s11 = sphi 0, %s15
    %p12 = scmp.ge.s32.totalorder %s11, 4
    %s21 = sphi 0, %s23
    %s24 = sphi 0, %s21
    %s25 = sphi 0, %s24
    %s41 = sphi 0, %s25
    %s45 = sphi 0, %s45
    %s47 = sphi 0, %s45
    %s48 = sphi 0, %s47
    %s62 = sphi 0, %s48
    %s66 = sphi 0, %s66
    %s68 = sphi 0, %s66
    %s69 = sphi 0, %s68
    %s83 = sphi 0, %s69
    %s87 = sphi 0, %s87
    %s89 = sphi 0, %s87
    %s90 = sphi 0, %s89
    %s104 = sphi 0, %s90
    %s108 = sphi 0, %s108
    %s110 = sphi 0, %s108
    %s111 = sphi 0, %s110
    %s125 = sphi 0, %s111
    %s131 = sphi 0, %s133
    %s134 = sphi 0, %s131
    %s135 = sphi 0, %s134
    %s151 = sphi 0, %s135
  $region4: #{mlp_forward.1} parent=0 // loop_header_branch
    %14 = sbr.rel (%p12) target = $region8
  $region5: #{mlp_forward.1} parent=0 // loop_body
    %s16 = ssub.s32 %s11, 1
    %s17 = ssub.s32 %s11, 2
    %s18 = sadd.s32 %s11, 1
    %s19 = ssub.s32 %s11, %s18
    %p20 = scmp.eq.s32.totalorder %s19, 0
    %s22 = sadd.s32 %s21, 1
    %s23 = scalar_select %p20, %s21, %s22
    %p26 = pneg %p20
    %p27 = scmp.eq.s32.totalorder %s11, 1
    %p28 = por %p26, %p27
    %p29 = scmp.ne.s32.totalorder %s21, %s24
    %p30 = scmp.eq.s32.totalorder %s11, 0
    %p31 = por %p29, %p30
    %p32 = scmp.ne.s32.totalorder %s21, %s24
    %p33 = scmp.eq.s32.totalorder %s16, 1
    %p34 = por %p32, %p33
    %p35 = scmp.ne.s32.totalorder %s24, %s25
    %p36 = scmp.eq.s32.totalorder %s16, 0
    %p37 = por %p35, %p36
    %p38 = scmp.ne.s32.totalorder %s24, %s25
    %p39 = scmp.eq.s32.totalorder %s17, 1
    %p40 = por %p38, %p39
    %p42 = scmp.ne.s32.totalorder %s25, %s41
    %p43 = scmp.eq.s32.totalorder %s17, 0
    %p44 = por %p42, %p43
    %s46 = sadd.s32 %s45, 1
    %p49 = scmp.eq.s32.totalorder %s11, 1
    %p50 = scmp.ne.s32.totalorder %s45, %s47
    %p51 = scmp.eq.s32.totalorder %s11, 0
    %p52 = por %p50, %p51
    %p53 = scmp.ne.s32.totalorder %s45, %s47
    %p54 = scmp.eq.s32.totalorder %s16, 1
    %p55 = por %p53, %p54
    %p56 = scmp.ne.s32.totalorder %s47, %s48
    %p57 = scmp.eq.s32.totalorder %s16, 0
    %p58 = por %p56, %p57
    %p59 = scmp.ne.s32.totalorder %s47, %s48
    %p60 = scmp.eq.s32.totalorder %s17, 1
    %p61 = por %p59, %p60
    %p63 = scmp.ne.s32.totalorder %s48, %s62
    %p64 = scmp.eq.s32.totalorder %s17, 0
    %p65 = por %p63, %p64
    %s67 = sadd.s32 %s66, 1
    %p70 = scmp.eq.s32.totalorder %s11, 1
    %p71 = scmp.ne.s32.totalorder %s66, %s68
    %p72 = scmp.eq.s32.totalorder %s11, 0
    %p73 = por %p71, %p72
    %p74 = scmp.ne.s32.totalorder %s66, %s68
    %p75 = scmp.eq.s32.totalorder %s16, 1
    %p76 = por %p74, %p75
    %p77 = scmp.ne.s32.totalorder %s68, %s69
    %p78 = scmp.eq.s32.totalorder %s16, 0
    %p79 = por %p77, %p78
    %p80 = scmp.ne.s32.totalorder %s68, %s69
    %p81 = scmp.eq.s32.totalorder %s17, 1
    %p82 = por %p80, %p81
    %p84 = scmp.ne.s32.totalorder %s69, %s83
    %p85 = scmp.eq.s32.totalorder %s17, 0
    %p86 = por %p84, %p85
    %s88 = sadd.s32 %s87, 1
    %p91 = scmp.eq.s32.totalorder %s11, 1
    %p92 = scmp.ne.s32.totalorder %s87, %s89
    %p93 = scmp.eq.s32.totalorder %s11, 0
    %p94 = por %p92, %p93
    %p95 = scmp.ne.s32.totalorder %s87, %s89
    %p96 = scmp.eq.s32.totalorder %s16, 1
    %p97 = por %p95, %p96
    %p98 = scmp.ne.s32.totalorder %s89, %s90
    %p99 = scmp.eq.s32.totalorder %s16, 0
    %p100 = por %p98, %p99
    %p101 = scmp.ne.s32.totalorder %s89, %s90
    %p102 = scmp.eq.s32.totalorder %s17, 1
    %p103 = por %p101, %p102
    %p105 = scmp.ne.s32.totalorder %s90, %s104
    %p106 = scmp.eq.s32.totalorder %s17, 0
    %p107 = por %p105, %p106
    %s109 = sadd.s32 %s108, 1
    %p112 = scmp.eq.s32.totalorder %s11, 1
    %p113 = scmp.ne.s32.totalorder %s108, %s110
    %p114 = scmp.eq.s32.totalorder %s11, 0
    %p115 = por %p113, %p114
    %p116 = scmp.ne.s32.totalorder %s108, %s110
    %p117 = scmp.eq.s32.totalorder %s16, 1
    %p118 = por %p116, %p117
    %p119 = scmp.ne.s32.totalorder %s110, %s111
    %p120 = scmp.eq.s32.totalorder %s16, 0
    %p121 = por %p119, %p120
    %p122 = scmp.ne.s32.totalorder %s110, %s111
    %p123 = scmp.eq.s32.totalorder %s17, 1
    %p124 = por %p122, %p123
    %p126 = scmp.ne.s32.totalorder %s111, %s125
    %p127 = scmp.eq.s32.totalorder %s17, 0
    %p128 = por %p126, %p127
    %s129 = ssub.s32 %s11, %s18
    %p130 = scmp.eq.s32.totalorder %s129, 0
    %s132 = sadd.s32 %s131, 1
    %s133 = scalar_select %p130, %s131, %s132
    %p136 = pneg %p130
    %p137 = scmp.eq.s32.totalorder %s11, 1
    %p138 = por %p136, %p137
    %p139 = scmp.ne.s32.totalorder %s131, %s134
    %p140 = scmp.eq.s32.totalorder %s11, 0
    %p141 = por %p139, %p140
    %p142 = scmp.ne.s32.totalorder %s131, %s134
    %p143 = scmp.eq.s32.totalorder %s16, 1
    %p144 = por %p142, %p143
    %p145 = scmp.ne.s32.totalorder %s134, %s135
    %p146 = scmp.eq.s32.totalorder %s16, 0
    %p147 = por %p145, %p146
    %p148 = scmp.ne.s32.totalorder %s134, %s135
    %p149 = scmp.eq.s32.totalorder %s17, 1
    %p150 = por %p148, %p149
    %p152 = scmp.ne.s32.totalorder %s135, %s151
    %p153 = scmp.eq.s32.totalorder %s17, 0
    %p154 = por %p152, %p153
    %p155 = scmp.le.s32.totalorder 1, %s11
    %p156 = scmp.lt.s32.totalorder %s11, 3
    %p157 = pnand %p155, %p156
    %p158 = pneg %p157
    // Predicated region
    $region9: #{mlp_forward.1} parent=5 // pred_check
      _
    $region10: #{mlp_forward.1} parent=5 // pred_check_branch
      %160 = sbr.rel (%p157) target = $region12
    $region11: #{mlp_forward.1} parent=5 // pred_region
      %s161 = ssub.s32 %s11, 1
      // Predicated region
      $region13: #{mlp_forward.1} parent=11 // pred_check
        %p162 = pneg %p58
      $region14: #{mlp_forward.1} parent=11 // pred_check_branch
        %164 = sbr.rel (%p162) target = $region16
      $region15: #{mlp_forward.1} parent=11 // pred_region
        _
      $region16: #{mlp_forward.1} parent=11 // pred_fallthru
        _
      // Predicated region
      $region17: #{mlp_forward.1} parent=11 // pred_check
        %p165 = pneg %p79
      $region18: #{mlp_forward.1} parent=11 // pred_check_branch
        %167 = sbr.rel (%p165) target = $region20
      $region19: #{mlp_forward.1} parent=11 // pred_region
        _
      $region20: #{mlp_forward.1} parent=11 // pred_fallthru
        _
      // Predicated region
      $region21: #{mlp_forward.1} parent=11 // pred_check
        %p168 = pneg %p100
      $region22: #{mlp_forward.1} parent=11 // pred_check_branch
        %170 = sbr.rel (%p168) target = $region24
      $region23: #{mlp_forward.1} parent=11 // pred_region
        _
      $region24: #{mlp_forward.1} parent=11 // pred_fallthru
        _
      // Predicated region
      $region25: #{mlp_forward.1} parent=11 // pred_check
        %p171 = pneg %p121
      $region26: #{mlp_forward.1} parent=11 // pred_check_branch
        %173 = sbr.rel (%p171) target = $region28
      $region27: #{mlp_forward.1} parent=11 // pred_region
        _
      $region28: #{mlp_forward.1} parent=11 // pred_fallthru
        _
    $region12: #{mlp_forward.1} parent=5 // pred_fallthru
      _
    %p174 = scmp.lt.s32.totalorder %s11, 2
    // Predicated region
    $region29: #{mlp_forward.1} parent=5 // pred_check
      %p175 = pneg %p174
    $region30: #{mlp_forward.1} parent=5 // pred_check_branch
      %177 = sbr.rel (%p175) target = $region32
    $region31: #{mlp_forward.1} parent=5 // pred_region
      // Predicated region
      $region33: #{mlp_forward.1} parent=31 // pred_check
        %p178 = pneg %p31
      $region34: #{mlp_forward.1} parent=31 // pred_check_branch
        %180 = sbr.rel (%p178) target = $region36
      $region35: #{mlp_forward.1} parent=31 // pred_region
        %s181 = smul.u32 16, %s11
        %p182 = scmp.lt.s32.totalorder %s181, 31
        %s183 = scalar_select %p182, %s181, 31
        %s184 = smul.addr %s183, 7
        %s185 = smul.addr %s184, 4
        %s186 = scalar_lea.vmem %s0, %s185
        %s187 = smul.u32 16, %s11
      $region36: #{mlp_forward.1} parent=31 // pred_fallthru
        _
    $region32: #{mlp_forward.1} parent=5 // pred_fallthru
      _
    %p188 = scmp.le.s32.totalorder 1, %s11
    %p189 = scmp.lt.s32.totalorder %s11, 3
    %p190 = pnand %p188, %p189
    %p191 = pneg %p190
    // Predicated region
    $region37: #{mlp_forward.1} parent=5 // pred_check
      _
    $region38: #{mlp_forward.1} parent=5 // pred_check_branch
      %193 = sbr.rel (%p190) target = $region40
    $region39: #{mlp_forward.1} parent=5 // pred_region
      %s194 = ssub.s32 %s11, 1
      %s195 = smul.u32 16, %s16
      %p196 = scmp.lt.s32.totalorder %s195, 31
      %s197 = scalar_select %p196, %s195, 31
      %s198 = smul.addr %s197, 7
      %s199 = smul.addr %s198, 4
      %s200 = scalar_lea.vmem %s0, %s199
      %p201 = pneg %p37
      %p202 = pneg %p34
      %p203 = pneg %p58
      %p204 = pneg %p55
      %p205 = pneg %p79
      %p206 = pneg %p76
      %p207 = pneg %p100
      %p208 = pneg %p97
      %p209 = pneg %p121
      %p210 = pneg %p118
      %p211 = pneg %p147
      %p212 = pneg %p144
      %s213 = smul.u32 16, %s16
      %p214 = scmp.lt.s32.totalorder %s213, 31
      %s215 = scalar_select %p214, %s213, 31
      %s216 = smul.addr %s215, 8
      %s217 = scalar_lea.vmem %s5, %s216
      %s218 = smul.u32 16, %s16
      %p219 = scmp.lt.s32.totalorder %s218, 31
      %s220 = scalar_select %p219, %s218, 31
      %s221 = smul.addr %s220, 7
      %s222 = smul.addr %s221, 4
      %s223 = scalar_lea.vmem %s0, %s222
      %s224 = smul.u32 16, %s16
      %s225 = smul.u32 16, %s16
      %p226 = scmp.lt.s32.totalorder %s225, 31
      %s227 = scalar_select %p226, %s225, 31
      %s228 = smul.addr %s227, 8
      %s229 = scalar_lea.vmem %s5, %s228
      %s230 = smul.u32 16, %s16
      %v232 = vld [vmem:[%s223] sm:$0xff]
      %v233 = vld [vmem:[%s223 + $0x8] sm:$0xff]
      %v234 = vld [vmem:[%s223 + $0x10] sm:$0xff]
      %v235 = vld [vmem:[%s223 + $0x18] sm:$0xf]
      %v236 = vld [vmem:[%s223 + $0x1c] sm:$0xff]
      %v237 = vld [vmem:[%s223 + $0x24] sm:$0xff]
      %v238 = vld [vmem:[%s223 + $0x2c] sm:$0xff]
      %v239 = vld [vmem:[%s223 + $0x34] sm:$0xf]
      %v240 = vld [vmem:[%s223 + $0x38] sm:$0xff]
      %v241 = vld [vmem:[%s223 + $0x40] sm:$0xff]
      %v242 = vld [vmem:[%s223 + $0x48] sm:$0xff]
      %v243 = vld [vmem:[%s223 + $0x50] sm:$0xf]
      %v244 = vld [vmem:[%s223 + $0x54] sm:$0xff]
      %v245 = vld [vmem:[%s223 + $0x5c] sm:$0xff]
      %v246 = vld [vmem:[%s223 + $0x64] sm:$0xff]
      %v247 = vld [vmem:[%s223 + $0x6c] sm:$0xf]
      %v248 = vld [vmem:[%s223 + $0x70] sm:$0xff]
      %v249 = vld [vmem:[%s223 + $0x78] sm:$0xff]
      %v250 = vld [vmem:[%s223 + $0x80] sm:$0xff]
      %v251 = vld [vmem:[%s223 + $0x88] sm:$0xf]
      %v252 = vld [vmem:[%s223 + $0x8c] sm:$0xff]
      %v253 = vld [vmem:[%s223 + $0x94] sm:$0xff]
      %v254 = vld [vmem:[%s223 + $0x9c] sm:$0xff]
      %v255 = vld [vmem:[%s223 + $0xa4] sm:$0xf]
      %v256 = vld [vmem:[%s223 + $0xa8] sm:$0xff]
      %v257 = vld [vmem:[%s223 + $0xb0] sm:$0xff]
      %v258 = vld [vmem:[%s223 + $0xb8] sm:$0xff]
      %v259 = vld [vmem:[%s223 + $0xc0] sm:$0xf]
      %v260 = vld [vmem:[%s223 + $0xc4] sm:$0xff]
      %v261 = vld [vmem:[%s223 + $0xcc] sm:$0xff]
      %v262 = vld [vmem:[%s223 + $0xd4] sm:$0xff]
      %v263 = vld [vmem:[%s223 + $0xdc] sm:$0xf]
      %v264 = vld [vmem:[%s223 + $0xe0] sm:$0xff]
      %v265 = vld [vmem:[%s223 + $0xe8] sm:$0xff]
      %v266 = vld [vmem:[%s223 + $0xf0] sm:$0xff]
      %v267 = vld [vmem:[%s223 + $0xf8] sm:$0xf]
      %v268 = vld [vmem:[%s223 + $0xfc] sm:$0xff]
      %v269 = vld [vmem:[%s223 + $0x104] sm:$0xff]
      %v270 = vld [vmem:[%s223 + $0x10c] sm:$0xff]
      %v271 = vld [vmem:[%s223 + $0x114] sm:$0xf]
      %v272 = vld [vmem:[%s223 + $0x118] sm:$0xff]
      %v273 = vld [vmem:[%s223 + $0x120] sm:$0xff]
      %v274 = vld [vmem:[%s223 + $0x128] sm:$0xff]
      %v275 = vld [vmem:[%s223 + $0x130] sm:$0xf]
      %v276 = vld [vmem:[%s223 + $0x134] sm:$0xff]
      %v277 = vld [vmem:[%s223 + $0x13c] sm:$0xff]
      %v278 = vld [vmem:[%s223 + $0x144] sm:$0xff]
      %v279 = vld [vmem:[%s223 + $0x14c] sm:$0xf]
      %v280 = vld [vmem:[%s223 + $0x150] sm:$0xff]
      %v281 = vld [vmem:[%s223 + $0x158] sm:$0xff]
      %v282 = vld [vmem:[%s223 + $0x160] sm:$0xff]
      %v283 = vld [vmem:[%s223 + $0x168] sm:$0xf]
      %v284 = vld [vmem:[%s223 + $0x16c] sm:$0xff]
      %v285 = vld [vmem:[%s223 + $0x174] sm:$0xff]
      %v286 = vld [vmem:[%s223 + $0x17c] sm:$0xff]
      %v287 = vld [vmem:[%s223 + $0x184] sm:$0xf]
      %v288 = vld [vmem:[%s223 + $0x188] sm:$0xff]
      %v289 = vld [vmem:[%s223 + $0x190] sm:$0xff]
      %v290 = vld [vmem:[%s223 + $0x198] sm:$0xff]
      %v291 = vld [vmem:[%s223 + $0x1a0] sm:$0xf]
      %v292 = vld [vmem:[%s223 + $0x1a4] sm:$0xff]
      %v293 = vld [vmem:[%s223 + $0x1ac] sm:$0xff]
      %v294 = vld [vmem:[%s223 + $0x1b4] sm:$0xff]
      %v295 = vld [vmem:[%s223 + $0x1bc] sm:$0xf]
      %v296 = vld [vmem:[%s1] sm:$0xff]
      %v297 = vld [vmem:[%s1 + $0x8] sm:$0xff]
      %v298 = vld [vmem:[%s1 + $0x10] sm:$0xf]
      %v299 = vld [vmem:[%s1 + $0x14] sm:$0xff]
      %v300 = vld [vmem:[%s1 + $0x1c] sm:$0xff]
      %v301 = vld [vmem:[%s1 + $0x24] sm:$0xf]
      %v302 = vld [vmem:[%s1 + $0x28] sm:$0xff]
      %v303 = vld [vmem:[%s1 + $0x30] sm:$0xff]
      %v304 = vld [vmem:[%s1 + $0x38] sm:$0xf]
      %v305 = vld [vmem:[%s1 + $0x3c] sm:$0xff]
      %v306 = vld [vmem:[%s1 + $0x44] sm:$0xff]
      %v307 = vld [vmem:[%s1 + $0x4c] sm:$0xf]
      %v308 = vld [vmem:[%s1 + $0x50] sm:$0xff]
      %v309 = vld [vmem:[%s1 + $0x58] sm:$0xff]
      %v310 = vld [vmem:[%s1 + $0x60] sm:$0xf]
      %v311 = vld [vmem:[%s1 + $0x64] sm:$0xff]
      %v312 = vld [vmem:[%s1 + $0x6c] sm:$0xff]
      %v313 = vld [vmem:[%s1 + $0x74] sm:$0xf]
      %v314 = vld [vmem:[%s1 + $0x78] sm:$0xff]
      %v315 = vld [vmem:[%s1 + $0x80] sm:$0xff]
      %v316 = vld [vmem:[%s1 + $0x88] sm:$0xf]
      %v317 = vld [vmem:[%s1 + $0x8c] sm:$0xff]
      %v318 = vld [vmem:[%s1 + $0x94] sm:$0xff]
      %v319 = vld [vmem:[%s1 + $0x9c] sm:$0xf]
      %v320 = vld [vmem:[%s1 + $0xa0] sm:$0xff]
      %v321 = vld [vmem:[%s1 + $0xa8] sm:$0xff]
      %v322 = vld [vmem:[%s1 + $0xb0] sm:$0xf]
      %v323 = vld [vmem:[%s1 + $0xb4] sm:$0xff]
      %v324 = vld [vmem:[%s1 + $0xbc] sm:$0xff]
      %v325 = vld [vmem:[%s1 + $0xc4] sm:$0xf]
      %v326 = vld [vmem:[%s1 + $0xc8] sm:$0xff]
      %v327 = vld [vmem:[%s1 + $0xd0] sm:$0xff]
      %v328 = vld [vmem:[%s1 + $0xd8] sm:$0xf]
      %v329 = vld [vmem:[%s1 + $0xdc] sm:$0xff]
      %v330 = vld [vmem:[%s1 + $0xe4] sm:$0xff]
      %v331 = vld [vmem:[%s1 + $0xec] sm:$0xf]
      %v332 = vld [vmem:[%s1 + $0xf0] sm:$0xff]
      %v333 = vld [vmem:[%s1 + $0xf8] sm:$0xff]
      %v334 = vld [vmem:[%s1 + $0x100] sm:$0xf]
      %v335 = vld [vmem:[%s1 + $0x104] sm:$0xff]
      %v336 = vld [vmem:[%s1 + $0x10c] sm:$0xff]
      %v337 = vld [vmem:[%s1 + $0x114] sm:$0xf]
      %v338 = vld [vmem:[%s1 + $0x118] sm:$0xff]
      %v339 = vld [vmem:[%s1 + $0x120] sm:$0xff]
      %v340 = vld [vmem:[%s1 + $0x128] sm:$0xf]
      %v341 = vld [vmem:[%s1 + $0x12c] sm:$0xff]
      %v342 = vld [vmem:[%s1 + $0x134] sm:$0xff]
      %v343 = vld [vmem:[%s1 + $0x13c] sm:$0xf]
      %v344 = vld [vmem:[%s1 + $0x140] sm:$0xff]
      %v345 = vld [vmem:[%s1 + $0x148] sm:$0xff]
      %v346 = vld [vmem:[%s1 + $0x150] sm:$0xf]
      %v347 = vld [vmem:[%s1 + $0x154] sm:$0xff]
      %v348 = vld [vmem:[%s1 + $0x15c] sm:$0xff]
      %v349 = vld [vmem:[%s1 + $0x164] sm:$0xf]
      %v350 = vld [vmem:[%s1 + $0x168] sm:$0xff]
      %v351 = vld [vmem:[%s1 + $0x170] sm:$0xff]
      %v352 = vld [vmem:[%s1 + $0x178] sm:$0xf]
      %v353 = vld [vmem:[%s1 + $0x17c] sm:$0xff]
      %v354 = vld [vmem:[%s1 + $0x184] sm:$0xff]
      %v355 = vld [vmem:[%s1 + $0x18c] sm:$0xf]
      %v356 = vld [vmem:[%s1 + $0x190] sm:$0xff]
      %v357 = vld [vmem:[%s1 + $0x198] sm:$0xff]
      %v358 = vld [vmem:[%s1 + $0x1a0] sm:$0xf]
      %v359 = vld [vmem:[%s1 + $0x1a4] sm:$0xff]
      %v360 = vld [vmem:[%s1 + $0x1ac] sm:$0xff]
      %v361 = vld [vmem:[%s1 + $0x1b4] sm:$0xf]
      %v362 = vld [vmem:[%s1 + $0x1b8] sm:$0xff]
      %v363 = vld [vmem:[%s1 + $0x1c0] sm:$0xff]
      %v364 = vld [vmem:[%s1 + $0x1c8] sm:$0xf]
      %v365 = vld [vmem:[%s1 + $0x1cc] sm:$0xff]
      %v366 = vld [vmem:[%s1 + $0x1d4] sm:$0xff]
      %v367 = vld [vmem:[%s1 + $0x1dc] sm:$0xf]
      %v368 = vld [vmem:[%s1 + $0x1e0] sm:$0xff]
      %v369 = vld [vmem:[%s1 + $0x1e8] sm:$0xff]
      %v370 = vld [vmem:[%s1 + $0x1f0] sm:$0xf]
      %v371 = vld [vmem:[%s1 + $0x1f4] sm:$0xff]
      %v372 = vld [vmem:[%s1 + $0x1fc] sm:$0xff]
      %v373 = vld [vmem:[%s1 + $0x204] sm:$0xf]
      %v374 = vld [vmem:[%s1 + $0x208] sm:$0xff]
      %v375 = vld [vmem:[%s1 + $0x210] sm:$0xff]
      %v376 = vld [vmem:[%s1 + $0x218] sm:$0xf]
      %v377 = vld [vmem:[%s1 + $0x21c] sm:$0xff]
      %v378 = vld [vmem:[%s1 + $0x224] sm:$0xff]
      %v379 = vld [vmem:[%s1 + $0x22c] sm:$0xf]
      %v380 = vld [vmem:[%s1 + $0x230] sm:$0xff]
      %v381 = vld [vmem:[%s1 + $0x238] sm:$0xff]
      %v382 = vld [vmem:[%s1 + $0x240] sm:$0xf]
      %v383 = vld [vmem:[%s1 + $0x244] sm:$0xff]
      %v384 = vld [vmem:[%s1 + $0x24c] sm:$0xff]
      %v385 = vld [vmem:[%s1 + $0x254] sm:$0xf]
      %v386 = vld [vmem:[%s1 + $0x258] sm:$0xff]
      %v387 = vld [vmem:[%s1 + $0x260] sm:$0xff]
      %v388 = vld [vmem:[%s1 + $0x268] sm:$0xf]
      %v389 = vld [vmem:[%s1 + $0x26c] sm:$0xff]
      %v390 = vld [vmem:[%s1 + $0x274] sm:$0xff]
      %v391 = vld [vmem:[%s1 + $0x27c] sm:$0xf]
      %v392 = vld [vmem:[%s1 + $0x280] sm:$0xff]
      %v393 = vld [vmem:[%s1 + $0x288] sm:$0xff]
      %v394 = vld [vmem:[%s1 + $0x290] sm:$0xf]
      %v395 = vld [vmem:[%s1 + $0x294] sm:$0xff]
      %v396 = vld [vmem:[%s1 + $0x29c] sm:$0xff]
      %v397 = vld [vmem:[%s1 + $0x2a4] sm:$0xf]
      %v398 = vld [vmem:[%s1 + $0x2a8] sm:$0xff]
      %v399 = vld [vmem:[%s1 + $0x2b0] sm:$0xff]
      %v400 = vld [vmem:[%s1 + $0x2b8] sm:$0xf]
      %v401 = vld [vmem:[%s1 + $0x2bc] sm:$0xff]
      %v402 = vld [vmem:[%s1 + $0x2c4] sm:$0xff]
      %v403 = vld [vmem:[%s1 + $0x2cc] sm:$0xf]
      %v404 = vld [vmem:[%s1 + $0x2d0] sm:$0xff]
      %v405 = vld [vmem:[%s1 + $0x2d8] sm:$0xff]
      %v406 = vld [vmem:[%s1 + $0x2e0] sm:$0xf]
      %v407 = vld [vmem:[%s1 + $0x2e4] sm:$0xff]
      %v408 = vld [vmem:[%s1 + $0x2ec] sm:$0xff]
      %v409 = vld [vmem:[%s1 + $0x2f4] sm:$0xf]
      %v410 = vld [vmem:[%s1 + $0x2f8] sm:$0xff]
      %v411 = vld [vmem:[%s1 + $0x300] sm:$0xff]
      %v412 = vld [vmem:[%s1 + $0x308] sm:$0xf]
      %v413 = vld [vmem:[%s1 + $0x30c] sm:$0xff]
      %v414 = vld [vmem:[%s1 + $0x314] sm:$0xff]
      %v415 = vld [vmem:[%s1 + $0x31c] sm:$0xf]
      %v416 = vld [vmem:[%s1 + $0x320] sm:$0xff]
      %v417 = vld [vmem:[%s1 + $0x328] sm:$0xff]
      %v418 = vld [vmem:[%s1 + $0x330] sm:$0xf]
      %v419 = vld [vmem:[%s1 + $0x334] sm:$0xff]
      %v420 = vld [vmem:[%s1 + $0x33c] sm:$0xff]
      %v421 = vld [vmem:[%s1 + $0x344] sm:$0xf]
      %v422 = vld [vmem:[%s1 + $0x348] sm:$0xff]
      %v423 = vld [vmem:[%s1 + $0x350] sm:$0xff]
      %v424 = vld [vmem:[%s1 + $0x358] sm:$0xf]
      %v425 = vld [vmem:[%s1 + $0x35c] sm:$0xff]
      %v426 = vld [vmem:[%s1 + $0x364] sm:$0xff]
      %v427 = vld [vmem:[%s1 + $0x36c] sm:$0xf]
      %v428 = vld [vmem:[%s1 + $0x370] sm:$0xff]
      %v429 = vld [vmem:[%s1 + $0x378] sm:$0xff]
      %v430 = vld [vmem:[%s1 + $0x380] sm:$0xf]
      %v431 = vld [vmem:[%s1 + $0x384] sm:$0xff]
      %v432 = vld [vmem:[%s1 + $0x38c] sm:$0xff]
      %v433 = vld [vmem:[%s1 + $0x394] sm:$0xf]
      %v434 = vld [vmem:[%s1 + $0x398] sm:$0xff]
      %v435 = vld [vmem:[%s1 + $0x3a0] sm:$0xff]
      %v436 = vld [vmem:[%s1 + $0x3a8] sm:$0xf]
      %v437 = vld [vmem:[%s1 + $0x3ac] sm:$0xff]
      %v438 = vld [vmem:[%s1 + $0x3b4] sm:$0xff]
      %v439 = vld [vmem:[%s1 + $0x3bc] sm:$0xf]
      %v440 = vld [vmem:[%s1 + $0x3c0] sm:$0xff]
      %v441 = vld [vmem:[%s1 + $0x3c8] sm:$0xff]
      %v442 = vld [vmem:[%s1 + $0x3d0] sm:$0xf]
      %v443 = vld [vmem:[%s1 + $0x3d4] sm:$0xff]
      %v444 = vld [vmem:[%s1 + $0x3dc] sm:$0xff]
      %v445 = vld [vmem:[%s1 + $0x3e4] sm:$0xf]
      %v446 = vld [vmem:[%s1 + $0x3e8] sm:$0xff]
      %v447 = vld [vmem:[%s1 + $0x3f0] sm:$0xff]
      %v448 = vld [vmem:[%s1 + $0x3f8] sm:$0xf]
      %v449 = vld [vmem:[%s1 + $0x3fc] sm:$0xff]
      %v450 = vld [vmem:[%s1 + $0x404] sm:$0xff]
      %v451 = vld [vmem:[%s1 + $0x40c] sm:$0xf]
      %v452 = vld [vmem:[%s1 + $0x410] sm:$0xff]
      %v453 = vld [vmem:[%s1 + $0x418] sm:$0xff]
      %v454 = vld [vmem:[%s1 + $0x420] sm:$0xf]
      %v455 = vld [vmem:[%s1 + $0x424] sm:$0xff]
      %v456 = vld [vmem:[%s1 + $0x42c] sm:$0xff]
      %v457 = vld [vmem:[%s1 + $0x434] sm:$0xf]
      %v458 = vld [vmem:[%s1 + $0x438] sm:$0xff]
      %v459 = vld [vmem:[%s1 + $0x440] sm:$0xff]
      %v460 = vld [vmem:[%s1 + $0x448] sm:$0xf]
      %v461 = vld [vmem:[%s1 + $0x44c] sm:$0xff]
      %v462 = vld [vmem:[%s1 + $0x454] sm:$0xff]
      %v463 = vld [vmem:[%s1 + $0x45c] sm:$0xf]
      %v464 = vld [vmem:[%s1 + $0x460] sm:$0xff]
      %v465 = vld [vmem:[%s1 + $0x468] sm:$0xff]
      %v466 = vld [vmem:[%s1 + $0x470] sm:$0xf]
      %v467 = vld [vmem:[%s1 + $0x474] sm:$0xff]
      %v468 = vld [vmem:[%s1 + $0x47c] sm:$0xff]
      %v469 = vld [vmem:[%s1 + $0x484] sm:$0xf]
      %v470 = vld [vmem:[%s1 + $0x488] sm:$0xff]
      %v471 = vld [vmem:[%s1 + $0x490] sm:$0xff]
      %v472 = vld [vmem:[%s1 + $0x498] sm:$0xf]
      %v473 = vld [vmem:[%s1 + $0x49c] sm:$0xff]
      %v474 = vld [vmem:[%s1 + $0x4a4] sm:$0xff]
      %v475 = vld [vmem:[%s1 + $0x4ac] sm:$0xf]
      %v476 = vld [vmem:[%s1 + $0x4b0] sm:$0xff]
      %v477 = vld [vmem:[%s1 + $0x4b8] sm:$0xff]
      %v478 = vld [vmem:[%s1 + $0x4c0] sm:$0xf]
      %v479 = vld [vmem:[%s1 + $0x4c4] sm:$0xff]
      %v480 = vld [vmem:[%s1 + $0x4cc] sm:$0xff]
      %v481 = vld [vmem:[%s1 + $0x4d4] sm:$0xf]
      %v482 = vld [vmem:[%s1 + $0x4d8] sm:$0xff]
      %v483 = vld [vmem:[%s1 + $0x4e0] sm:$0xff]
      %v484 = vld [vmem:[%s1 + $0x4e8] sm:$0xf]
      %v485 = vld [vmem:[%s1 + $0x4ec] sm:$0xff]
      %v486 = vld [vmem:[%s1 + $0x4f4] sm:$0xff]
      %v487 = vld [vmem:[%s1 + $0x4fc] sm:$0xf]
      %v488 = vld [vmem:[%s1 + $0x500] sm:$0xff]
      %v489 = vld [vmem:[%s1 + $0x508] sm:$0xff]
      %v490 = vld [vmem:[%s1 + $0x510] sm:$0xf]
      %v491 = vld [vmem:[%s1 + $0x514] sm:$0xff]
      %v492 = vld [vmem:[%s1 + $0x51c] sm:$0xff]
      %v493 = vld [vmem:[%s1 + $0x524] sm:$0xf]
      %v494 = vld [vmem:[%s1 + $0x528] sm:$0xff]
      %v495 = vld [vmem:[%s1 + $0x530] sm:$0xff]
      %v496 = vld [vmem:[%s1 + $0x538] sm:$0xf]
      %v497 = vld [vmem:[%s1 + $0x53c] sm:$0xff]
      %v498 = vld [vmem:[%s1 + $0x544] sm:$0xff]
      %v499 = vld [vmem:[%s1 + $0x54c] sm:$0xf]
      %v500 = vld [vmem:[%s1 + $0x550] sm:$0xff]
      %v501 = vld [vmem:[%s1 + $0x558] sm:$0xff]
      %v502 = vld [vmem:[%s1 + $0x560] sm:$0xf]
      %v503 = vld [vmem:[%s1 + $0x564] sm:$0xff]
      %v504 = vld [vmem:[%s1 + $0x56c] sm:$0xff]
      %v505 = vld [vmem:[%s1 + $0x574] sm:$0xf]
      %v506 = vld [vmem:[%s1 + $0x578] sm:$0xff]
      %v507 = vld [vmem:[%s1 + $0x580] sm:$0xff]
      %v508 = vld [vmem:[%s1 + $0x588] sm:$0xf]
      %v509 = vld [vmem:[%s1 + $0x58c] sm:$0xff]
      %v510 = vld [vmem:[%s1 + $0x594] sm:$0xff]
      %v511 = vld [vmem:[%s1 + $0x59c] sm:$0xf]
      %v512 = vld [vmem:[%s1 + $0x5a0] sm:$0xff]
      %v513 = vld [vmem:[%s1 + $0x5a8] sm:$0xff]
      %v514 = vld [vmem:[%s1 + $0x5b0] sm:$0xf]
      %v515 = vld [vmem:[%s1 + $0x5b4] sm:$0xff]
      %v516 = vld [vmem:[%s1 + $0x5bc] sm:$0xff]
      %v517 = vld [vmem:[%s1 + $0x5c4] sm:$0xf]
      %v518 = vld [vmem:[%s1 + $0x5c8] sm:$0xff]
      %v519 = vld [vmem:[%s1 + $0x5d0] sm:$0xff]
      %v520 = vld [vmem:[%s1 + $0x5d8] sm:$0xf]
      %v521 = vld [vmem:[%s1 + $0x5dc] sm:$0xff]
      %v522 = vld [vmem:[%s1 + $0x5e4] sm:$0xff]
      %v523 = vld [vmem:[%s1 + $0x5ec] sm:$0xf]
      %v524 = vld [vmem:[%s1 + $0x5f0] sm:$0xff]
      %v525 = vld [vmem:[%s1 + $0x5f8] sm:$0xff]
      %v526 = vld [vmem:[%s1 + $0x600] sm:$0xf]
      %v527 = vld [vmem:[%s1 + $0x604] sm:$0xff]
      %v528 = vld [vmem:[%s1 + $0x60c] sm:$0xff]
      %v529 = vld [vmem:[%s1 + $0x614] sm:$0xf]
      %v530 = vld [vmem:[%s1 + $0x618] sm:$0xff]
      %v531 = vld [vmem:[%s1 + $0x620] sm:$0xff]
      %v532 = vld [vmem:[%s1 + $0x628] sm:$0xf]
      %v533 = vld [vmem:[%s1 + $0x62c] sm:$0xff]
      %v534 = vld [vmem:[%s1 + $0x634] sm:$0xff]
      %v535 = vld [vmem:[%s1 + $0x63c] sm:$0xf]
      %v536 = vld [vmem:[%s1 + $0x640] sm:$0xff]
      %v537 = vld [vmem:[%s1 + $0x648] sm:$0xff]
      %v538 = vld [vmem:[%s1 + $0x650] sm:$0xf]
      %v539 = vld [vmem:[%s1 + $0x654] sm:$0xff]
      %v540 = vld [vmem:[%s1 + $0x65c] sm:$0xff]
      %v541 = vld [vmem:[%s1 + $0x664] sm:$0xf]
      %v542 = vld [vmem:[%s1 + $0x668] sm:$0xff]
      %v543 = vld [vmem:[%s1 + $0x670] sm:$0xff]
      %v544 = vld [vmem:[%s1 + $0x678] sm:$0xf]
      %v545 = vld [vmem:[%s1 + $0x67c] sm:$0xff]
      %v546 = vld [vmem:[%s1 + $0x684] sm:$0xff]
      %v547 = vld [vmem:[%s1 + $0x68c] sm:$0xf]
      %v548 = vld [vmem:[%s1 + $0x690] sm:$0xff]
      %v549 = vld [vmem:[%s1 + $0x698] sm:$0xff]
      %v550 = vld [vmem:[%s1 + $0x6a0] sm:$0xf]
      %v551 = vld [vmem:[%s1 + $0x6a4] sm:$0xff]
      %v552 = vld [vmem:[%s1 + $0x6ac] sm:$0xff]
      %v553 = vld [vmem:[%s1 + $0x6b4] sm:$0xf]
      %v554 = vld [vmem:[%s1 + $0x6b8] sm:$0xff]
      %v555 = vld [vmem:[%s1 + $0x6c0] sm:$0xff]
      %v556 = vld [vmem:[%s1 + $0x6c8] sm:$0xf]
      %v557 = vld [vmem:[%s1 + $0x6cc] sm:$0xff]
      %v558 = vld [vmem:[%s1 + $0x6d4] sm:$0xff]
      %v559 = vld [vmem:[%s1 + $0x6dc] sm:$0xf]
      %v560 = vld [vmem:[%s1 + $0x6e0] sm:$0xff]
      %v561 = vld [vmem:[%s1 + $0x6e8] sm:$0xff]
      %v562 = vld [vmem:[%s1 + $0x6f0] sm:$0xf]
      %v563 = vld [vmem:[%s1 + $0x6f4] sm:$0xff]
      %v564 = vld [vmem:[%s1 + $0x6fc] sm:$0xff]
      %v565 = vld [vmem:[%s1 + $0x704] sm:$0xf]
      %v566 = vld [vmem:[%s1 + $0x708] sm:$0xff]
      %v567 = vld [vmem:[%s1 + $0x710] sm:$0xff]
      %v568 = vld [vmem:[%s1 + $0x718] sm:$0xf]
      %v569 = vld [vmem:[%s1 + $0x71c] sm:$0xff]
      %v570 = vld [vmem:[%s1 + $0x724] sm:$0xff]
      %v571 = vld [vmem:[%s1 + $0x72c] sm:$0xf]
      %v572 = vld [vmem:[%s1 + $0x730] sm:$0xff]
      %v573 = vld [vmem:[%s1 + $0x738] sm:$0xff]
      %v574 = vld [vmem:[%s1 + $0x740] sm:$0xf]
      %v575 = vld [vmem:[%s1 + $0x744] sm:$0xff]
      %v576 = vld [vmem:[%s1 + $0x74c] sm:$0xff]
      %v577 = vld [vmem:[%s1 + $0x754] sm:$0xf]
      %v578 = vld [vmem:[%s1 + $0x758] sm:$0xff]
      %v579 = vld [vmem:[%s1 + $0x760] sm:$0xff]
      %v580 = vld [vmem:[%s1 + $0x768] sm:$0xf]
      %v581 = vld [vmem:[%s1 + $0x76c] sm:$0xff]
      %v582 = vld [vmem:[%s1 + $0x774] sm:$0xff]
      %v583 = vld [vmem:[%s1 + $0x77c] sm:$0xf]
      %v584 = vld [vmem:[%s1 + $0x780] sm:$0xff]
      %v585 = vld [vmem:[%s1 + $0x788] sm:$0xff]
      %v586 = vld [vmem:[%s1 + $0x790] sm:$0xf]
      %v587 = vld [vmem:[%s1 + $0x794] sm:$0xff]
      %v588 = vld [vmem:[%s1 + $0x79c] sm:$0xff]
      %v589 = vld [vmem:[%s1 + $0x7a4] sm:$0xf]
      %v590 = vld [vmem:[%s2] sm:$0x1f]
      %v592 = vlaneseq
      %v593 = vshrl.u32 %v592, 7
      %v594 = vsub.s32 0, %v593
      %v595 = vrot.slane %v590, %v594
      %v596 = vlaneseq
      %v597 = vshrl.u32 %v596, 7
      %v598 = vsub.s32 1, %v597
      %v599 = vrot.slane %v590, %v598
      %v600 = vlaneseq
      %v601 = vshrl.u32 %v600, 7
      %v602 = vsub.s32 2, %v601
      %v603 = vrot.slane %v590, %v602
      %v604 = vlaneseq
      %v605 = vshrl.u32 %v604, 7
      %v606 = vsub.s32 3, %v605
      %v607 = vrot.slane %v590, %v606
      %v608 = vlaneseq
      %v609 = vshrl.u32 %v608, 7
      %v610 = vsub.s32 4, %v609
      %v611 = vrot.slane %v590, %v610
      %v681 = vunpack.c.l.b16 %v232
      %v682 = vunpack.c.h.b16 %v232
      %v683 = vunpack.c.l.b16 %v233
      %v684 = vunpack.c.h.b16 %v233
      %v685 = vunpack.c.l.b16 %v234
      %v686 = vunpack.c.h.b16 %v234
      %v687 = vunpack.c.l.b16 %v235
      %v688 = vunpack.c.l.b16 %v236
      %v689 = vunpack.c.h.b16 %v236
      %v690 = vunpack.c.l.b16 %v237
      %v691 = vunpack.c.h.b16 %v237
      %v692 = vunpack.c.l.b16 %v238
      %v693 = vunpack.c.h.b16 %v238
      %v694 = vunpack.c.l.b16 %v239
      %v695 = vunpack.c.l.b16 %v240
      %v696 = vunpack.c.h.b16 %v240
      %v697 = vunpack.c.l.b16 %v241
      %v698 = vunpack.c.h.b16 %v241
      %v699 = vunpack.c.l.b16 %v242
      %v700 = vunpack.c.h.b16 %v242
      %v701 = vunpack.c.l.b16 %v243
      %v702 = vunpack.c.l.b16 %v244
      %v703 = vunpack.c.h.b16 %v244
      %v704 = vunpack.c.l.b16 %v245
      %v705 = vunpack.c.h.b16 %v245
      %v706 = vunpack.c.l.b16 %v246
      %v707 = vunpack.c.h.b16 %v246
      %v708 = vunpack.c.l.b16 %v247
      %v709 = vunpack.c.l.b16 %v248
      %v710 = vunpack.c.h.b16 %v248
      %v711 = vunpack.c.l.b16 %v249
      %v712 = vunpack.c.h.b16 %v249
      %v713 = vunpack.c.l.b16 %v250
      %v714 = vunpack.c.h.b16 %v250
      %v715 = vunpack.c.l.b16 %v251
      %v716 = vunpack.c.l.b16 %v252
      %v717 = vunpack.c.h.b16 %v252
      %v718 = vunpack.c.l.b16 %v253
      %v719 = vunpack.c.h.b16 %v253
      %v720 = vunpack.c.l.b16 %v254
      %v721 = vunpack.c.h.b16 %v254
      %v722 = vunpack.c.l.b16 %v255
      %v723 = vunpack.c.l.b16 %v256
      %v724 = vunpack.c.h.b16 %v256
      %v725 = vunpack.c.l.b16 %v257
      %v726 = vunpack.c.h.b16 %v257
      %v727 = vunpack.c.l.b16 %v258
      %v728 = vunpack.c.h.b16 %v258
      %v729 = vunpack.c.l.b16 %v259
      %v730 = vunpack.c.l.b16 %v260
      %v731 = vunpack.c.h.b16 %v260
      %v732 = vunpack.c.l.b16 %v261
      %v733 = vunpack.c.h.b16 %v261
      %v734 = vunpack.c.l.b16 %v262
      %v735 = vunpack.c.h.b16 %v262
      %v736 = vunpack.c.l.b16 %v263
      %v737 = vunpack.c.l.b16 %v264
      %v738 = vunpack.c.h.b16 %v264
      %v739 = vunpack.c.l.b16 %v265
      %v740 = vunpack.c.h.b16 %v265
      %v741 = vunpack.c.l.b16 %v266
      %v742 = vunpack.c.h.b16 %v266
      %v743 = vunpack.c.l.b16 %v267
      %v744 = vunpack.c.l.b16 %v268
      %v745 = vunpack.c.h.b16 %v268
      %v746 = vunpack.c.l.b16 %v269
      %v747 = vunpack.c.h.b16 %v269
      %v748 = vunpack.c.l.b16 %v270
      %v749 = vunpack.c.h.b16 %v270
      %v750 = vunpack.c.l.b16 %v271
      %v751 = vunpack.c.l.b16 %v272
      %v752 = vunpack.c.h.b16 %v272
      %v753 = vunpack.c.l.b16 %v273
      %v754 = vunpack.c.h.b16 %v273
      %v755 = vunpack.c.l.b16 %v274
      %v756 = vunpack.c.h.b16 %v274
      %v757 = vunpack.c.l.b16 %v275
      %v758 = vunpack.c.l.b16 %v276
      %v759 = vunpack.c.h.b16 %v276
      %v760 = vunpack.c.l.b16 %v277
      %v761 = vunpack.c.h.b16 %v277
      %v762 = vunpack.c.l.b16 %v278
      %v763 = vunpack.c.h.b16 %v278
      %v764 = vunpack.c.l.b16 %v279
      %v765 = vunpack.c.l.b16 %v280
      %v766 = vunpack.c.h.b16 %v280
      %v767 = vunpack.c.l.b16 %v281
      %v768 = vunpack.c.h.b16 %v281
      %v769 = vunpack.c.l.b16 %v282
      %v770 = vunpack.c.h.b16 %v282
      %v771 = vunpack.c.l.b16 %v283
      %v772 = vunpack.c.l.b16 %v284
      %v773 = vunpack.c.h.b16 %v284
      %v774 = vunpack.c.l.b16 %v285
      %v775 = vunpack.c.h.b16 %v285
      %v776 = vunpack.c.l.b16 %v286
      %v777 = vunpack.c.h.b16 %v286
      %v778 = vunpack.c.l.b16 %v287
      %v779 = vunpack.c.l.b16 %v288
      %v780 = vunpack.c.h.b16 %v288
      %v781 = vunpack.c.l.b16 %v289
      %v782 = vunpack.c.h.b16 %v289
      %v783 = vunpack.c.l.b16 %v290
      %v784 = vunpack.c.h.b16 %v290
      %v785 = vunpack.c.l.b16 %v291
      %v786 = vunpack.c.l.b16 %v292
      %v787 = vunpack.c.h.b16 %v292
      %v788 = vunpack.c.l.b16 %v293
      %v789 = vunpack.c.h.b16 %v293
      %v790 = vunpack.c.l.b16 %v294
      %v791 = vunpack.c.h.b16 %v294
      %v792 = vunpack.c.l.b16 %v295
      %v793 = vpack.c.b16 %v688, %v681
      %v794 = vpack.c.b16 %v689, %v682
      %v795 = vpack.c.b16 %v690, %v683
      %v796 = vpack.c.b16 %v691, %v684
      %v797 = vpack.c.b16 %v692, %v685
      %v798 = vpack.c.b16 %v693, %v686
      %v799 = vpack.c.b16 %v694, %v687
      %v800 = vpack.c.b16 %v702, %v695
      %v801 = vpack.c.b16 %v703, %v696
      %v802 = vpack.c.b16 %v704, %v697
      %v803 = vpack.c.b16 %v705, %v698
      %v804 = vpack.c.b16 %v706, %v699
      %v805 = vpack.c.b16 %v707, %v700
      %v806 = vpack.c.b16 %v708, %v701
      %v807 = vpack.c.b16 %v716, %v709
      %v808 = vpack.c.b16 %v717, %v710
      %v809 = vpack.c.b16 %v718, %v711
      %v810 = vpack.c.b16 %v719, %v712
      %v811 = vpack.c.b16 %v720, %v713
      %v812 = vpack.c.b16 %v721, %v714
      %v813 = vpack.c.b16 %v722, %v715
      %v814 = vpack.c.b16 %v730, %v723
      %v815 = vpack.c.b16 %v731, %v724
      %v816 = vpack.c.b16 %v732, %v725
      %v817 = vpack.c.b16 %v733, %v726
      %v818 = vpack.c.b16 %v734, %v727
      %v819 = vpack.c.b16 %v735, %v728
      %v820 = vpack.c.b16 %v736, %v729
      %v821 = vpack.c.b16 %v744, %v737
      %v822 = vpack.c.b16 %v745, %v738
      %v823 = vpack.c.b16 %v746, %v739
      %v824 = vpack.c.b16 %v747, %v740
      %v825 = vpack.c.b16 %v748, %v741
      %v826 = vpack.c.b16 %v749, %v742
      %v827 = vpack.c.b16 %v750, %v743
      %v828 = vpack.c.b16 %v758, %v751
      %v829 = vpack.c.b16 %v759, %v752
      %v830 = vpack.c.b16 %v760, %v753
      %v831 = vpack.c.b16 %v761, %v754
      %v832 = vpack.c.b16 %v762, %v755
      %v833 = vpack.c.b16 %v763, %v756
      %v834 = vpack.c.b16 %v764, %v757
      %v835 = vpack.c.b16 %v772, %v765
      %v836 = vpack.c.b16 %v773, %v766
      %v837 = vpack.c.b16 %v774, %v767
      %v838 = vpack.c.b16 %v775, %v768
      %v839 = vpack.c.b16 %v776, %v769
      %v840 = vpack.c.b16 %v777, %v770
      %v841 = vpack.c.b16 %v778, %v771
      %v842 = vpack.c.b16 %v786, %v779
      %v843 = vpack.c.b16 %v787, %v780
      %v844 = vpack.c.b16 %v788, %v781
      %v845 = vpack.c.b16 %v789, %v782
      %v846 = vpack.c.b16 %v790, %v783
      %v847 = vpack.c.b16 %v791, %v784
      %v848 = vpack.c.b16 %v792, %v785
      %v1191 = vunpack.c.l.b16 %v296
      %v1192 = vunpack.c.h.b16 %v296
      %v1193 = vunpack.c.l.b16 %v297
      %v1194 = vunpack.c.h.b16 %v297
      %v1195 = vunpack.c.l.b16 %v298
      %v1196 = vunpack.c.l.b16 %v299
      %v1197 = vunpack.c.h.b16 %v299
      %v1198 = vunpack.c.l.b16 %v300
      %v1199 = vunpack.c.h.b16 %v300
      %v1200 = vunpack.c.l.b16 %v301
      %v1201 = vunpack.c.l.b16 %v302
      %v1202 = vunpack.c.h.b16 %v302
      %v1203 = vunpack.c.l.b16 %v303
      %v1204 = vunpack.c.h.b16 %v303
      %v1205 = vunpack.c.l.b16 %v304
      %v1206 = vunpack.c.l.b16 %v305
      %v1207 = vunpack.c.h.b16 %v305
      %v1208 = vunpack.c.l.b16 %v306
      %v1209 = vunpack.c.h.b16 %v306
      %v1210 = vunpack.c.l.b16 %v307
      %v1211 = vunpack.c.l.b16 %v308
      %v1212 = vunpack.c.h.b16 %v308
      %v1213 = vunpack.c.l.b16 %v309
      %v1214 = vunpack.c.h.b16 %v309
      %v1215 = vunpack.c.l.b16 %v310
      %v1216 = vunpack.c.l.b16 %v311
      %v1217 = vunpack.c.h.b16 %v311
      %v1218 = vunpack.c.l.b16 %v312
      %v1219 = vunpack.c.h.b16 %v312
      %v1220 = vunpack.c.l.b16 %v313
      %v1221 = vunpack.c.l.b16 %v314
      %v1222 = vunpack.c.h.b16 %v314
      %v1223 = vunpack.c.l.b16 %v315
      %v1224 = vunpack.c.h.b16 %v315
      %v1225 = vunpack.c.l.b16 %v316
      %v1226 = vunpack.c.l.b16 %v317
      %v1227 = vunpack.c.h.b16 %v317
      %v1228 = vunpack.c.l.b16 %v318
      %v1229 = vunpack.c.h.b16 %v318
      %v1230 = vunpack.c.l.b16 %v319
      %v1231 = vunpack.c.l.b16 %v320
      %v1232 = vunpack.c.h.b16 %v320
      %v1233 = vunpack.c.l.b16 %v321
      %v1234 = vunpack.c.h.b16 %v321
      %v1235 = vunpack.c.l.b16 %v322
      %v1236 = vunpack.c.l.b16 %v323
      %v1237 = vunpack.c.h.b16 %v323
      %v1238 = vunpack.c.l.b16 %v324
      %v1239 = vunpack.c.h.b16 %v324
      %v1240 = vunpack.c.l.b16 %v325
      %v1241 = vunpack.c.l.b16 %v326
      %v1242 = vunpack.c.h.b16 %v326
      %v1243 = vunpack.c.l.b16 %v327
      %v1244 = vunpack.c.h.b16 %v327
      %v1245 = vunpack.c.l.b16 %v328
      %v1246 = vunpack.c.l.b16 %v329
      %v1247 = vunpack.c.h.b16 %v329
      %v1248 = vunpack.c.l.b16 %v330
      %v1249 = vunpack.c.h.b16 %v330
      %v1250 = vunpack.c.l.b16 %v331
      %v1251 = vunpack.c.l.b16 %v332
      %v1252 = vunpack.c.h.b16 %v332
      %v1253 = vunpack.c.l.b16 %v333
      %v1254 = vunpack.c.h.b16 %v333
      %v1255 = vunpack.c.l.b16 %v334
      %v1256 = vunpack.c.l.b16 %v335
      %v1257 = vunpack.c.h.b16 %v335
      %v1258 = vunpack.c.l.b16 %v336
      %v1259 = vunpack.c.h.b16 %v336
      %v1260 = vunpack.c.l.b16 %v337
      %v1261 = vunpack.c.l.b16 %v338
      %v1262 = vunpack.c.h.b16 %v338
      %v1263 = vunpack.c.l.b16 %v339
      %v1264 = vunpack.c.h.b16 %v339
      %v1265 = vunpack.c.l.b16 %v340
      %v1266 = vunpack.c.l.b16 %v341
      %v1267 = vunpack.c.h.b16 %v341
      %v1268 = vunpack.c.l.b16 %v342
      %v1269 = vunpack.c.h.b16 %v342
      %v1270 = vunpack.c.l.b16 %v343
      %v1271 = vunpack.c.l.b16 %v344
      %v1272 = vunpack.c.h.b16 %v344
      %v1273 = vunpack.c.l.b16 %v345
      %v1274 = vunpack.c.h.b16 %v345
      %v1275 = vunpack.c.l.b16 %v346
      %v1276 = vunpack.c.l.b16 %v347
      %v1277 = vunpack.c.h.b16 %v347
      %v1278 = vunpack.c.l.b16 %v348
      %v1279 = vunpack.c.h.b16 %v348
      %v1280 = vunpack.c.l.b16 %v349
      %v1281 = vunpack.c.l.b16 %v350
      %v1282 = vunpack.c.h.b16 %v350
      %v1283 = vunpack.c.l.b16 %v351
      %v1284 = vunpack.c.h.b16 %v351
      %v1285 = vunpack.c.l.b16 %v352
      %v1286 = vunpack.c.l.b16 %v353
      %v1287 = vunpack.c.h.b16 %v353
      %v1288 = vunpack.c.l.b16 %v354
      %v1289 = vunpack.c.h.b16 %v354
      %v1290 = vunpack.c.l.b16 %v355
      %v1291 = vunpack.c.l.b16 %v356
      %v1292 = vunpack.c.h.b16 %v356
      %v1293 = vunpack.c.l.b16 %v357
      %v1294 = vunpack.c.h.b16 %v357
      %v1295 = vunpack.c.l.b16 %v358
      %v1296 = vunpack.c.l.b16 %v359
      %v1297 = vunpack.c.h.b16 %v359
      %v1298 = vunpack.c.l.b16 %v360
      %v1299 = vunpack.c.h.b16 %v360
      %v1300 = vunpack.c.l.b16 %v361
      %v1301 = vunpack.c.l.b16 %v362
      %v1302 = vunpack.c.h.b16 %v362
      %v1303 = vunpack.c.l.b16 %v363
      %v1304 = vunpack.c.h.b16 %v363
      %v1305 = vunpack.c.l.b16 %v364
      %v1306 = vunpack.c.l.b16 %v365
      %v1307 = vunpack.c.h.b16 %v365
      %v1308 = vunpack.c.l.b16 %v366
      %v1309 = vunpack.c.h.b16 %v366
      %v1310 = vunpack.c.l.b16 %v367
      %v1311 = vunpack.c.l.b16 %v368
      %v1312 = vunpack.c.h.b16 %v368
      %v1313 = vunpack.c.l.b16 %v369
      %v1314 = vunpack.c.h.b16 %v369
      %v1315 = vunpack.c.l.b16 %v370
      %v1316 = vunpack.c.l.b16 %v371
      %v1317 = vunpack.c.h.b16 %v371
      %v1318 = vunpack.c.l.b16 %v372
      %v1319 = vunpack.c.h.b16 %v372
      %v1320 = vunpack.c.l.b16 %v373
      %v1321 = vunpack.c.l.b16 %v374
      %v1322 = vunpack.c.h.b16 %v374
      %v1323 = vunpack.c.l.b16 %v375
      %v1324 = vunpack.c.h.b16 %v375
      %v1325 = vunpack.c.l.b16 %v376
      %v1326 = vunpack.c.l.b16 %v377
      %v1327 = vunpack.c.h.b16 %v377
      %v1328 = vunpack.c.l.b16 %v378
      %v1329 = vunpack.c.h.b16 %v378
      %v1330 = vunpack.c.l.b16 %v379
      %v1331 = vunpack.c.l.b16 %v380
      %v1332 = vunpack.c.h.b16 %v380
      %v1333 = vunpack.c.l.b16 %v381
      %v1334 = vunpack.c.h.b16 %v381
      %v1335 = vunpack.c.l.b16 %v382
      %v1336 = vunpack.c.l.b16 %v383
      %v1337 = vunpack.c.h.b16 %v383
      %v1338 = vunpack.c.l.b16 %v384
      %v1339 = vunpack.c.h.b16 %v384
      %v1340 = vunpack.c.l.b16 %v385
      %v1341 = vunpack.c.l.b16 %v386
      %v1342 = vunpack.c.h.b16 %v386
      %v1343 = vunpack.c.l.b16 %v387
      %v1344 = vunpack.c.h.b16 %v387
      %v1345 = vunpack.c.l.b16 %v388
      %v1346 = vunpack.c.l.b16 %v389
      %v1347 = vunpack.c.h.b16 %v389
      %v1348 = vunpack.c.l.b16 %v390
      %v1349 = vunpack.c.h.b16 %v390
      %v1350 = vunpack.c.l.b16 %v391
      %v1351 = vunpack.c.l.b16 %v392
      %v1352 = vunpack.c.h.b16 %v392
      %v1353 = vunpack.c.l.b16 %v393
      %v1354 = vunpack.c.h.b16 %v393
      %v1355 = vunpack.c.l.b16 %v394
      %v1356 = vunpack.c.l.b16 %v395
      %v1357 = vunpack.c.h.b16 %v395
      %v1358 = vunpack.c.l.b16 %v396
      %v1359 = vunpack.c.h.b16 %v396
      %v1360 = vunpack.c.l.b16 %v397
      %v1361 = vunpack.c.l.b16 %v398
      %v1362 = vunpack.c.h.b16 %v398
      %v1363 = vunpack.c.l.b16 %v399
      %v1364 = vunpack.c.h.b16 %v399
      %v1365 = vunpack.c.l.b16 %v400
      %v1366 = vunpack.c.l.b16 %v401
      %v1367 = vunpack.c.h.b16 %v401
      %v1368 = vunpack.c.l.b16 %v402
      %v1369 = vunpack.c.h.b16 %v402
      %v1370 = vunpack.c.l.b16 %v403
      %v1371 = vunpack.c.l.b16 %v404
      %v1372 = vunpack.c.h.b16 %v404
      %v1373 = vunpack.c.l.b16 %v405
      %v1374 = vunpack.c.h.b16 %v405
      %v1375 = vunpack.c.l.b16 %v406
      %v1376 = vunpack.c.l.b16 %v407
      %v1377 = vunpack.c.h.b16 %v407
      %v1378 = vunpack.c.l.b16 %v408
      %v1379 = vunpack.c.h.b16 %v408
      %v1380 = vunpack.c.l.b16 %v409
      %v1381 = vunpack.c.l.b16 %v410
      %v1382 = vunpack.c.h.b16 %v410
      %v1383 = vunpack.c.l.b16 %v411
      %v1384 = vunpack.c.h.b16 %v411
      %v1385 = vunpack.c.l.b16 %v412
      %v1386 = vunpack.c.l.b16 %v413
      %v1387 = vunpack.c.h.b16 %v413
      %v1388 = vunpack.c.l.b16 %v414
      %v1389 = vunpack.c.h.b16 %v414
      %v1390 = vunpack.c.l.b16 %v415
      %v1391 = vunpack.c.l.b16 %v416
      %v1392 = vunpack.c.h.b16 %v416
      %v1393 = vunpack.c.l.b16 %v417
      %v1394 = vunpack.c.h.b16 %v417
      %v1395 = vunpack.c.l.b16 %v418
      %v1396 = vunpack.c.l.b16 %v419
      %v1397 = vunpack.c.h.b16 %v419
      %v1398 = vunpack.c.l.b16 %v420
      %v1399 = vunpack.c.h.b16 %v420
      %v1400 = vunpack.c.l.b16 %v421
      %v1401 = vunpack.c.l.b16 %v422
      %v1402 = vunpack.c.h.b16 %v422
      %v1403 = vunpack.c.l.b16 %v423
      %v1404 = vunpack.c.h.b16 %v423
      %v1405 = vunpack.c.l.b16 %v424
      %v1406 = vunpack.c.l.b16 %v425
      %v1407 = vunpack.c.h.b16 %v425
      %v1408 = vunpack.c.l.b16 %v426
      %v1409 = vunpack.c.h.b16 %v426
      %v1410 = vunpack.c.l.b16 %v427
      %v1411 = vunpack.c.l.b16 %v428
      %v1412 = vunpack.c.h.b16 %v428
      %v1413 = vunpack.c.l.b16 %v429
      %v1414 = vunpack.c.h.b16 %v429
      %v1415 = vunpack.c.l.b16 %v430
      %v1416 = vunpack.c.l.b16 %v431
      %v1417 = vunpack.c.h.b16 %v431
      %v1418 = vunpack.c.l.b16 %v432
      %v1419 = vunpack.c.h.b16 %v432
      %v1420 = vunpack.c.l.b16 %v433
      %v1421 = vunpack.c.l.b16 %v434
      %v1422 = vunpack.c.h.b16 %v434
      %v1423 = vunpack.c.l.b16 %v435
      %v1424 = vunpack.c.h.b16 %v435
      %v1425 = vunpack.c.l.b16 %v436
      %v1426 = vunpack.c.l.b16 %v437
      %v1427 = vunpack.c.h.b16 %v437
      %v1428 = vunpack.c.l.b16 %v438
      %v1429 = vunpack.c.h.b16 %v438
      %v1430 = vunpack.c.l.b16 %v439
      %v1431 = vunpack.c.l.b16 %v440
      %v1432 = vunpack.c.h.b16 %v440
      %v1433 = vunpack.c.l.b16 %v441
      %v1434 = vunpack.c.h.b16 %v441
      %v1435 = vunpack.c.l.b16 %v442
      %v1436 = vunpack.c.l.b16 %v443
      %v1437 = vunpack.c.h.b16 %v443
      %v1438 = vunpack.c.l.b16 %v444
      %v1439 = vunpack.c.h.b16 %v444
      %v1440 = vunpack.c.l.b16 %v445
      %v1441 = vunpack.c.l.b16 %v446
      %v1442 = vunpack.c.h.b16 %v446
      %v1443 = vunpack.c.l.b16 %v447
      %v1444 = vunpack.c.h.b16 %v447
      %v1445 = vunpack.c.l.b16 %v448
      %v1446 = vunpack.c.l.b16 %v449
      %v1447 = vunpack.c.h.b16 %v449
      %v1448 = vunpack.c.l.b16 %v450
      %v1449 = vunpack.c.h.b16 %v450
      %v1450 = vunpack.c.l.b16 %v451
      %v1451 = vunpack.c.l.b16 %v452
      %v1452 = vunpack.c.h.b16 %v452
      %v1453 = vunpack.c.l.b16 %v453
      %v1454 = vunpack.c.h.b16 %v453
      %v1455 = vunpack.c.l.b16 %v454
      %v1456 = vunpack.c.l.b16 %v455
      %v1457 = vunpack.c.h.b16 %v455
      %v1458 = vunpack.c.l.b16 %v456
      %v1459 = vunpack.c.h.b16 %v456
      %v1460 = vunpack.c.l.b16 %v457
      %v1461 = vunpack.c.l.b16 %v458
      %v1462 = vunpack.c.h.b16 %v458
      %v1463 = vunpack.c.l.b16 %v459
      %v1464 = vunpack.c.h.b16 %v459
      %v1465 = vunpack.c.l.b16 %v460
      %v1466 = vunpack.c.l.b16 %v461
      %v1467 = vunpack.c.h.b16 %v461
      %v1468 = vunpack.c.l.b16 %v462
      %v1469 = vunpack.c.h.b16 %v462
      %v1470 = vunpack.c.l.b16 %v463
      %v1471 = vunpack.c.l.b16 %v464
      %v1472 = vunpack.c.h.b16 %v464
      %v1473 = vunpack.c.l.b16 %v465
      %v1474 = vunpack.c.h.b16 %v465
      %v1475 = vunpack.c.l.b16 %v466
      %v1476 = vunpack.c.l.b16 %v467
      %v1477 = vunpack.c.h.b16 %v467
      %v1478 = vunpack.c.l.b16 %v468
      %v1479 = vunpack.c.h.b16 %v468
      %v1480 = vunpack.c.l.b16 %v469
      %v1481 = vunpack.c.l.b16 %v470
      %v1482 = vunpack.c.h.b16 %v470
      %v1483 = vunpack.c.l.b16 %v471
      %v1484 = vunpack.c.h.b16 %v471
      %v1485 = vunpack.c.l.b16 %v472
      %v1486 = vunpack.c.l.b16 %v473
      %v1487 = vunpack.c.h.b16 %v473
      %v1488 = vunpack.c.l.b16 %v474
      %v1489 = vunpack.c.h.b16 %v474
      %v1490 = vunpack.c.l.b16 %v475
      %v1491 = vunpack.c.l.b16 %v476
      %v1492 = vunpack.c.h.b16 %v476
      %v1493 = vunpack.c.l.b16 %v477
      %v1494 = vunpack.c.h.b16 %v477
      %v1495 = vunpack.c.l.b16 %v478
      %v1496 = vunpack.c.l.b16 %v479
      %v1497 = vunpack.c.h.b16 %v479
      %v1498 = vunpack.c.l.b16 %v480
      %v1499 = vunpack.c.h.b16 %v480
      %v1500 = vunpack.c.l.b16 %v481
      %v1501 = vunpack.c.l.b16 %v482
      %v1502 = vunpack.c.h.b16 %v482
      %v1503 = vunpack.c.l.b16 %v483
      %v1504 = vunpack.c.h.b16 %v483
      %v1505 = vunpack.c.l.b16 %v484
      %v1506 = vunpack.c.l.b16 %v485
      %v1507 = vunpack.c.h.b16 %v485
      %v1508 = vunpack.c.l.b16 %v486
      %v1509 = vunpack.c.h.b16 %v486
      %v1510 = vunpack.c.l.b16 %v487
      %v1511 = vunpack.c.l.b16 %v488
      %v1512 = vunpack.c.h.b16 %v488
      %v1513 = vunpack.c.l.b16 %v489
      %v1514 = vunpack.c.h.b16 %v489
      %v1515 = vunpack.c.l.b16 %v490
      %v1516 = vunpack.c.l.b16 %v491
      %v1517 = vunpack.c.h.b16 %v491
      %v1518 = vunpack.c.l.b16 %v492
      %v1519 = vunpack.c.h.b16 %v492
      %v1520 = vunpack.c.l.b16 %v493
      %v1521 = vunpack.c.l.b16 %v494
      %v1522 = vunpack.c.h.b16 %v494
      %v1523 = vunpack.c.l.b16 %v495
      %v1524 = vunpack.c.h.b16 %v495
      %v1525 = vunpack.c.l.b16 %v496
      %v1526 = vunpack.c.l.b16 %v497
      %v1527 = vunpack.c.h.b16 %v497
      %v1528 = vunpack.c.l.b16 %v498
      %v1529 = vunpack.c.h.b16 %v498
      %v1530 = vunpack.c.l.b16 %v499
      %v1531 = vunpack.c.l.b16 %v500
      %v1532 = vunpack.c.h.b16 %v500
      %v1533 = vunpack.c.l.b16 %v501
      %v1534 = vunpack.c.h.b16 %v501
      %v1535 = vunpack.c.l.b16 %v502
      %v1536 = vunpack.c.l.b16 %v503
      %v1537 = vunpack.c.h.b16 %v503
      %v1538 = vunpack.c.l.b16 %v504
      %v1539 = vunpack.c.h.b16 %v504
      %v1540 = vunpack.c.l.b16 %v505
      %v1541 = vunpack.c.l.b16 %v506
      %v1542 = vunpack.c.h.b16 %v506
      %v1543 = vunpack.c.l.b16 %v507
      %v1544 = vunpack.c.h.b16 %v507
      %v1545 = vunpack.c.l.b16 %v508
      %v1546 = vunpack.c.l.b16 %v509
      %v1547 = vunpack.c.h.b16 %v509
      %v1548 = vunpack.c.l.b16 %v510
      %v1549 = vunpack.c.h.b16 %v510
      %v1550 = vunpack.c.l.b16 %v511
      %v1551 = vunpack.c.l.b16 %v512
      %v1552 = vunpack.c.h.b16 %v512
      %v1553 = vunpack.c.l.b16 %v513
      %v1554 = vunpack.c.h.b16 %v513
      %v1555 = vunpack.c.l.b16 %v514
      %v1556 = vunpack.c.l.b16 %v515
      %v1557 = vunpack.c.h.b16 %v515
      %v1558 = vunpack.c.l.b16 %v516
      %v1559 = vunpack.c.h.b16 %v516
      %v1560 = vunpack.c.l.b16 %v517
      %v1561 = vunpack.c.l.b16 %v518
      %v1562 = vunpack.c.h.b16 %v518
      %v1563 = vunpack.c.l.b16 %v519
      %v1564 = vunpack.c.h.b16 %v519
      %v1565 = vunpack.c.l.b16 %v520
      %v1566 = vunpack.c.l.b16 %v521
      %v1567 = vunpack.c.h.b16 %v521
      %v1568 = vunpack.c.l.b16 %v522
      %v1569 = vunpack.c.h.b16 %v522
      %v1570 = vunpack.c.l.b16 %v523
      %v1571 = vunpack.c.l.b16 %v524
      %v1572 = vunpack.c.h.b16 %v524
      %v1573 = vunpack.c.l.b16 %v525
      %v1574 = vunpack.c.h.b16 %v525
      %v1575 = vunpack.c.l.b16 %v526
      %v1576 = vunpack.c.l.b16 %v527
      %v1577 = vunpack.c.h.b16 %v527
      %v1578 = vunpack.c.l.b16 %v528
      %v1579 = vunpack.c.h.b16 %v528
      %v1580 = vunpack.c.l.b16 %v529
      %v1581 = vunpack.c.l.b16 %v530
      %v1582 = vunpack.c.h.b16 %v530
      %v1583 = vunpack.c.l.b16 %v531
      %v1584 = vunpack.c.h.b16 %v531
      %v1585 = vunpack.c.l.b16 %v532
      %v1586 = vunpack.c.l.b16 %v533
      %v1587 = vunpack.c.h.b16 %v533
      %v1588 = vunpack.c.l.b16 %v534
      %v1589 = vunpack.c.h.b16 %v534
      %v1590 = vunpack.c.l.b16 %v535
      %v1591 = vunpack.c.l.b16 %v536
      %v1592 = vunpack.c.h.b16 %v536
      %v1593 = vunpack.c.l.b16 %v537
      %v1594 = vunpack.c.h.b16 %v537
      %v1595 = vunpack.c.l.b16 %v538
      %v1596 = vunpack.c.l.b16 %v539
      %v1597 = vunpack.c.h.b16 %v539
      %v1598 = vunpack.c.l.b16 %v540
      %v1599 = vunpack.c.h.b16 %v540
      %v1600 = vunpack.c.l.b16 %v541
      %v1601 = vunpack.c.l.b16 %v542
      %v1602 = vunpack.c.h.b16 %v542
      %v1603 = vunpack.c.l.b16 %v543
      %v1604 = vunpack.c.h.b16 %v543
      %v1605 = vunpack.c.l.b16 %v544
      %v1606 = vunpack.c.l.b16 %v545
      %v1607 = vunpack.c.h.b16 %v545
      %v1608 = vunpack.c.l.b16 %v546
      %v1609 = vunpack.c.h.b16 %v546
      %v1610 = vunpack.c.l.b16 %v547
      %v1611 = vunpack.c.l.b16 %v548
      %v1612 = vunpack.c.h.b16 %v548
      %v1613 = vunpack.c.l.b16 %v549
      %v1614 = vunpack.c.h.b16 %v549
      %v1615 = vunpack.c.l.b16 %v550
      %v1616 = vunpack.c.l.b16 %v551
      %v1617 = vunpack.c.h.b16 %v551
      %v1618 = vunpack.c.l.b16 %v552
      %v1619 = vunpack.c.h.b16 %v552
      %v1620 = vunpack.c.l.b16 %v553
      %v1621 = vunpack.c.l.b16 %v554
      %v1622 = vunpack.c.h.b16 %v554
      %v1623 = vunpack.c.l.b16 %v555
      %v1624 = vunpack.c.h.b16 %v555
      %v1625 = vunpack.c.l.b16 %v556
      %v1626 = vunpack.c.l.b16 %v557
      %v1627 = vunpack.c.h.b16 %v557
      %v1628 = vunpack.c.l.b16 %v558
      %v1629 = vunpack.c.h.b16 %v558
      %v1630 = vunpack.c.l.b16 %v559
      %v1631 = vunpack.c.l.b16 %v560
      %v1632 = vunpack.c.h.b16 %v560
      %v1633 = vunpack.c.l.b16 %v561
      %v1634 = vunpack.c.h.b16 %v561
      %v1635 = vunpack.c.l.b16 %v562
      %v1636 = vunpack.c.l.b16 %v563
      %v1637 = vunpack.c.h.b16 %v563
      %v1638 = vunpack.c.l.b16 %v564
      %v1639 = vunpack.c.h.b16 %v564
      %v1640 = vunpack.c.l.b16 %v565
      %v1641 = vunpack.c.l.b16 %v566
      %v1642 = vunpack.c.h.b16 %v566
      %v1643 = vunpack.c.l.b16 %v567
      %v1644 = vunpack.c.h.b16 %v567
      %v1645 = vunpack.c.l.b16 %v568
      %v1646 = vunpack.c.l.b16 %v569
      %v1647 = vunpack.c.h.b16 %v569
      %v1648 = vunpack.c.l.b16 %v570
      %v1649 = vunpack.c.h.b16 %v570
      %v1650 = vunpack.c.l.b16 %v571
      %v1651 = vunpack.c.l.b16 %v572
      %v1652 = vunpack.c.h.b16 %v572
      %v1653 = vunpack.c.l.b16 %v573
      %v1654 = vunpack.c.h.b16 %v573
      %v1655 = vunpack.c.l.b16 %v574
      %v1656 = vunpack.c.l.b16 %v575
      %v1657 = vunpack.c.h.b16 %v575
      %v1658 = vunpack.c.l.b16 %v576
      %v1659 = vunpack.c.h.b16 %v576
      %v1660 = vunpack.c.l.b16 %v577
      %v1661 = vunpack.c.l.b16 %v578
      %v1662 = vunpack.c.h.b16 %v578
      %v1663 = vunpack.c.l.b16 %v579
      %v1664 = vunpack.c.h.b16 %v579
      %v1665 = vunpack.c.l.b16 %v580
      %v1666 = vunpack.c.l.b16 %v581
      %v1667 = vunpack.c.h.b16 %v581
      %v1668 = vunpack.c.l.b16 %v582
      %v1669 = vunpack.c.h.b16 %v582
      %v1670 = vunpack.c.l.b16 %v583
      %v1671 = vunpack.c.l.b16 %v584
      %v1672 = vunpack.c.h.b16 %v584
      %v1673 = vunpack.c.l.b16 %v585
      %v1674 = vunpack.c.h.b16 %v585
      %v1675 = vunpack.c.l.b16 %v586
      %v1676 = vunpack.c.l.b16 %v587
      %v1677 = vunpack.c.h.b16 %v587
      %v1678 = vunpack.c.l.b16 %v588
      %v1679 = vunpack.c.h.b16 %v588
      %v1680 = vunpack.c.l.b16 %v589
      %v1681 = vpack.c.b16 %v1196, %v1191
      %v1682 = vpack.c.b16 %v1197, %v1192
      %v1683 = vpack.c.b16 %v1198, %v1193
      %v1684 = vpack.c.b16 %v1199, %v1194
      %v1685 = vpack.c.b16 %v1200, %v1195
      %v1686 = vpack.c.b16 %v1206, %v1201
      %v1687 = vpack.c.b16 %v1207, %v1202
      %v1688 = vpack.c.b16 %v1208, %v1203
      %v1689 = vpack.c.b16 %v1209, %v1204
      %v1690 = vpack.c.b16 %v1210, %v1205
      %v1691 = vpack.c.b16 %v1216, %v1211
      %v1692 = vpack.c.b16 %v1217, %v1212
      %v1693 = vpack.c.b16 %v1218, %v1213
      %v1694 = vpack.c.b16 %v1219, %v1214
      %v1695 = vpack.c.b16 %v1220, %v1215
      %v1696 = vpack.c.b16 %v1226, %v1221
      %v1697 = vpack.c.b16 %v1227, %v1222
      %v1698 = vpack.c.b16 %v1228, %v1223
      %v1699 = vpack.c.b16 %v1229, %v1224
      %v1700 = vpack.c.b16 %v1230, %v1225
      %v1701 = vpack.c.b16 %v1236, %v1231
      %v1702 = vpack.c.b16 %v1237, %v1232
      %v1703 = vpack.c.b16 %v1238, %v1233
      %v1704 = vpack.c.b16 %v1239, %v1234
      %v1705 = vpack.c.b16 %v1240, %v1235
      %v1706 = vpack.c.b16 %v1246, %v1241
      %v1707 = vpack.c.b16 %v1247, %v1242
      %v1708 = vpack.c.b16 %v1248, %v1243
      %v1709 = vpack.c.b16 %v1249, %v1244
      %v1710 = vpack.c.b16 %v1250, %v1245
      %v1711 = vpack.c.b16 %v1256, %v1251
      %v1712 = vpack.c.b16 %v1257, %v1252
      %v1713 = vpack.c.b16 %v1258, %v1253
      %v1714 = vpack.c.b16 %v1259, %v1254
      %v1715 = vpack.c.b16 %v1260, %v1255
      %v1716 = vpack.c.b16 %v1266, %v1261
      %v1717 = vpack.c.b16 %v1267, %v1262
      %v1718 = vpack.c.b16 %v1268, %v1263
      %v1719 = vpack.c.b16 %v1269, %v1264
      %v1720 = vpack.c.b16 %v1270, %v1265
      %v1721 = vpack.c.b16 %v1276, %v1271
      %v1722 = vpack.c.b16 %v1277, %v1272
      %v1723 = vpack.c.b16 %v1278, %v1273
      %v1724 = vpack.c.b16 %v1279, %v1274
      %v1725 = vpack.c.b16 %v1280, %v1275
      %v1726 = vpack.c.b16 %v1286, %v1281
      %v1727 = vpack.c.b16 %v1287, %v1282
      %v1728 = vpack.c.b16 %v1288, %v1283
      %v1729 = vpack.c.b16 %v1289, %v1284
      %v1730 = vpack.c.b16 %v1290, %v1285
      %v1731 = vpack.c.b16 %v1296, %v1291
      %v1732 = vpack.c.b16 %v1297, %v1292
      %v1733 = vpack.c.b16 %v1298, %v1293
      %v1734 = vpack.c.b16 %v1299, %v1294
      %v1735 = vpack.c.b16 %v1300, %v1295
      %v1736 = vpack.c.b16 %v1306, %v1301
      %v1737 = vpack.c.b16 %v1307, %v1302
      %v1738 = vpack.c.b16 %v1308, %v1303
      %v1739 = vpack.c.b16 %v1309, %v1304
      %v1740 = vpack.c.b16 %v1310, %v1305
      %v1741 = vpack.c.b16 %v1316, %v1311
      %v1742 = vpack.c.b16 %v1317, %v1312
      %v1743 = vpack.c.b16 %v1318, %v1313
      %v1744 = vpack.c.b16 %v1319, %v1314
      %v1745 = vpack.c.b16 %v1320, %v1315
      %v1746 = vpack.c.b16 %v1326, %v1321
      %v1747 = vpack.c.b16 %v1327, %v1322
      %v1748 = vpack.c.b16 %v1328, %v1323
      %v1749 = vpack.c.b16 %v1329, %v1324
      %v1750 = vpack.c.b16 %v1330, %v1325
      %v1751 = vpack.c.b16 %v1336, %v1331
      %v1752 = vpack.c.b16 %v1337, %v1332
      %v1753 = vpack.c.b16 %v1338, %v1333
      %v1754 = vpack.c.b16 %v1339, %v1334
      %v1755 = vpack.c.b16 %v1340, %v1335
      %v1756 = vpack.c.b16 %v1346, %v1341
      %v1757 = vpack.c.b16 %v1347, %v1342
      %v1758 = vpack.c.b16 %v1348, %v1343
      %v1759 = vpack.c.b16 %v1349, %v1344
      %v1760 = vpack.c.b16 %v1350, %v1345
      %v1761 = vpack.c.b16 %v1356, %v1351
      %v1762 = vpack.c.b16 %v1357, %v1352
      %v1763 = vpack.c.b16 %v1358, %v1353
      %v1764 = vpack.c.b16 %v1359, %v1354
      %v1765 = vpack.c.b16 %v1360, %v1355
      %v1766 = vpack.c.b16 %v1366, %v1361
      %v1767 = vpack.c.b16 %v1367, %v1362
      %v1768 = vpack.c.b16 %v1368, %v1363
      %v1769 = vpack.c.b16 %v1369, %v1364
      %v1770 = vpack.c.b16 %v1370, %v1365
      %v1771 = vpack.c.b16 %v1376, %v1371
      %v1772 = vpack.c.b16 %v1377, %v1372
      %v1773 = vpack.c.b16 %v1378, %v1373
      %v1774 = vpack.c.b16 %v1379, %v1374
      %v1775 = vpack.c.b16 %v1380, %v1375
      %v1776 = vpack.c.b16 %v1386, %v1381
      %v1777 = vpack.c.b16 %v1387, %v1382
      %v1778 = vpack.c.b16 %v1388, %v1383
      %v1779 = vpack.c.b16 %v1389, %v1384
      %v1780 = vpack.c.b16 %v1390, %v1385
      %v1781 = vpack.c.b16 %v1396, %v1391
      %v1782 = vpack.c.b16 %v1397, %v1392
      %v1783 = vpack.c.b16 %v1398, %v1393
      %v1784 = vpack.c.b16 %v1399, %v1394
      %v1785 = vpack.c.b16 %v1400, %v1395
      %v1786 = vpack.c.b16 %v1406, %v1401
      %v1787 = vpack.c.b16 %v1407, %v1402
      %v1788 = vpack.c.b16 %v1408, %v1403
      %v1789 = vpack.c.b16 %v1409, %v1404
      %v1790 = vpack.c.b16 %v1410, %v1405
      %v1791 = vpack.c.b16 %v1416, %v1411
      %v1792 = vpack.c.b16 %v1417, %v1412
      %v1793 = vpack.c.b16 %v1418, %v1413
      %v1794 = vpack.c.b16 %v1419, %v1414
      %v1795 = vpack.c.b16 %v1420, %v1415
      %v1796 = vpack.c.b16 %v1426, %v1421
      %v1797 = vpack.c.b16 %v1427, %v1422
      %v1798 = vpack.c.b16 %v1428, %v1423
      %v1799 = vpack.c.b16 %v1429, %v1424
      %v1800 = vpack.c.b16 %v1430, %v1425
      %v1801 = vpack.c.b16 %v1436, %v1431
      %v1802 = vpack.c.b16 %v1437, %v1432
      %v1803 = vpack.c.b16 %v1438, %v1433
      %v1804 = vpack.c.b16 %v1439, %v1434
      %v1805 = vpack.c.b16 %v1440, %v1435
      %v1806 = vpack.c.b16 %v1446, %v1441
      %v1807 = vpack.c.b16 %v1447, %v1442
      %v1808 = vpack.c.b16 %v1448, %v1443
      %v1809 = vpack.c.b16 %v1449, %v1444
      %v1810 = vpack.c.b16 %v1450, %v1445
      %v1811 = vpack.c.b16 %v1456, %v1451
      %v1812 = vpack.c.b16 %v1457, %v1452
      %v1813 = vpack.c.b16 %v1458, %v1453
      %v1814 = vpack.c.b16 %v1459, %v1454
      %v1815 = vpack.c.b16 %v1460, %v1455
      %v1816 = vpack.c.b16 %v1466, %v1461
      %v1817 = vpack.c.b16 %v1467, %v1462
      %v1818 = vpack.c.b16 %v1468, %v1463
      %v1819 = vpack.c.b16 %v1469, %v1464
      %v1820 = vpack.c.b16 %v1470, %v1465
      %v1821 = vpack.c.b16 %v1476, %v1471
      %v1822 = vpack.c.b16 %v1477, %v1472
      %v1823 = vpack.c.b16 %v1478, %v1473
      %v1824 = vpack.c.b16 %v1479, %v1474
      %v1825 = vpack.c.b16 %v1480, %v1475
      %v1826 = vpack.c.b16 %v1486, %v1481
      %v1827 = vpack.c.b16 %v1487, %v1482
      %v1828 = vpack.c.b16 %v1488, %v1483
      %v1829 = vpack.c.b16 %v1489, %v1484
      %v1830 = vpack.c.b16 %v1490, %v1485
      %v1831 = vpack.c.b16 %v1496, %v1491
      %v1832 = vpack.c.b16 %v1497, %v1492
      %v1833 = vpack.c.b16 %v1498, %v1493
      %v1834 = vpack.c.b16 %v1499, %v1494
      %v1835 = vpack.c.b16 %v1500, %v1495
      %v1836 = vpack.c.b16 %v1506, %v1501
      %v1837 = vpack.c.b16 %v1507, %v1502
      %v1838 = vpack.c.b16 %v1508, %v1503
      %v1839 = vpack.c.b16 %v1509, %v1504
      %v1840 = vpack.c.b16 %v1510, %v1505
      %v1841 = vpack.c.b16 %v1516, %v1511
      %v1842 = vpack.c.b16 %v1517, %v1512
      %v1843 = vpack.c.b16 %v1518, %v1513
      %v1844 = vpack.c.b16 %v1519, %v1514
      %v1845 = vpack.c.b16 %v1520, %v1515
      %v1846 = vpack.c.b16 %v1526, %v1521
      %v1847 = vpack.c.b16 %v1527, %v1522
      %v1848 = vpack.c.b16 %v1528, %v1523
      %v1849 = vpack.c.b16 %v1529, %v1524
      %v1850 = vpack.c.b16 %v1530, %v1525
      %v1851 = vpack.c.b16 %v1536, %v1531
      %v1852 = vpack.c.b16 %v1537, %v1532
      %v1853 = vpack.c.b16 %v1538, %v1533
      %v1854 = vpack.c.b16 %v1539, %v1534
      %v1855 = vpack.c.b16 %v1540, %v1535
      %v1856 = vpack.c.b16 %v1546, %v1541
      %v1857 = vpack.c.b16 %v1547, %v1542
      %v1858 = vpack.c.b16 %v1548, %v1543
      %v1859 = vpack.c.b16 %v1549, %v1544
      %v1860 = vpack.c.b16 %v1550, %v1545
      %v1861 = vpack.c.b16 %v1556, %v1551
      %v1862 = vpack.c.b16 %v1557, %v1552
      %v1863 = vpack.c.b16 %v1558, %v1553
      %v1864 = vpack.c.b16 %v1559, %v1554
      %v1865 = vpack.c.b16 %v1560, %v1555
      %v1866 = vpack.c.b16 %v1566, %v1561
      %v1867 = vpack.c.b16 %v1567, %v1562
      %v1868 = vpack.c.b16 %v1568, %v1563
      %v1869 = vpack.c.b16 %v1569, %v1564
      %v1870 = vpack.c.b16 %v1570, %v1565
      %v1871 = vpack.c.b16 %v1576, %v1571
      %v1872 = vpack.c.b16 %v1577, %v1572
      %v1873 = vpack.c.b16 %v1578, %v1573
      %v1874 = vpack.c.b16 %v1579, %v1574
      %v1875 = vpack.c.b16 %v1580, %v1575
      %v1876 = vpack.c.b16 %v1586, %v1581
      %v1877 = vpack.c.b16 %v1587, %v1582
      %v1878 = vpack.c.b16 %v1588, %v1583
      %v1879 = vpack.c.b16 %v1589, %v1584
      %v1880 = vpack.c.b16 %v1590, %v1585
      %v1881 = vpack.c.b16 %v1596, %v1591
      %v1882 = vpack.c.b16 %v1597, %v1592
      %v1883 = vpack.c.b16 %v1598, %v1593
      %v1884 = vpack.c.b16 %v1599, %v1594
      %v1885 = vpack.c.b16 %v1600, %v1595
      %v1886 = vpack.c.b16 %v1606, %v1601
      %v1887 = vpack.c.b16 %v1607, %v1602
      %v1888 = vpack.c.b16 %v1608, %v1603
      %v1889 = vpack.c.b16 %v1609, %v1604
      %v1890 = vpack.c.b16 %v1610, %v1605
      %v1891 = vpack.c.b16 %v1616, %v1611
      %v1892 = vpack.c.b16 %v1617, %v1612
      %v1893 = vpack.c.b16 %v1618, %v1613
      %v1894 = vpack.c.b16 %v1619, %v1614
      %v1895 = vpack.c.b16 %v1620, %v1615
      %v1896 = vpack.c.b16 %v1626, %v1621
      %v1897 = vpack.c.b16 %v1627, %v1622
      %v1898 = vpack.c.b16 %v1628, %v1623
      %v1899 = vpack.c.b16 %v1629, %v1624
      %v1900 = vpack.c.b16 %v1630, %v1625
      %v1901 = vpack.c.b16 %v1636, %v1631
      %v1902 = vpack.c.b16 %v1637, %v1632
      %v1903 = vpack.c.b16 %v1638, %v1633
      %v1904 = vpack.c.b16 %v1639, %v1634
      %v1905 = vpack.c.b16 %v1640, %v1635
      %v1906 = vpack.c.b16 %v1646, %v1641
      %v1907 = vpack.c.b16 %v1647, %v1642
      %v1908 = vpack.c.b16 %v1648, %v1643
      %v1909 = vpack.c.b16 %v1649, %v1644
      %v1910 = vpack.c.b16 %v1650, %v1645
      %v1911 = vpack.c.b16 %v1656, %v1651
      %v1912 = vpack.c.b16 %v1657, %v1652
      %v1913 = vpack.c.b16 %v1658, %v1653
      %v1914 = vpack.c.b16 %v1659, %v1654
      %v1915 = vpack.c.b16 %v1660, %v1655
      %v1916 = vpack.c.b16 %v1666, %v1661
      %v1917 = vpack.c.b16 %v1667, %v1662
      %v1918 = vpack.c.b16 %v1668, %v1663
      %v1919 = vpack.c.b16 %v1669, %v1664
      %v1920 = vpack.c.b16 %v1670, %v1665
      %v1921 = vpack.c.b16 %v1676, %v1671
      %v1922 = vpack.c.b16 %v1677, %v1672
      %v1923 = vpack.c.b16 %v1678, %v1673
      %v1924 = vpack.c.b16 %v1679, %v1674
      %v1925 = vpack.c.b16 %v1680, %v1675
      %vm2171 = vcmask 130048
      %v2173 = vsel %vm2171, %v799, 0
      %v2176 = vsel %vm2171, %v806, 0
      %v2179 = vsel %vm2171, %v813, 0
      %v2182 = vsel %vm2171, %v820, 0
      %v2185 = vsel %vm2171, %v827, 0
      %v2188 = vsel %vm2171, %v834, 0
      %v2191 = vsel %vm2171, %v841, 0
      %v2194 = vsel %vm2171, %v848, 0
      %2196 = vmatprep.subr.bf16.mxu0 %v1717
      %2197 = vmatpush1.bf16.msra.mxu0 %v1716
      %2198 = vmatprep.subr.bf16.mxu0 %v1712
      %2199 = vmatpush1.bf16.msra.mxu0 %v1711
      %2200 = vmatprep.subr.bf16.mxu0 %v1707
      %2201 = vmatpush1.bf16.msra.mxu0 %v1706
      %2202 = vmatprep.subr.bf16.mxu0 %v1702
      %2203 = vmatpush1.bf16.msra.mxu0 %v1701
      %2204 = vmatprep.subr.bf16.mxu0 %v1697
      %2205 = vmatpush1.bf16.msra.mxu0 %v1696
      %2206 = vmatprep.subr.bf16.mxu0 %v1692
      %2207 = vmatpush1.bf16.msra.mxu0 %v1691
      %2208 = vmatprep.subr.bf16.mxu0 %v1687
      %2209 = vmatpush1.bf16.msra.mxu0 %v1686
      %2210 = vmatprep.subr.bf16.mxu0 %v1682
      %2211 = vmatpush1.bf16.msra.mxu0 %v1681
      %2212 = vmatprep.subr.bf16.mxu0 %v1757
      %2213 = vmatpush2.bf16.msra.mxu0 %v1756
      %2214 = vmatprep.subr.bf16.mxu0 %v1752
      %2215 = vmatpush2.bf16.msra.mxu0 %v1751
      %2216 = vmatprep.subr.bf16.mxu0 %v1747
      %2217 = vmatpush2.bf16.msra.mxu0 %v1746
      %2218 = vmatprep.subr.bf16.mxu0 %v1742
      %2219 = vmatpush2.bf16.msra.mxu0 %v1741
      %2220 = vmatprep.subr.bf16.mxu0 %v1737
      %2221 = vmatpush2.bf16.msra.mxu0 %v1736
      %2222 = vmatprep.subr.bf16.mxu0 %v1732
      %2223 = vmatpush2.bf16.msra.mxu0 %v1731
      %2224 = vmatprep.subr.bf16.mxu0 %v1727
      %2225 = vmatpush2.bf16.msra.mxu0 %v1726
      %2226 = vmatprep.subr.bf16.mxu0 %v1722
      %2227 = vmatpush2.bf16.msra.mxu0 %v1721
      %2228 = vmatprep.mubr.bf16.mxu0 %v794
      %2229 = vmatmul.mubr.bf16.gmra.mxu0 %v793
      %v2230 = vpop.f32.mrf.mxu0
      %v2231 = vadd.f32 %v595, %v2230
      %v2232 = vpop.f32.mrf.mxu0
      %v2233 = vadd.f32 %v599, %v2232
      %v2234 = vpop.f32.mrf.mxu0
      %v2235 = vadd.f32 %v595, %v2234
      %v2236 = vpop.f32.mrf.mxu0
      %v2237 = vadd.f32 %v599, %v2236
      %2238 = vmatprep.mubr.bf16.mxu0 %v801
      %2239 = vmatmul.mubr.bf16.gmra.mxu0 %v800
      %v2240 = vpop.f32.mrf.mxu0
      %v2241 = vadd.f32 %v595, %v2240
      %v2242 = vpop.f32.mrf.mxu0
      %v2243 = vadd.f32 %v599, %v2242
      %v2244 = vpop.f32.mrf.mxu0
      %v2245 = vadd.f32 %v595, %v2244
      %v2246 = vpop.f32.mrf.mxu0
      %v2247 = vadd.f32 %v599, %v2246
      %2248 = vmatprep.mubr.bf16.mxu0 %v808
      %2249 = vmatmul.mubr.bf16.gmra.mxu0 %v807
      %v2250 = vpop.f32.mrf.mxu0
      %v2251 = vadd.f32 %v595, %v2250
      %v2252 = vpop.f32.mrf.mxu0
      %v2253 = vadd.f32 %v599, %v2252
      %v2254 = vpop.f32.mrf.mxu0
      %v2255 = vadd.f32 %v595, %v2254
      %v2256 = vpop.f32.mrf.mxu0
      %v2257 = vadd.f32 %v599, %v2256
      %2258 = vmatprep.mubr.bf16.mxu0 %v815
      %2259 = vmatmul.mubr.bf16.gmra.mxu0 %v814
      %v2260 = vpop.f32.mrf.mxu0
      %v2261 = vadd.f32 %v595, %v2260
      %v2262 = vpop.f32.mrf.mxu0
      %v2263 = vadd.f32 %v599, %v2262
      %v2264 = vpop.f32.mrf.mxu0
      %v2265 = vadd.f32 %v595, %v2264
      %v2266 = vpop.f32.mrf.mxu0
      %v2267 = vadd.f32 %v599, %v2266
      %2268 = vmatprep.mubr.bf16.mxu0 %v822
      %2269 = vmatmul.mubr.bf16.gmra.mxu0 %v821
      %v2270 = vpop.f32.mrf.mxu0
      %v2271 = vadd.f32 %v595, %v2270
      %v2272 = vpop.f32.mrf.mxu0
      %v2273 = vadd.f32 %v599, %v2272
      %v2274 = vpop.f32.mrf.mxu0
      %v2275 = vadd.f32 %v595, %v2274
      %v2276 = vpop.f32.mrf.mxu0
      %v2277 = vadd.f32 %v599, %v2276
      %2278 = vmatprep.mubr.bf16.mxu0 %v829
      %2279 = vmatmul.mubr.bf16.gmra.mxu0 %v828
      %v2280 = vpop.f32.mrf.mxu0
      %v2281 = vadd.f32 %v595, %v2280
      %v2282 = vpop.f32.mrf.mxu0
      %v2283 = vadd.f32 %v599, %v2282
      %v2284 = vpop.f32.mrf.mxu0
      %v2285 = vadd.f32 %v595, %v2284
      %v2286 = vpop.f32.mrf.mxu0
      %v2287 = vadd.f32 %v599, %v2286
      %2288 = vmatprep.mubr.bf16.mxu0 %v836
      %2289 = vmatmul.mubr.bf16.gmra.mxu0 %v835
      %v2290 = vpop.f32.mrf.mxu0
      %v2291 = vadd.f32 %v595, %v2290
      %v2292 = vpop.f32.mrf.mxu0
      %v2293 = vadd.f32 %v599, %v2292
      %v2294 = vpop.f32.mrf.mxu0
      %v2295 = vadd.f32 %v595, %v2294
      %v2296 = vpop.f32.mrf.mxu0
      %v2297 = vadd.f32 %v599, %v2296
      %2298 = vmatprep.mubr.bf16.mxu0 %v843
      %2299 = vmatmul.mubr.bf16.gmra.mxu0 %v842
      %v2300 = vpop.f32.mrf.mxu0
      %v2301 = vadd.f32 %v595, %v2300
      %v2302 = vpop.f32.mrf.mxu0
      %v2303 = vadd.f32 %v599, %v2302
      %v2304 = vpop.f32.mrf.mxu0
      %v2305 = vadd.f32 %v595, %v2304
      %v2306 = vpop.f32.mrf.mxu0
      %v2307 = vadd.f32 %v599, %v2306
      %2308 = vdwg.mxu0
      %2309 = vmatprep.subr.bf16.mxu0 %v1797
      %2310 = vmatpush1.bf16.msra.mxu0 %v1796
      %2311 = vmatprep.subr.bf16.mxu0 %v1792
      %2312 = vmatpush1.bf16.msra.mxu0 %v1791
      %2313 = vmatprep.subr.bf16.mxu0 %v1787
      %2314 = vmatpush1.bf16.msra.mxu0 %v1786
      %2315 = vmatprep.subr.bf16.mxu0 %v1782
      %2316 = vmatpush1.bf16.msra.mxu0 %v1781
      %2317 = vmatprep.subr.bf16.mxu0 %v1777
      %2318 = vmatpush1.bf16.msra.mxu0 %v1776
      %2319 = vmatprep.subr.bf16.mxu0 %v1772
      %2320 = vmatpush1.bf16.msra.mxu0 %v1771
      %2321 = vmatprep.subr.bf16.mxu0 %v1767
      %2322 = vmatpush1.bf16.msra.mxu0 %v1766
      %2323 = vmatprep.subr.bf16.mxu0 %v1762
      %2324 = vmatpush1.bf16.msra.mxu0 %v1761
      %2325 = vmatprep.subr.bf16.mxu0 %v1837
      %2326 = vmatpush2.bf16.msra.mxu0 %v1836
      %2327 = vmatprep.subr.bf16.mxu0 %v1832
      %2328 = vmatpush2.bf16.msra.mxu0 %v1831
      %2329 = vmatprep.subr.bf16.mxu0 %v1827
      %2330 = vmatpush2.bf16.msra.mxu0 %v1826
      %2331 = vmatprep.subr.bf16.mxu0 %v1822
      %2332 = vmatpush2.bf16.msra.mxu0 %v1821
      %2333 = vmatprep.subr.bf16.mxu0 %v1817
      %2334 = vmatpush2.bf16.msra.mxu0 %v1816
      %2335 = vmatprep.subr.bf16.mxu0 %v1812
      %2336 = vmatpush2.bf16.msra.mxu0 %v1811
      %2337 = vmatprep.subr.bf16.mxu0 %v1807
      %2338 = vmatpush2.bf16.msra.mxu0 %v1806
      %2339 = vmatprep.subr.bf16.mxu0 %v1802
      %2340 = vmatpush2.bf16.msra.mxu0 %v1801
      %2341 = vmatprep.mubr.bf16.mxu0 %v796
      %2342 = vmatmul.mubr.bf16.gmra.mxu0 %v795
      %v2343 = vpop.f32.mrf.mxu0
      %v2344 = vadd.f32 %v2231, %v2343
      %v2345 = vpop.f32.mrf.mxu0
      %v2346 = vadd.f32 %v2233, %v2345
      %v2347 = vpop.f32.mrf.mxu0
      %v2348 = vadd.f32 %v2235, %v2347
      %v2349 = vpop.f32.mrf.mxu0
      %v2350 = vadd.f32 %v2237, %v2349
      %2351 = vmatprep.mubr.bf16.mxu0 %v803
      %2352 = vmatmul.mubr.bf16.gmra.mxu0 %v802
      %v2353 = vpop.f32.mrf.mxu0
      %v2354 = vadd.f32 %v2241, %v2353
      %v2355 = vpop.f32.mrf.mxu0
      %v2356 = vadd.f32 %v2243, %v2355
      %v2357 = vpop.f32.mrf.mxu0
      %v2358 = vadd.f32 %v2245, %v2357
      %v2359 = vpop.f32.mrf.mxu0
      %v2360 = vadd.f32 %v2247, %v2359
      %2361 = vmatprep.mubr.bf16.mxu0 %v810
      %2362 = vmatmul.mubr.bf16.gmra.mxu0 %v809
      %v2363 = vpop.f32.mrf.mxu0
      %v2364 = vadd.f32 %v2251, %v2363
      %v2365 = vpop.f32.mrf.mxu0
      %v2366 = vadd.f32 %v2253, %v2365
      %v2367 = vpop.f32.mrf.mxu0
      %v2368 = vadd.f32 %v2255, %v2367
      %v2369 = vpop.f32.mrf.mxu0
      %v2370 = vadd.f32 %v2257, %v2369
      %2371 = vmatprep.mubr.bf16.mxu0 %v817
      %2372 = vmatmul.mubr.bf16.gmra.mxu0 %v816
      %v2373 = vpop.f32.mrf.mxu0
      %v2374 = vadd.f32 %v2261, %v2373
      %v2375 = vpop.f32.mrf.mxu0
      %v2376 = vadd.f32 %v2263, %v2375
      %v2377 = vpop.f32.mrf.mxu0
      %v2378 = vadd.f32 %v2265, %v2377
      %v2379 = vpop.f32.mrf.mxu0
      %v2380 = vadd.f32 %v2267, %v2379
      %2381 = vmatprep.mubr.bf16.mxu0 %v824
      %2382 = vmatmul.mubr.bf16.gmra.mxu0 %v823
      %v2383 = vpop.f32.mrf.mxu0
      %v2384 = vadd.f32 %v2271, %v2383
      %v2385 = vpop.f32.mrf.mxu0
      %v2386 = vadd.f32 %v2273, %v2385
      %v2387 = vpop.f32.mrf.mxu0
      %v2388 = vadd.f32 %v2275, %v2387
      %v2389 = vpop.f32.mrf.mxu0
      %v2390 = vadd.f32 %v2277, %v2389
      %2391 = vmatprep.mubr.bf16.mxu0 %v831
      %2392 = vmatmul.mubr.bf16.gmra.mxu0 %v830
      %v2393 = vpop.f32.mrf.mxu0
      %v2394 = vadd.f32 %v2281, %v2393
      %v2395 = vpop.f32.mrf.mxu0
      %v2396 = vadd.f32 %v2283, %v2395
      %v2397 = vpop.f32.mrf.mxu0
      %v2398 = vadd.f32 %v2285, %v2397
      %v2399 = vpop.f32.mrf.mxu0
      %v2400 = vadd.f32 %v2287, %v2399
      %2401 = vmatprep.mubr.bf16.mxu0 %v838
      %2402 = vmatmul.mubr.bf16.gmra.mxu0 %v837
      %v2403 = vpop.f32.mrf.mxu0
      %v2404 = vadd.f32 %v2291, %v2403
      %v2405 = vpop.f32.mrf.mxu0
      %v2406 = vadd.f32 %v2293, %v2405
      %v2407 = vpop.f32.mrf.mxu0
      %v2408 = vadd.f32 %v2295, %v2407
      %v2409 = vpop.f32.mrf.mxu0
      %v2410 = vadd.f32 %v2297, %v2409
      %2411 = vmatprep.mubr.bf16.mxu0 %v845
      %2412 = vmatmul.mubr.bf16.gmra.mxu0 %v844
      %v2413 = vpop.f32.mrf.mxu0
      %v2414 = vadd.f32 %v2301, %v2413
      %v2415 = vpop.f32.mrf.mxu0
      %v2416 = vadd.f32 %v2303, %v2415
      %v2417 = vpop.f32.mrf.mxu0
      %v2418 = vadd.f32 %v2305, %v2417
      %v2419 = vpop.f32.mrf.mxu0
      %v2420 = vadd.f32 %v2307, %v2419
      %2421 = vdwg.mxu0
      %2422 = vmatprep.subr.bf16.mxu0 %v1877
      %2423 = vmatpush1.bf16.msra.mxu0 %v1876
      %2424 = vmatprep.subr.bf16.mxu0 %v1872
      %2425 = vmatpush1.bf16.msra.mxu0 %v1871
      %2426 = vmatprep.subr.bf16.mxu0 %v1867
      %2427 = vmatpush1.bf16.msra.mxu0 %v1866
      %2428 = vmatprep.subr.bf16.mxu0 %v1862
      %2429 = vmatpush1.bf16.msra.mxu0 %v1861
      %2430 = vmatprep.subr.bf16.mxu0 %v1857
      %2431 = vmatpush1.bf16.msra.mxu0 %v1856
      %2432 = vmatprep.subr.bf16.mxu0 %v1852
      %2433 = vmatpush1.bf16.msra.mxu0 %v1851
      %2434 = vmatprep.subr.bf16.mxu0 %v1847
      %2435 = vmatpush1.bf16.msra.mxu0 %v1846
      %2436 = vmatprep.subr.bf16.mxu0 %v1842
      %2437 = vmatpush1.bf16.msra.mxu0 %v1841
      %2438 = vmatprep.subr.bf16.mxu0 %v1917
      %2439 = vmatpush2.bf16.msra.mxu0 %v1916
      %2440 = vmatprep.subr.bf16.mxu0 %v1912
      %2441 = vmatpush2.bf16.msra.mxu0 %v1911
      %2442 = vmatprep.subr.bf16.mxu0 %v1907
      %2443 = vmatpush2.bf16.msra.mxu0 %v1906
      %2444 = vmatprep.subr.bf16.mxu0 %v1902
      %2445 = vmatpush2.bf16.msra.mxu0 %v1901
      %2446 = vmatprep.subr.bf16.mxu0 %v1897
      %2447 = vmatpush2.bf16.msra.mxu0 %v1896
      %2448 = vmatprep.subr.bf16.mxu0 %v1892
      %2449 = vmatpush2.bf16.msra.mxu0 %v1891
      %2450 = vmatprep.subr.bf16.mxu0 %v1887
      %2451 = vmatpush2.bf16.msra.mxu0 %v1886
      %2452 = vmatprep.subr.bf16.mxu0 %v1882
      %2453 = vmatpush2.bf16.msra.mxu0 %v1881
      %2454 = vmatprep.mubr.bf16.mxu0 %v798
      %2455 = vmatmul.mubr.bf16.gmra.mxu0 %v797
      %v2456 = vpop.f32.mrf.mxu0
      %v2457 = vadd.f32 %v2344, %v2456
      %v2458 = vpop.f32.mrf.mxu0
      %v2459 = vadd.f32 %v2346, %v2458
      %v2460 = vpop.f32.mrf.mxu0
      %v2461 = vadd.f32 %v2348, %v2460
      %v2462 = vpop.f32.mrf.mxu0
      %v2463 = vadd.f32 %v2350, %v2462
      %2464 = vmatprep.mubr.bf16.mxu0 %v805
      %2465 = vmatmul.mubr.bf16.gmra.mxu0 %v804
      %v2466 = vpop.f32.mrf.mxu0
      %v2467 = vadd.f32 %v2354, %v2466
      %v2468 = vpop.f32.mrf.mxu0
      %v2469 = vadd.f32 %v2356, %v2468
      %v2470 = vpop.f32.mrf.mxu0
      %v2471 = vadd.f32 %v2358, %v2470
      %v2472 = vpop.f32.mrf.mxu0
      %v2473 = vadd.f32 %v2360, %v2472
      %2474 = vmatprep.mubr.bf16.mxu0 %v812
      %2475 = vmatmul.mubr.bf16.gmra.mxu0 %v811
      %v2476 = vpop.f32.mrf.mxu0
      %v2477 = vadd.f32 %v2364, %v2476
      %v2478 = vpop.f32.mrf.mxu0
      %v2479 = vadd.f32 %v2366, %v2478
      %v2480 = vpop.f32.mrf.mxu0
      %v2481 = vadd.f32 %v2368, %v2480
      %v2482 = vpop.f32.mrf.mxu0
      %v2483 = vadd.f32 %v2370, %v2482
      %2484 = vmatprep.mubr.bf16.mxu0 %v819
      %2485 = vmatmul.mubr.bf16.gmra.mxu0 %v818
      %v2486 = vpop.f32.mrf.mxu0
      %v2487 = vadd.f32 %v2374, %v2486
      %v2488 = vpop.f32.mrf.mxu0
      %v2489 = vadd.f32 %v2376, %v2488
      %v2490 = vpop.f32.mrf.mxu0
      %v2491 = vadd.f32 %v2378, %v2490
      %v2492 = vpop.f32.mrf.mxu0
      %v2493 = vadd.f32 %v2380, %v2492
      %2494 = vmatprep.mubr.bf16.mxu0 %v826
      %2495 = vmatmul.mubr.bf16.gmra.mxu0 %v825
      %v2496 = vpop.f32.mrf.mxu0
      %v2497 = vadd.f32 %v2384, %v2496
      %v2498 = vpop.f32.mrf.mxu0
      %v2499 = vadd.f32 %v2386, %v2498
      %v2500 = vpop.f32.mrf.mxu0
      %v2501 = vadd.f32 %v2388, %v2500
      %v2502 = vpop.f32.mrf.mxu0
      %v2503 = vadd.f32 %v2390, %v2502
      %2504 = vmatprep.mubr.bf16.mxu0 %v833
      %2505 = vmatmul.mubr.bf16.gmra.mxu0 %v832
      %v2506 = vpop.f32.mrf.mxu0
      %v2507 = vadd.f32 %v2394, %v2506
      %v2508 = vpop.f32.mrf.mxu0
      %v2509 = vadd.f32 %v2396, %v2508
      %v2510 = vpop.f32.mrf.mxu0
      %v2511 = vadd.f32 %v2398, %v2510
      %v2512 = vpop.f32.mrf.mxu0
      %v2513 = vadd.f32 %v2400, %v2512
      %2514 = vmatprep.mubr.bf16.mxu0 %v840
      %2515 = vmatmul.mubr.bf16.gmra.mxu0 %v839
      %v2516 = vpop.f32.mrf.mxu0
      %v2517 = vadd.f32 %v2404, %v2516
      %v2518 = vpop.f32.mrf.mxu0
      %v2519 = vadd.f32 %v2406, %v2518
      %v2520 = vpop.f32.mrf.mxu0
      %v2521 = vadd.f32 %v2408, %v2520
      %v2522 = vpop.f32.mrf.mxu0
      %v2523 = vadd.f32 %v2410, %v2522
      %2524 = vmatprep.mubr.bf16.mxu0 %v847
      %2525 = vmatmul.mubr.bf16.gmra.mxu0 %v846
      %v2526 = vpop.f32.mrf.mxu0
      %v2527 = vadd.f32 %v2414, %v2526
      %v2528 = vpop.f32.mrf.mxu0
      %v2529 = vadd.f32 %v2416, %v2528
      %v2530 = vpop.f32.mrf.mxu0
      %v2531 = vadd.f32 %v2418, %v2530
      %v2532 = vpop.f32.mrf.mxu0
      %v2533 = vadd.f32 %v2420, %v2532
      %2534 = vdwg.mxu0
      %2535 = vmatprep.subr.bf16.mxu0 0
      %2536 = vmatpush1.bf16.msra.mxu0 0
      %2537 = vmatprep.subr.bf16.mxu0 0
      %2538 = vmatpush1.bf16.msra.mxu0 0
      %2539 = vmatprep.subr.bf16.mxu0 0
      %2540 = vmatpush1.bf16.msra.mxu0 0
      %2541 = vmatprep.subr.bf16.mxu0 0
      %2542 = vmatpush1.bf16.msra.mxu0 0
      %2543 = vmatprep.subr.bf16.mxu0 0
      %2544 = vmatpush1.bf16.msra.mxu0 0
      %2545 = vmatprep.subr.bf16.mxu0 0
      %2546 = vmatpush1.bf16.msra.mxu0 0
      %2547 = vmatprep.subr.bf16.mxu0 0
      %2548 = vmatpush1.bf16.msra.mxu0 0
      %2549 = vmatprep.subr.bf16.mxu0 %v1922
      %2550 = vmatpush1.bf16.msra.mxu0 %v1921
      %2551 = vmatprep.subr.bf16.mxu0 0
      %2552 = vmatpush2.bf16.msra.mxu0 0
      %2553 = vmatprep.subr.bf16.mxu0 0
      %2554 = vmatpush2.bf16.msra.mxu0 0
      %2555 = vmatprep.subr.bf16.mxu0 0
      %2556 = vmatpush2.bf16.msra.mxu0 0
      %2557 = vmatprep.subr.bf16.mxu0 0
      %2558 = vmatpush2.bf16.msra.mxu0 0
      %2559 = vmatprep.subr.bf16.mxu0 0
      %2560 = vmatpush2.bf16.msra.mxu0 0
      %2561 = vmatprep.subr.bf16.mxu0 0
      %2562 = vmatpush2.bf16.msra.mxu0 0
      %2563 = vmatprep.subr.bf16.mxu0 0
      %2564 = vmatpush2.bf16.msra.mxu0 0
      %2565 = vmatprep.subr.bf16.mxu0 0
      %2566 = vmatpush2.bf16.msra.mxu0 0
      %2567 = vmatprep.mubr.bf16.mxu0 0
      %2568 = vmatmul.mubr.bf16.gmra.mxu0 %v2173
      %v2569 = vpop.f32.mrf.mxu0
      %v2570 = vadd.f32 %v2457, %v2569
      %v2571 = vpop.f32.mrf.mxu0
      %v2572 = vadd.f32 %v2459, %v2571
      %v2573 = vpop.f32.mrf.mxu0
      %v2574 = vadd.f32 %v2461, %v2573
      %v2575 = vpop.f32.mrf.mxu0
      %v2576 = vadd.f32 %v2463, %v2575
      %2577 = vmatprep.mubr.bf16.mxu0 0
      %2578 = vmatmul.mubr.bf16.gmra.mxu0 %v2176
      %v2579 = vpop.f32.mrf.mxu0
      %v2580 = vadd.f32 %v2467, %v2579
      %v2581 = vpop.f32.mrf.mxu0
      %v2582 = vadd.f32 %v2469, %v2581
      %v2583 = vpop.f32.mrf.mxu0
      %v2584 = vadd.f32 %v2471, %v2583
      %v2585 = vpop.f32.mrf.mxu0
      %v2586 = vadd.f32 %v2473, %v2585
      %2587 = vmatprep.mubr.bf16.mxu0 0
      %2588 = vmatmul.mubr.bf16.gmra.mxu0 %v2179
      %v2589 = vpop.f32.mrf.mxu0
      %v2590 = vadd.f32 %v2477, %v2589
      %v2591 = vpop.f32.mrf.mxu0
      %v2592 = vadd.f32 %v2479, %v2591
      %v2593 = vpop.f32.mrf.mxu0
      %v2594 = vadd.f32 %v2481, %v2593
      %v2595 = vpop.f32.mrf.mxu0
      %v2596 = vadd.f32 %v2483, %v2595
      %2597 = vmatprep.mubr.bf16.mxu0 0
      %2598 = vmatmul.mubr.bf16.gmra.mxu0 %v2182
      %v2599 = vpop.f32.mrf.mxu0
      %v2600 = vadd.f32 %v2487, %v2599
      %v2601 = vpop.f32.mrf.mxu0
      %v2602 = vadd.f32 %v2489, %v2601
      %v2603 = vpop.f32.mrf.mxu0
      %v2604 = vadd.f32 %v2491, %v2603
      %v2605 = vpop.f32.mrf.mxu0
      %v2606 = vadd.f32 %v2493, %v2605
      %2607 = vmatprep.mubr.bf16.mxu0 0
      %2608 = vmatmul.mubr.bf16.gmra.mxu0 %v2185
      %v2609 = vpop.f32.mrf.mxu0
      %v2610 = vadd.f32 %v2497, %v2609
      %v2611 = vpop.f32.mrf.mxu0
      %v2612 = vadd.f32 %v2499, %v2611
      %v2613 = vpop.f32.mrf.mxu0
      %v2614 = vadd.f32 %v2501, %v2613
      %v2615 = vpop.f32.mrf.mxu0
      %v2616 = vadd.f32 %v2503, %v2615
      %2617 = vmatprep.mubr.bf16.mxu0 0
      %2618 = vmatmul.mubr.bf16.gmra.mxu0 %v2188
      %v2619 = vpop.f32.mrf.mxu0
      %v2620 = vadd.f32 %v2507, %v2619
      %v2621 = vpop.f32.mrf.mxu0
      %v2622 = vadd.f32 %v2509, %v2621
      %v2623 = vpop.f32.mrf.mxu0
      %v2624 = vadd.f32 %v2511, %v2623
      %v2625 = vpop.f32.mrf.mxu0
      %v2626 = vadd.f32 %v2513, %v2625
      %2627 = vmatprep.mubr.bf16.mxu0 0
      %2628 = vmatmul.mubr.bf16.gmra.mxu0 %v2191
      %v2629 = vpop.f32.mrf.mxu0
      %v2630 = vadd.f32 %v2517, %v2629
      %v2631 = vpop.f32.mrf.mxu0
      %v2632 = vadd.f32 %v2519, %v2631
      %v2633 = vpop.f32.mrf.mxu0
      %v2634 = vadd.f32 %v2521, %v2633
      %v2635 = vpop.f32.mrf.mxu0
      %v2636 = vadd.f32 %v2523, %v2635
      %2637 = vmatprep.mubr.bf16.mxu0 0
      %2638 = vmatmul.mubr.bf16.gmra.mxu0 %v2194
      %v2639 = vpop.f32.mrf.mxu0
      %v2640 = vadd.f32 %v2527, %v2639
      %v2641 = vpop.f32.mrf.mxu0
      %v2642 = vadd.f32 %v2529, %v2641
      %v2643 = vpop.f32.mrf.mxu0
      %v2644 = vadd.f32 %v2531, %v2643
      %v2645 = vpop.f32.mrf.mxu0
      %v2646 = vadd.f32 %v2533, %v2645
      %2647 = vdwg.mxu0
      %2648 = vmatprep.subr.bf16.mxu0 %v1719
      %2649 = vmatpush1.bf16.msra.mxu0 %v1718
      %2650 = vmatprep.subr.bf16.mxu0 %v1714
      %2651 = vmatpush1.bf16.msra.mxu0 %v1713
      %2652 = vmatprep.subr.bf16.mxu0 %v1709
      %2653 = vmatpush1.bf16.msra.mxu0 %v1708
      %2654 = vmatprep.subr.bf16.mxu0 %v1704
      %2655 = vmatpush1.bf16.msra.mxu0 %v1703
      %2656 = vmatprep.subr.bf16.mxu0 %v1699
      %2657 = vmatpush1.bf16.msra.mxu0 %v1698
      %2658 = vmatprep.subr.bf16.mxu0 %v1694
      %2659 = vmatpush1.bf16.msra.mxu0 %v1693
      %2660 = vmatprep.subr.bf16.mxu0 %v1689
      %2661 = vmatpush1.bf16.msra.mxu0 %v1688
      %2662 = vmatprep.subr.bf16.mxu0 %v1684
      %2663 = vmatpush1.bf16.msra.mxu0 %v1683
      %2664 = vmatprep.subr.bf16.mxu0 %v1759
      %2665 = vmatpush2.bf16.msra.mxu0 %v1758
      %2666 = vmatprep.subr.bf16.mxu0 %v1754
      %2667 = vmatpush2.bf16.msra.mxu0 %v1753
      %2668 = vmatprep.subr.bf16.mxu0 %v1749
      %2669 = vmatpush2.bf16.msra.mxu0 %v1748
      %2670 = vmatprep.subr.bf16.mxu0 %v1744
      %2671 = vmatpush2.bf16.msra.mxu0 %v1743
      %2672 = vmatprep.subr.bf16.mxu0 %v1739
      %2673 = vmatpush2.bf16.msra.mxu0 %v1738
      %2674 = vmatprep.subr.bf16.mxu0 %v1734
      %2675 = vmatpush2.bf16.msra.mxu0 %v1733
      %2676 = vmatprep.subr.bf16.mxu0 %v1729
      %2677 = vmatpush2.bf16.msra.mxu0 %v1728
      %2678 = vmatprep.subr.bf16.mxu0 %v1724
      %2679 = vmatpush2.bf16.msra.mxu0 %v1723
      %2680 = vmatprep.mubr.bf16.mxu0 %v794
      %2681 = vmatmul.mubr.bf16.gmra.mxu0 %v793
      %v2682 = vpop.f32.mrf.mxu0
      %v2683 = vadd.f32 %v603, %v2682
      %v2684 = vpop.f32.mrf.mxu0
      %v2685 = vadd.f32 %v607, %v2684
      %v2686 = vpop.f32.mrf.mxu0
      %v2687 = vadd.f32 %v603, %v2686
      %v2688 = vpop.f32.mrf.mxu0
      %v2689 = vadd.f32 %v607, %v2688
      %2690 = vmatprep.mubr.bf16.mxu0 %v801
      %2691 = vmatmul.mubr.bf16.gmra.mxu0 %v800
      %v2692 = vpop.f32.mrf.mxu0
      %v2693 = vadd.f32 %v603, %v2692
      %v2694 = vpop.f32.mrf.mxu0
      %v2695 = vadd.f32 %v607, %v2694
      %v2696 = vpop.f32.mrf.mxu0
      %v2697 = vadd.f32 %v603, %v2696
      %v2698 = vpop.f32.mrf.mxu0
      %v2699 = vadd.f32 %v607, %v2698
      %2700 = vmatprep.mubr.bf16.mxu0 %v808
      %2701 = vmatmul.mubr.bf16.gmra.mxu0 %v807
      %v2702 = vpop.f32.mrf.mxu0
      %v2703 = vadd.f32 %v603, %v2702
      %v2704 = vpop.f32.mrf.mxu0
      %v2705 = vadd.f32 %v607, %v2704
      %v2706 = vpop.f32.mrf.mxu0
      %v2707 = vadd.f32 %v603, %v2706
      %v2708 = vpop.f32.mrf.mxu0
      %v2709 = vadd.f32 %v607, %v2708
      %2710 = vmatprep.mubr.bf16.mxu0 %v815
      %2711 = vmatmul.mubr.bf16.gmra.mxu0 %v814
      %v2712 = vpop.f32.mrf.mxu0
      %v2713 = vadd.f32 %v603, %v2712
      %v2714 = vpop.f32.mrf.mxu0
      %v2715 = vadd.f32 %v607, %v2714
      %v2716 = vpop.f32.mrf.mxu0
      %v2717 = vadd.f32 %v603, %v2716
      %v2718 = vpop.f32.mrf.mxu0
      %v2719 = vadd.f32 %v607, %v2718
      %2720 = vmatprep.mubr.bf16.mxu0 %v822
      %2721 = vmatmul.mubr.bf16.gmra.mxu0 %v821
      %v2722 = vpop.f32.mrf.mxu0
      %v2723 = vadd.f32 %v603, %v2722
      %v2724 = vpop.f32.mrf.mxu0
      %v2725 = vadd.f32 %v607, %v2724
      %v2726 = vpop.f32.mrf.mxu0
      %v2727 = vadd.f32 %v603, %v2726
      %v2728 = vpop.f32.mrf.mxu0
      %v2729 = vadd.f32 %v607, %v2728
      %2730 = vmatprep.mubr.bf16.mxu0 %v829
      %2731 = vmatmul.mubr.bf16.gmra.mxu0 %v828
      %v2732 = vpop.f32.mrf.mxu0
      %v2733 = vadd.f32 %v603, %v2732
      %v2734 = vpop.f32.mrf.mxu0
      %v2735 = vadd.f32 %v607, %v2734
      %v2736 = vpop.f32.mrf.mxu0
      %v2737 = vadd.f32 %v603, %v2736
      %v2738 = vpop.f32.mrf.mxu0
      %v2739 = vadd.f32 %v607, %v2738
      %2740 = vmatprep.mubr.bf16.mxu0 %v836
      %2741 = vmatmul.mubr.bf16.gmra.mxu0 %v835
      %v2742 = vpop.f32.mrf.mxu0
      %v2743 = vadd.f32 %v603, %v2742
      %v2744 = vpop.f32.mrf.mxu0
      %v2745 = vadd.f32 %v607, %v2744
      %v2746 = vpop.f32.mrf.mxu0
      %v2747 = vadd.f32 %v603, %v2746
      %v2748 = vpop.f32.mrf.mxu0
      %v2749 = vadd.f32 %v607, %v2748
      %2750 = vmatprep.mubr.bf16.mxu0 %v843
      %2751 = vmatmul.mubr.bf16.gmra.mxu0 %v842
      %v2752 = vpop.f32.mrf.mxu0
      %v2753 = vadd.f32 %v603, %v2752
      %v2754 = vpop.f32.mrf.mxu0
      %v2755 = vadd.f32 %v607, %v2754
      %v2756 = vpop.f32.mrf.mxu0
      %v2757 = vadd.f32 %v603, %v2756
      %v2758 = vpop.f32.mrf.mxu0
      %v2759 = vadd.f32 %v607, %v2758
      %2760 = vdwg.mxu0
      %2761 = vmatprep.subr.bf16.mxu0 %v1799
      %2762 = vmatpush1.bf16.msra.mxu0 %v1798
      %2763 = vmatprep.subr.bf16.mxu0 %v1794
      %2764 = vmatpush1.bf16.msra.mxu0 %v1793
      %2765 = vmatprep.subr.bf16.mxu0 %v1789
      %2766 = vmatpush1.bf16.msra.mxu0 %v1788
      %2767 = vmatprep.subr.bf16.mxu0 %v1784
      %2768 = vmatpush1.bf16.msra.mxu0 %v1783
      %2769 = vmatprep.subr.bf16.mxu0 %v1779
      %2770 = vmatpush1.bf16.msra.mxu0 %v1778
      %2771 = vmatprep.subr.bf16.mxu0 %v1774
      %2772 = vmatpush1.bf16.msra.mxu0 %v1773
      %2773 = vmatprep.subr.bf16.mxu0 %v1769
      %2774 = vmatpush1.bf16.msra.mxu0 %v1768
      %2775 = vmatprep.subr.bf16.mxu0 %v1764
      %2776 = vmatpush1.bf16.msra.mxu0 %v1763
      %2777 = vmatprep.subr.bf16.mxu0 %v1839
      %2778 = vmatpush2.bf16.msra.mxu0 %v1838
      %2779 = vmatprep.subr.bf16.mxu0 %v1834
      %2780 = vmatpush2.bf16.msra.mxu0 %v1833
      %2781 = vmatprep.subr.bf16.mxu0 %v1829
      %2782 = vmatpush2.bf16.msra.mxu0 %v1828
      %2783 = vmatprep.subr.bf16.mxu0 %v1824
      %2784 = vmatpush2.bf16.msra.mxu0 %v1823
      %2785 = vmatprep.subr.bf16.mxu0 %v1819
      %2786 = vmatpush2.bf16.msra.mxu0 %v1818
      %2787 = vmatprep.subr.bf16.mxu0 %v1814
      %2788 = vmatpush2.bf16.msra.mxu0 %v1813
      %2789 = vmatprep.subr.bf16.mxu0 %v1809
      %2790 = vmatpush2.bf16.msra.mxu0 %v1808
      %2791 = vmatprep.subr.bf16.mxu0 %v1804
      %2792 = vmatpush2.bf16.msra.mxu0 %v1803
      %2793 = vmatprep.mubr.bf16.mxu0 %v796
      %2794 = vmatmul.mubr.bf16.gmra.mxu0 %v795
      %v2795 = vpop.f32.mrf.mxu0
      %v2796 = vadd.f32 %v2683, %v2795
      %v2797 = vpop.f32.mrf.mxu0
      %v2798 = vadd.f32 %v2685, %v2797
      %v2799 = vpop.f32.mrf.mxu0
      %v2800 = vadd.f32 %v2687, %v2799
      %v2801 = vpop.f32.mrf.mxu0
      %v2802 = vadd.f32 %v2689, %v2801
      %2803 = vmatprep.mubr.bf16.mxu0 %v803
      %2804 = vmatmul.mubr.bf16.gmra.mxu0 %v802
      %v2805 = vpop.f32.mrf.mxu0
      %v2806 = vadd.f32 %v2693, %v2805
      %v2807 = vpop.f32.mrf.mxu0
      %v2808 = vadd.f32 %v2695, %v2807
      %v2809 = vpop.f32.mrf.mxu0
      %v2810 = vadd.f32 %v2697, %v2809
      %v2811 = vpop.f32.mrf.mxu0
      %v2812 = vadd.f32 %v2699, %v2811
      %2813 = vmatprep.mubr.bf16.mxu0 %v810
      %2814 = vmatmul.mubr.bf16.gmra.mxu0 %v809
      %v2815 = vpop.f32.mrf.mxu0
      %v2816 = vadd.f32 %v2703, %v2815
      %v2817 = vpop.f32.mrf.mxu0
      %v2818 = vadd.f32 %v2705, %v2817
      %v2819 = vpop.f32.mrf.mxu0
      %v2820 = vadd.f32 %v2707, %v2819
      %v2821 = vpop.f32.mrf.mxu0
      %v2822 = vadd.f32 %v2709, %v2821
      %2823 = vmatprep.mubr.bf16.mxu0 %v817
      %2824 = vmatmul.mubr.bf16.gmra.mxu0 %v816
      %v2825 = vpop.f32.mrf.mxu0
      %v2826 = vadd.f32 %v2713, %v2825
      %v2827 = vpop.f32.mrf.mxu0
      %v2828 = vadd.f32 %v2715, %v2827
      %v2829 = vpop.f32.mrf.mxu0
      %v2830 = vadd.f32 %v2717, %v2829
      %v2831 = vpop.f32.mrf.mxu0
      %v2832 = vadd.f32 %v2719, %v2831
      %2833 = vmatprep.mubr.bf16.mxu0 %v824
      %2834 = vmatmul.mubr.bf16.gmra.mxu0 %v823
      %v2835 = vpop.f32.mrf.mxu0
      %v2836 = vadd.f32 %v2723, %v2835
      %v2837 = vpop.f32.mrf.mxu0
      %v2838 = vadd.f32 %v2725, %v2837
      %v2839 = vpop.f32.mrf.mxu0
      %v2840 = vadd.f32 %v2727, %v2839
      %v2841 = vpop.f32.mrf.mxu0
      %v2842 = vadd.f32 %v2729, %v2841
      %2843 = vmatprep.mubr.bf16.mxu0 %v831
      %2844 = vmatmul.mubr.bf16.gmra.mxu0 %v830
      %v2845 = vpop.f32.mrf.mxu0
      %v2846 = vadd.f32 %v2733, %v2845
      %v2847 = vpop.f32.mrf.mxu0
      %v2848 = vadd.f32 %v2735, %v2847
      %v2849 = vpop.f32.mrf.mxu0
      %v2850 = vadd.f32 %v2737, %v2849
      %v2851 = vpop.f32.mrf.mxu0
      %v2852 = vadd.f32 %v2739, %v2851
      %2853 = vmatprep.mubr.bf16.mxu0 %v838
      %2854 = vmatmul.mubr.bf16.gmra.mxu0 %v837
      %v2855 = vpop.f32.mrf.mxu0
      %v2856 = vadd.f32 %v2743, %v2855
      %v2857 = vpop.f32.mrf.mxu0
      %v2858 = vadd.f32 %v2745, %v2857
      %v2859 = vpop.f32.mrf.mxu0
      %v2860 = vadd.f32 %v2747, %v2859
      %v2861 = vpop.f32.mrf.mxu0
      %v2862 = vadd.f32 %v2749, %v2861
      %2863 = vmatprep.mubr.bf16.mxu0 %v845
      %2864 = vmatmul.mubr.bf16.gmra.mxu0 %v844
      %v2865 = vpop.f32.mrf.mxu0
      %v2866 = vadd.f32 %v2753, %v2865
      %v2867 = vpop.f32.mrf.mxu0
      %v2868 = vadd.f32 %v2755, %v2867
      %v2869 = vpop.f32.mrf.mxu0
      %v2870 = vadd.f32 %v2757, %v2869
      %v2871 = vpop.f32.mrf.mxu0
      %v2872 = vadd.f32 %v2759, %v2871
      %2873 = vdwg.mxu0
      %2874 = vmatprep.subr.bf16.mxu0 %v1879
      %2875 = vmatpush1.bf16.msra.mxu0 %v1878
      %2876 = vmatprep.subr.bf16.mxu0 %v1874
      %2877 = vmatpush1.bf16.msra.mxu0 %v1873
      %2878 = vmatprep.subr.bf16.mxu0 %v1869
      %2879 = vmatpush1.bf16.msra.mxu0 %v1868
      %2880 = vmatprep.subr.bf16.mxu0 %v1864
      %2881 = vmatpush1.bf16.msra.mxu0 %v1863
      %2882 = vmatprep.subr.bf16.mxu0 %v1859
      %2883 = vmatpush1.bf16.msra.mxu0 %v1858
      %2884 = vmatprep.subr.bf16.mxu0 %v1854
      %2885 = vmatpush1.bf16.msra.mxu0 %v1853
      %2886 = vmatprep.subr.bf16.mxu0 %v1849
      %2887 = vmatpush1.bf16.msra.mxu0 %v1848
      %2888 = vmatprep.subr.bf16.mxu0 %v1844
      %2889 = vmatpush1.bf16.msra.mxu0 %v1843
      %2890 = vmatprep.subr.bf16.mxu0 %v1919
      %2891 = vmatpush2.bf16.msra.mxu0 %v1918
      %2892 = vmatprep.subr.bf16.mxu0 %v1914
      %2893 = vmatpush2.bf16.msra.mxu0 %v1913
      %2894 = vmatprep.subr.bf16.mxu0 %v1909
      %2895 = vmatpush2.bf16.msra.mxu0 %v1908
      %2896 = vmatprep.subr.bf16.mxu0 %v1904
      %2897 = vmatpush2.bf16.msra.mxu0 %v1903
      %2898 = vmatprep.subr.bf16.mxu0 %v1899
      %2899 = vmatpush2.bf16.msra.mxu0 %v1898
      %2900 = vmatprep.subr.bf16.mxu0 %v1894
      %2901 = vmatpush2.bf16.msra.mxu0 %v1893
      %2902 = vmatprep.subr.bf16.mxu0 %v1889
      %2903 = vmatpush2.bf16.msra.mxu0 %v1888
      %2904 = vmatprep.subr.bf16.mxu0 %v1884
      %2905 = vmatpush2.bf16.msra.mxu0 %v1883
      %2906 = vmatprep.mubr.bf16.mxu0 %v798
      %2907 = vmatmul.mubr.bf16.gmra.mxu0 %v797
      %v2908 = vpop.f32.mrf.mxu0
      %v2909 = vadd.f32 %v2796, %v2908
      %v2910 = vpop.f32.mrf.mxu0
      %v2911 = vadd.f32 %v2798, %v2910
      %v2912 = vpop.f32.mrf.mxu0
      %v2913 = vadd.f32 %v2800, %v2912
      %v2914 = vpop.f32.mrf.mxu0
      %v2915 = vadd.f32 %v2802, %v2914
      %2916 = vmatprep.mubr.bf16.mxu0 %v805
      %2917 = vmatmul.mubr.bf16.gmra.mxu0 %v804
      %v2918 = vpop.f32.mrf.mxu0
      %v2919 = vadd.f32 %v2806, %v2918
      %v2920 = vpop.f32.mrf.mxu0
      %v2921 = vadd.f32 %v2808, %v2920
      %v2922 = vpop.f32.mrf.mxu0
      %v2923 = vadd.f32 %v2810, %v2922
      %v2924 = vpop.f32.mrf.mxu0
      %v2925 = vadd.f32 %v2812, %v2924
      %2926 = vmatprep.mubr.bf16.mxu0 %v812
      %2927 = vmatmul.mubr.bf16.gmra.mxu0 %v811
      %v2928 = vpop.f32.mrf.mxu0
      %v2929 = vadd.f32 %v2816, %v2928
      %v2930 = vpop.f32.mrf.mxu0
      %v2931 = vadd.f32 %v2818, %v2930
      %v2932 = vpop.f32.mrf.mxu0
      %v2933 = vadd.f32 %v2820, %v2932
      %v2934 = vpop.f32.mrf.mxu0
      %v2935 = vadd.f32 %v2822, %v2934
      %2936 = vmatprep.mubr.bf16.mxu0 %v819
      %2937 = vmatmul.mubr.bf16.gmra.mxu0 %v818
      %v2938 = vpop.f32.mrf.mxu0
      %v2939 = vadd.f32 %v2826, %v2938
      %v2940 = vpop.f32.mrf.mxu0
      %v2941 = vadd.f32 %v2828, %v2940
      %v2942 = vpop.f32.mrf.mxu0
      %v2943 = vadd.f32 %v2830, %v2942
      %v2944 = vpop.f32.mrf.mxu0
      %v2945 = vadd.f32 %v2832, %v2944
      %2946 = vmatprep.mubr.bf16.mxu0 %v826
      %2947 = vmatmul.mubr.bf16.gmra.mxu0 %v825
      %v2948 = vpop.f32.mrf.mxu0
      %v2949 = vadd.f32 %v2836, %v2948
      %v2950 = vpop.f32.mrf.mxu0
      %v2951 = vadd.f32 %v2838, %v2950
      %v2952 = vpop.f32.mrf.mxu0
      %v2953 = vadd.f32 %v2840, %v2952
      %v2954 = vpop.f32.mrf.mxu0
      %v2955 = vadd.f32 %v2842, %v2954
      %2956 = vmatprep.mubr.bf16.mxu0 %v833
      %2957 = vmatmul.mubr.bf16.gmra.mxu0 %v832
      %v2958 = vpop.f32.mrf.mxu0
      %v2959 = vadd.f32 %v2846, %v2958
      %v2960 = vpop.f32.mrf.mxu0
      %v2961 = vadd.f32 %v2848, %v2960
      %v2962 = vpop.f32.mrf.mxu0
      %v2963 = vadd.f32 %v2850, %v2962
      %v2964 = vpop.f32.mrf.mxu0
      %v2965 = vadd.f32 %v2852, %v2964
      %2966 = vmatprep.mubr.bf16.mxu0 %v840
      %2967 = vmatmul.mubr.bf16.gmra.mxu0 %v839
      %v2968 = vpop.f32.mrf.mxu0
      %v2969 = vadd.f32 %v2856, %v2968
      %v2970 = vpop.f32.mrf.mxu0
      %v2971 = vadd.f32 %v2858, %v2970
      %v2972 = vpop.f32.mrf.mxu0
      %v2973 = vadd.f32 %v2860, %v2972
      %v2974 = vpop.f32.mrf.mxu0
      %v2975 = vadd.f32 %v2862, %v2974
      %2976 = vmatprep.mubr.bf16.mxu0 %v847
      %2977 = vmatmul.mubr.bf16.gmra.mxu0 %v846
      %v2978 = vpop.f32.mrf.mxu0
      %v2979 = vadd.f32 %v2866, %v2978
      %v2980 = vpop.f32.mrf.mxu0
      %v2981 = vadd.f32 %v2868, %v2980
      %v2982 = vpop.f32.mrf.mxu0
      %v2983 = vadd.f32 %v2870, %v2982
      %v2984 = vpop.f32.mrf.mxu0
      %v2985 = vadd.f32 %v2872, %v2984
      %2986 = vdwg.mxu0
      %2987 = vmatprep.subr.bf16.mxu0 0
      %2988 = vmatpush1.bf16.msra.mxu0 0
      %2989 = vmatprep.subr.bf16.mxu0 0
      %2990 = vmatpush1.bf16.msra.mxu0 0
      %2991 = vmatprep.subr.bf16.mxu0 0
      %2992 = vmatpush1.bf16.msra.mxu0 0
      %2993 = vmatprep.subr.bf16.mxu0 0
      %2994 = vmatpush1.bf16.msra.mxu0 0
      %2995 = vmatprep.subr.bf16.mxu0 0
      %2996 = vmatpush1.bf16.msra.mxu0 0
      %2997 = vmatprep.subr.bf16.mxu0 0
      %2998 = vmatpush1.bf16.msra.mxu0 0
      %2999 = vmatprep.subr.bf16.mxu0 0
      %3000 = vmatpush1.bf16.msra.mxu0 0
      %3001 = vmatprep.subr.bf16.mxu0 %v1924
      %3002 = vmatpush1.bf16.msra.mxu0 %v1923
      %3003 = vmatprep.subr.bf16.mxu0 0
      %3004 = vmatpush2.bf16.msra.mxu0 0
      %3005 = vmatprep.subr.bf16.mxu0 0
      %3006 = vmatpush2.bf16.msra.mxu0 0
      %3007 = vmatprep.subr.bf16.mxu0 0
      %3008 = vmatpush2.bf16.msra.mxu0 0
      %3009 = vmatprep.subr.bf16.mxu0 0
      %3010 = vmatpush2.bf16.msra.mxu0 0
      %3011 = vmatprep.subr.bf16.mxu0 0
      %3012 = vmatpush2.bf16.msra.mxu0 0
      %3013 = vmatprep.subr.bf16.mxu0 0
      %3014 = vmatpush2.bf16.msra.mxu0 0
      %3015 = vmatprep.subr.bf16.mxu0 0
      %3016 = vmatpush2.bf16.msra.mxu0 0
      %3017 = vmatprep.subr.bf16.mxu0 0
      %3018 = vmatpush2.bf16.msra.mxu0 0
      %3019 = vmatprep.mubr.bf16.mxu0 0
      %3020 = vmatmul.mubr.bf16.gmra.mxu0 %v2173
      %v3021 = vpop.f32.mrf.mxu0
      %v3022 = vadd.f32 %v2909, %v3021
      %v3023 = vpop.f32.mrf.mxu0
      %v3024 = vadd.f32 %v2911, %v3023
      %v3025 = vpop.f32.mrf.mxu0
      %v3026 = vadd.f32 %v2913, %v3025
      %v3027 = vpop.f32.mrf.mxu0
      %v3028 = vadd.f32 %v2915, %v3027
      %3029 = vmatprep.mubr.bf16.mxu0 0
      %3030 = vmatmul.mubr.bf16.gmra.mxu0 %v2176
      %v3031 = vpop.f32.mrf.mxu0
      %v3032 = vadd.f32 %v2919, %v3031
      %v3033 = vpop.f32.mrf.mxu0
      %v3034 = vadd.f32 %v2921, %v3033
      %v3035 = vpop.f32.mrf.mxu0
      %v3036 = vadd.f32 %v2923, %v3035
      %v3037 = vpop.f32.mrf.mxu0
      %v3038 = vadd.f32 %v2925, %v3037
      %3039 = vmatprep.mubr.bf16.mxu0 0
      %3040 = vmatmul.mubr.bf16.gmra.mxu0 %v2179
      %v3041 = vpop.f32.mrf.mxu0
      %v3042 = vadd.f32 %v2929, %v3041
      %v3043 = vpop.f32.mrf.mxu0
      %v3044 = vadd.f32 %v2931, %v3043
      %v3045 = vpop.f32.mrf.mxu0
      %v3046 = vadd.f32 %v2933, %v3045
      %v3047 = vpop.f32.mrf.mxu0
      %v3048 = vadd.f32 %v2935, %v3047
      %3049 = vmatprep.mubr.bf16.mxu0 0
      %3050 = vmatmul.mubr.bf16.gmra.mxu0 %v2182
      %v3051 = vpop.f32.mrf.mxu0
      %v3052 = vadd.f32 %v2939, %v3051
      %v3053 = vpop.f32.mrf.mxu0
      %v3054 = vadd.f32 %v2941, %v3053
      %v3055 = vpop.f32.mrf.mxu0
      %v3056 = vadd.f32 %v2943, %v3055
      %v3057 = vpop.f32.mrf.mxu0
      %v3058 = vadd.f32 %v2945, %v3057
      %3059 = vmatprep.mubr.bf16.mxu0 0
      %3060 = vmatmul.mubr.bf16.gmra.mxu0 %v2185
      %v3061 = vpop.f32.mrf.mxu0
      %v3062 = vadd.f32 %v2949, %v3061
      %v3063 = vpop.f32.mrf.mxu0
      %v3064 = vadd.f32 %v2951, %v3063
      %v3065 = vpop.f32.mrf.mxu0
      %v3066 = vadd.f32 %v2953, %v3065
      %v3067 = vpop.f32.mrf.mxu0
      %v3068 = vadd.f32 %v2955, %v3067
      %3069 = vmatprep.mubr.bf16.mxu0 0
      %3070 = vmatmul.mubr.bf16.gmra.mxu0 %v2188
      %v3071 = vpop.f32.mrf.mxu0
      %v3072 = vadd.f32 %v2959, %v3071
      %v3073 = vpop.f32.mrf.mxu0
      %v3074 = vadd.f32 %v2961, %v3073
      %v3075 = vpop.f32.mrf.mxu0
      %v3076 = vadd.f32 %v2963, %v3075
      %v3077 = vpop.f32.mrf.mxu0
      %v3078 = vadd.f32 %v2965, %v3077
      %3079 = vmatprep.mubr.bf16.mxu0 0
      %3080 = vmatmul.mubr.bf16.gmra.mxu0 %v2191
      %v3081 = vpop.f32.mrf.mxu0
      %v3082 = vadd.f32 %v2969, %v3081
      %v3083 = vpop.f32.mrf.mxu0
      %v3084 = vadd.f32 %v2971, %v3083
      %v3085 = vpop.f32.mrf.mxu0
      %v3086 = vadd.f32 %v2973, %v3085
      %v3087 = vpop.f32.mrf.mxu0
      %v3088 = vadd.f32 %v2975, %v3087
      %3089 = vmatprep.mubr.bf16.mxu0 0
      %3090 = vmatmul.mubr.bf16.gmra.mxu0 %v2194
      %v3091 = vpop.f32.mrf.mxu0
      %v3092 = vadd.f32 %v2979, %v3091
      %v3093 = vpop.f32.mrf.mxu0
      %v3094 = vadd.f32 %v2981, %v3093
      %v3095 = vpop.f32.mrf.mxu0
      %v3096 = vadd.f32 %v2983, %v3095
      %v3097 = vpop.f32.mrf.mxu0
      %v3098 = vadd.f32 %v2985, %v3097
      %3099 = vdwg.mxu0
      %3100 = vmatprep.subr.bf16.mxu0 0
      %3101 = vmatpush1.bf16.msra.mxu0 %v1720
      %3102 = vmatprep.subr.bf16.mxu0 0
      %3103 = vmatpush1.bf16.msra.mxu0 %v1715
      %3104 = vmatprep.subr.bf16.mxu0 0
      %3105 = vmatpush1.bf16.msra.mxu0 %v1710
      %3106 = vmatprep.subr.bf16.mxu0 0
      %3107 = vmatpush1.bf16.msra.mxu0 %v1705
      %3108 = vmatprep.subr.bf16.mxu0 0
      %3109 = vmatpush1.bf16.msra.mxu0 %v1700
      %3110 = vmatprep.subr.bf16.mxu0 0
      %3111 = vmatpush1.bf16.msra.mxu0 %v1695
      %3112 = vmatprep.subr.bf16.mxu0 0
      %3113 = vmatpush1.bf16.msra.mxu0 %v1690
      %3114 = vmatprep.subr.bf16.mxu0 0
      %3115 = vmatpush1.bf16.msra.mxu0 %v1685
      %3116 = vmatprep.subr.bf16.mxu0 0
      %3117 = vmatpush2.bf16.msra.mxu0 %v1760
      %3118 = vmatprep.subr.bf16.mxu0 0
      %3119 = vmatpush2.bf16.msra.mxu0 %v1755
      %3120 = vmatprep.subr.bf16.mxu0 0
      %3121 = vmatpush2.bf16.msra.mxu0 %v1750
      %3122 = vmatprep.subr.bf16.mxu0 0
      %3123 = vmatpush2.bf16.msra.mxu0 %v1745
      %3124 = vmatprep.subr.bf16.mxu0 0
      %3125 = vmatpush2.bf16.msra.mxu0 %v1740
      %3126 = vmatprep.subr.bf16.mxu0 0
      %3127 = vmatpush2.bf16.msra.mxu0 %v1735
      %3128 = vmatprep.subr.bf16.mxu0 0
      %3129 = vmatpush2.bf16.msra.mxu0 %v1730
      %3130 = vmatprep.subr.bf16.mxu0 0
      %3131 = vmatpush2.bf16.msra.mxu0 %v1725
      %3132 = vmatprep.mubr.bf16.mxu0 %v794
      %3133 = vmatmul.mubr.bf16.gmra.mxu0 %v793
      %v3134 = vpop.f32.mrf.mxu0
      %v3135 = vadd.f32 %v611, %v3134
      %v3136 = vpop.f32.mrf.mxu0
      %v3137 = vpop.f32.mrf.mxu0
      %v3138 = vadd.f32 %v611, %v3137
      %v3139 = vpop.f32.mrf.mxu0
      %3140 = vmatprep.mubr.bf16.mxu0 %v801
      %3141 = vmatmul.mubr.bf16.gmra.mxu0 %v800
      %v3142 = vpop.f32.mrf.mxu0
      %v3143 = vadd.f32 %v611, %v3142
      %v3144 = vpop.f32.mrf.mxu0
      %v3145 = vpop.f32.mrf.mxu0
      %v3146 = vadd.f32 %v611, %v3145
      %v3147 = vpop.f32.mrf.mxu0
      %3148 = vmatprep.mubr.bf16.mxu0 %v808
      %3149 = vmatmul.mubr.bf16.gmra.mxu0 %v807
      %v3150 = vpop.f32.mrf.mxu0
      %v3151 = vadd.f32 %v611, %v3150
      %v3152 = vpop.f32.mrf.mxu0
      %v3153 = vpop.f32.mrf.mxu0
      %v3154 = vadd.f32 %v611, %v3153
      %v3155 = vpop.f32.mrf.mxu0
      %3156 = vmatprep.mubr.bf16.mxu0 %v815
      %3157 = vmatmul.mubr.bf16.gmra.mxu0 %v814
      %v3158 = vpop.f32.mrf.mxu0
      %v3159 = vadd.f32 %v611, %v3158
      %v3160 = vpop.f32.mrf.mxu0
      %v3161 = vpop.f32.mrf.mxu0
      %v3162 = vadd.f32 %v611, %v3161
      %v3163 = vpop.f32.mrf.mxu0
      %3164 = vmatprep.mubr.bf16.mxu0 %v822
      %3165 = vmatmul.mubr.bf16.gmra.mxu0 %v821
      %v3166 = vpop.f32.mrf.mxu0
      %v3167 = vadd.f32 %v611, %v3166
      %v3168 = vpop.f32.mrf.mxu0
      %v3169 = vpop.f32.mrf.mxu0
      %v3170 = vadd.f32 %v611, %v3169
      %v3171 = vpop.f32.mrf.mxu0
      %3172 = vmatprep.mubr.bf16.mxu0 %v829
      %3173 = vmatmul.mubr.bf16.gmra.mxu0 %v828
      %v3174 = vpop.f32.mrf.mxu0
      %v3175 = vadd.f32 %v611, %v3174
      %v3176 = vpop.f32.mrf.mxu0
      %v3177 = vpop.f32.mrf.mxu0
      %v3178 = vadd.f32 %v611, %v3177
      %v3179 = vpop.f32.mrf.mxu0
      %3180 = vmatprep.mubr.bf16.mxu0 %v836
      %3181 = vmatmul.mubr.bf16.gmra.mxu0 %v835
      %v3182 = vpop.f32.mrf.mxu0
      %v3183 = vadd.f32 %v611, %v3182
      %v3184 = vpop.f32.mrf.mxu0
      %v3185 = vpop.f32.mrf.mxu0
      %v3186 = vadd.f32 %v611, %v3185
      %v3187 = vpop.f32.mrf.mxu0
      %3188 = vmatprep.mubr.bf16.mxu0 %v843
      %3189 = vmatmul.mubr.bf16.gmra.mxu0 %v842
      %v3190 = vpop.f32.mrf.mxu0
      %v3191 = vadd.f32 %v611, %v3190
      %v3192 = vpop.f32.mrf.mxu0
      %v3193 = vpop.f32.mrf.mxu0
      %v3194 = vadd.f32 %v611, %v3193
      %v3195 = vpop.f32.mrf.mxu0
      %3196 = vdwg.mxu0
      %3197 = vmatprep.subr.bf16.mxu0 0
      %3198 = vmatpush1.bf16.msra.mxu0 %v1800
      %3199 = vmatprep.subr.bf16.mxu0 0
      %3200 = vmatpush1.bf16.msra.mxu0 %v1795
      %3201 = vmatprep.subr.bf16.mxu0 0
      %3202 = vmatpush1.bf16.msra.mxu0 %v1790
      %3203 = vmatprep.subr.bf16.mxu0 0
      %3204 = vmatpush1.bf16.msra.mxu0 %v1785
      %3205 = vmatprep.subr.bf16.mxu0 0
      %3206 = vmatpush1.bf16.msra.mxu0 %v1780
      %3207 = vmatprep.subr.bf16.mxu0 0
      %3208 = vmatpush1.bf16.msra.mxu0 %v1775
      %3209 = vmatprep.subr.bf16.mxu0 0
      %3210 = vmatpush1.bf16.msra.mxu0 %v1770
      %3211 = vmatprep.subr.bf16.mxu0 0
      %3212 = vmatpush1.bf16.msra.mxu0 %v1765
      %3213 = vmatprep.subr.bf16.mxu0 0
      %3214 = vmatpush2.bf16.msra.mxu0 %v1840
      %3215 = vmatprep.subr.bf16.mxu0 0
      %3216 = vmatpush2.bf16.msra.mxu0 %v1835
      %3217 = vmatprep.subr.bf16.mxu0 0
      %3218 = vmatpush2.bf16.msra.mxu0 %v1830
      %3219 = vmatprep.subr.bf16.mxu0 0
      %3220 = vmatpush2.bf16.msra.mxu0 %v1825
      %3221 = vmatprep.subr.bf16.mxu0 0
      %3222 = vmatpush2.bf16.msra.mxu0 %v1820
      %3223 = vmatprep.subr.bf16.mxu0 0
      %3224 = vmatpush2.bf16.msra.mxu0 %v1815
      %3225 = vmatprep.subr.bf16.mxu0 0
      %3226 = vmatpush2.bf16.msra.mxu0 %v1810
      %3227 = vmatprep.subr.bf16.mxu0 0
      %3228 = vmatpush2.bf16.msra.mxu0 %v1805
      %3229 = vmatprep.mubr.bf16.mxu0 %v796
      %3230 = vmatmul.mubr.bf16.gmra.mxu0 %v795
      %v3231 = vpop.f32.mrf.mxu0
      %v3232 = vadd.f32 %v3135, %v3231
      %v3233 = vpop.f32.mrf.mxu0
      %v3234 = vpop.f32.mrf.mxu0
      %v3235 = vadd.f32 %v3138, %v3234
      %v3236 = vpop.f32.mrf.mxu0
      %3237 = vmatprep.mubr.bf16.mxu0 %v803
      %3238 = vmatmul.mubr.bf16.gmra.mxu0 %v802
      %v3239 = vpop.f32.mrf.mxu0
      %v3240 = vadd.f32 %v3143, %v3239
      %v3241 = vpop.f32.mrf.mxu0
      %v3242 = vpop.f32.mrf.mxu0
      %v3243 = vadd.f32 %v3146, %v3242
      %v3244 = vpop.f32.mrf.mxu0
      %3245 = vmatprep.mubr.bf16.mxu0 %v810
      %3246 = vmatmul.mubr.bf16.gmra.mxu0 %v809
      %v3247 = vpop.f32.mrf.mxu0
      %v3248 = vadd.f32 %v3151, %v3247
      %v3249 = vpop.f32.mrf.mxu0
      %v3250 = vpop.f32.mrf.mxu0
      %v3251 = vadd.f32 %v3154, %v3250
      %v3252 = vpop.f32.mrf.mxu0
      %3253 = vmatprep.mubr.bf16.mxu0 %v817
      %3254 = vmatmul.mubr.bf16.gmra.mxu0 %v816
      %v3255 = vpop.f32.mrf.mxu0
      %v3256 = vadd.f32 %v3159, %v3255
      %v3257 = vpop.f32.mrf.mxu0
      %v3258 = vpop.f32.mrf.mxu0
      %v3259 = vadd.f32 %v3162, %v3258
      %v3260 = vpop.f32.mrf.mxu0
      %3261 = vmatprep.mubr.bf16.mxu0 %v824
      %3262 = vmatmul.mubr.bf16.gmra.mxu0 %v823
      %v3263 = vpop.f32.mrf.mxu0
      %v3264 = vadd.f32 %v3167, %v3263
      %v3265 = vpop.f32.mrf.mxu0
      %v3266 = vpop.f32.mrf.mxu0
      %v3267 = vadd.f32 %v3170, %v3266
      %v3268 = vpop.f32.mrf.mxu0
      %3269 = vmatprep.mubr.bf16.mxu0 %v831
      %3270 = vmatmul.mubr.bf16.gmra.mxu0 %v830
      %v3271 = vpop.f32.mrf.mxu0
      %v3272 = vadd.f32 %v3175, %v3271
      %v3273 = vpop.f32.mrf.mxu0
      %v3274 = vpop.f32.mrf.mxu0
      %v3275 = vadd.f32 %v3178, %v3274
      %v3276 = vpop.f32.mrf.mxu0
      %3277 = vmatprep.mubr.bf16.mxu0 %v838
      %3278 = vmatmul.mubr.bf16.gmra.mxu0 %v837
      %v3279 = vpop.f32.mrf.mxu0
      %v3280 = vadd.f32 %v3183, %v3279
      %v3281 = vpop.f32.mrf.mxu0
      %v3282 = vpop.f32.mrf.mxu0
      %v3283 = vadd.f32 %v3186, %v3282
      %v3284 = vpop.f32.mrf.mxu0
      %3285 = vmatprep.mubr.bf16.mxu0 %v845
      %3286 = vmatmul.mubr.bf16.gmra.mxu0 %v844
      %v3287 = vpop.f32.mrf.mxu0
      %v3288 = vadd.f32 %v3191, %v3287
      %v3289 = vpop.f32.mrf.mxu0
      %v3290 = vpop.f32.mrf.mxu0
      %v3291 = vadd.f32 %v3194, %v3290
      %v3292 = vpop.f32.mrf.mxu0
      %3293 = vdwg.mxu0
      %3294 = vmatprep.subr.bf16.mxu0 0
      %3295 = vmatpush1.bf16.msra.mxu0 %v1880
      %3296 = vmatprep.subr.bf16.mxu0 0
      %3297 = vmatpush1.bf16.msra.mxu0 %v1875
      %3298 = vmatprep.subr.bf16.mxu0 0
      %3299 = vmatpush1.bf16.msra.mxu0 %v1870
      %3300 = vmatprep.subr.bf16.mxu0 0
      %3301 = vmatpush1.bf16.msra.mxu0 %v1865
      %3302 = vmatprep.subr.bf16.mxu0 0
      %3303 = vmatpush1.bf16.msra.mxu0 %v1860
      %3304 = vmatprep.subr.bf16.mxu0 0
      %3305 = vmatpush1.bf16.msra.mxu0 %v1855
      %3306 = vmatprep.subr.bf16.mxu0 0
      %3307 = vmatpush1.bf16.msra.mxu0 %v1850
      %3308 = vmatprep.subr.bf16.mxu0 0
      %3309 = vmatpush1.bf16.msra.mxu0 %v1845
      %3310 = vmatprep.subr.bf16.mxu0 0
      %3311 = vmatpush2.bf16.msra.mxu0 %v1920
      %3312 = vmatprep.subr.bf16.mxu0 0
      %3313 = vmatpush2.bf16.msra.mxu0 %v1915
      %3314 = vmatprep.subr.bf16.mxu0 0
      %3315 = vmatpush2.bf16.msra.mxu0 %v1910
      %3316 = vmatprep.subr.bf16.mxu0 0
      %3317 = vmatpush2.bf16.msra.mxu0 %v1905
      %3318 = vmatprep.subr.bf16.mxu0 0
      %3319 = vmatpush2.bf16.msra.mxu0 %v1900
      %3320 = vmatprep.subr.bf16.mxu0 0
      %3321 = vmatpush2.bf16.msra.mxu0 %v1895
      %3322 = vmatprep.subr.bf16.mxu0 0
      %3323 = vmatpush2.bf16.msra.mxu0 %v1890
      %3324 = vmatprep.subr.bf16.mxu0 0
      %3325 = vmatpush2.bf16.msra.mxu0 %v1885
      %3326 = vmatprep.mubr.bf16.mxu0 %v798
      %3327 = vmatmul.mubr.bf16.gmra.mxu0 %v797
      %v3328 = vpop.f32.mrf.mxu0
      %v3329 = vadd.f32 %v3232, %v3328
      %v3330 = vpop.f32.mrf.mxu0
      %v3331 = vpop.f32.mrf.mxu0
      %v3332 = vadd.f32 %v3235, %v3331
      %v3333 = vpop.f32.mrf.mxu0
      %3334 = vmatprep.mubr.bf16.mxu0 %v805
      %3335 = vmatmul.mubr.bf16.gmra.mxu0 %v804
      %v3336 = vpop.f32.mrf.mxu0
      %v3337 = vadd.f32 %v3240, %v3336
      %v3338 = vpop.f32.mrf.mxu0
      %v3339 = vpop.f32.mrf.mxu0
      %v3340 = vadd.f32 %v3243, %v3339
      %v3341 = vpop.f32.mrf.mxu0
      %3342 = vmatprep.mubr.bf16.mxu0 %v812
      %3343 = vmatmul.mubr.bf16.gmra.mxu0 %v811
      %v3344 = vpop.f32.mrf.mxu0
      %v3345 = vadd.f32 %v3248, %v3344
      %v3346 = vpop.f32.mrf.mxu0
      %v3347 = vpop.f32.mrf.mxu0
      %v3348 = vadd.f32 %v3251, %v3347
      %v3349 = vpop.f32.mrf.mxu0
      %3350 = vmatprep.mubr.bf16.mxu0 %v819
      %3351 = vmatmul.mubr.bf16.gmra.mxu0 %v818
      %v3352 = vpop.f32.mrf.mxu0
      %v3353 = vadd.f32 %v3256, %v3352
      %v3354 = vpop.f32.mrf.mxu0
      %v3355 = vpop.f32.mrf.mxu0
      %v3356 = vadd.f32 %v3259, %v3355
      %v3357 = vpop.f32.mrf.mxu0
      %3358 = vmatprep.mubr.bf16.mxu0 %v826
      %3359 = vmatmul.mubr.bf16.gmra.mxu0 %v825
      %v3360 = vpop.f32.mrf.mxu0
      %v3361 = vadd.f32 %v3264, %v3360
      %v3362 = vpop.f32.mrf.mxu0
      %v3363 = vpop.f32.mrf.mxu0
      %v3364 = vadd.f32 %v3267, %v3363
      %v3365 = vpop.f32.mrf.mxu0
      %3366 = vmatprep.mubr.bf16.mxu0 %v833
      %3367 = vmatmul.mubr.bf16.gmra.mxu0 %v832
      %v3368 = vpop.f32.mrf.mxu0
      %v3369 = vadd.f32 %v3272, %v3368
      %v3370 = vpop.f32.mrf.mxu0
      %v3371 = vpop.f32.mrf.mxu0
      %v3372 = vadd.f32 %v3275, %v3371
      %v3373 = vpop.f32.mrf.mxu0
      %3374 = vmatprep.mubr.bf16.mxu0 %v840
      %3375 = vmatmul.mubr.bf16.gmra.mxu0 %v839
      %v3376 = vpop.f32.mrf.mxu0
      %v3377 = vadd.f32 %v3280, %v3376
      %v3378 = vpop.f32.mrf.mxu0
      %v3379 = vpop.f32.mrf.mxu0
      %v3380 = vadd.f32 %v3283, %v3379
      %v3381 = vpop.f32.mrf.mxu0
      %3382 = vmatprep.mubr.bf16.mxu0 %v847
      %3383 = vmatmul.mubr.bf16.gmra.mxu0 %v846
      %v3384 = vpop.f32.mrf.mxu0
      %v3385 = vadd.f32 %v3288, %v3384
      %v3386 = vpop.f32.mrf.mxu0
      %v3387 = vpop.f32.mrf.mxu0
      %v3388 = vadd.f32 %v3291, %v3387
      %v3389 = vpop.f32.mrf.mxu0
      %3390 = vdwg.mxu0
      %3391 = vmatprep.subr.bf16.mxu0 0
      %3392 = vmatpush1.bf16.msra.mxu0 0
      %3393 = vmatprep.subr.bf16.mxu0 0
      %3394 = vmatpush1.bf16.msra.mxu0 0
      %3395 = vmatprep.subr.bf16.mxu0 0
      %3396 = vmatpush1.bf16.msra.mxu0 0
      %3397 = vmatprep.subr.bf16.mxu0 0
      %3398 = vmatpush1.bf16.msra.mxu0 0
      %3399 = vmatprep.subr.bf16.mxu0 0
      %3400 = vmatpush1.bf16.msra.mxu0 0
      %3401 = vmatprep.subr.bf16.mxu0 0
      %3402 = vmatpush1.bf16.msra.mxu0 0
      %3403 = vmatprep.subr.bf16.mxu0 0
      %3404 = vmatpush1.bf16.msra.mxu0 0
      %3405 = vmatprep.subr.bf16.mxu0 0
      %3406 = vmatpush1.bf16.msra.mxu0 %v1925
      %3407 = vmatprep.subr.bf16.mxu0 0
      %3408 = vmatpush2.bf16.msra.mxu0 0
      %3409 = vmatprep.subr.bf16.mxu0 0
      %3410 = vmatpush2.bf16.msra.mxu0 0
      %3411 = vmatprep.subr.bf16.mxu0 0
      %3412 = vmatpush2.bf16.msra.mxu0 0
      %3413 = vmatprep.subr.bf16.mxu0 0
      %3414 = vmatpush2.bf16.msra.mxu0 0
      %3415 = vmatprep.subr.bf16.mxu0 0
      %3416 = vmatpush2.bf16.msra.mxu0 0
      %3417 = vmatprep.subr.bf16.mxu0 0
      %3418 = vmatpush2.bf16.msra.mxu0 0
      %3419 = vmatprep.subr.bf16.mxu0 0
      %3420 = vmatpush2.bf16.msra.mxu0 0
      %3421 = vmatprep.subr.bf16.mxu0 0
      %3422 = vmatpush2.bf16.msra.mxu0 0
      %3423 = vmatprep.mubr.bf16.mxu0 0
      %3424 = vmatmul.mubr.bf16.gmra.mxu0 %v2173
      %v3425 = vpop.f32.mrf.mxu0
      %v3426 = vadd.f32 %v3329, %v3425
      %v3427 = vpop.f32.mrf.mxu0
      %v3428 = vpop.f32.mrf.mxu0
      %v3429 = vadd.f32 %v3332, %v3428
      %v3430 = vpop.f32.mrf.mxu0
      %3431 = vmatprep.mubr.bf16.mxu0 0
      %3432 = vmatmul.mubr.bf16.gmra.mxu0 %v2176
      %v3433 = vpop.f32.mrf.mxu0
      %v3434 = vadd.f32 %v3337, %v3433
      %v3435 = vpop.f32.mrf.mxu0
      %v3436 = vpop.f32.mrf.mxu0
      %v3437 = vadd.f32 %v3340, %v3436
      %v3438 = vpop.f32.mrf.mxu0
      %3439 = vmatprep.mubr.bf16.mxu0 0
      %3440 = vmatmul.mubr.bf16.gmra.mxu0 %v2179
      %v3441 = vpop.f32.mrf.mxu0
      %v3442 = vadd.f32 %v3345, %v3441
      %v3443 = vpop.f32.mrf.mxu0
      %v3444 = vpop.f32.mrf.mxu0
      %v3445 = vadd.f32 %v3348, %v3444
      %v3446 = vpop.f32.mrf.mxu0
      %3447 = vmatprep.mubr.bf16.mxu0 0
      %3448 = vmatmul.mubr.bf16.gmra.mxu0 %v2182
      %v3449 = vpop.f32.mrf.mxu0
      %v3450 = vadd.f32 %v3353, %v3449
      %v3451 = vpop.f32.mrf.mxu0
      %v3452 = vpop.f32.mrf.mxu0
      %v3453 = vadd.f32 %v3356, %v3452
      %v3454 = vpop.f32.mrf.mxu0
      %3455 = vmatprep.mubr.bf16.mxu0 0
      %3456 = vmatmul.mubr.bf16.gmra.mxu0 %v2185
      %v3457 = vpop.f32.mrf.mxu0
      %v3458 = vadd.f32 %v3361, %v3457
      %v3459 = vpop.f32.mrf.mxu0
      %v3460 = vpop.f32.mrf.mxu0
      %v3461 = vadd.f32 %v3364, %v3460
      %v3462 = vpop.f32.mrf.mxu0
      %3463 = vmatprep.mubr.bf16.mxu0 0
      %3464 = vmatmul.mubr.bf16.gmra.mxu0 %v2188
      %v3465 = vpop.f32.mrf.mxu0
      %v3466 = vadd.f32 %v3369, %v3465
      %v3467 = vpop.f32.mrf.mxu0
      %v3468 = vpop.f32.mrf.mxu0
      %v3469 = vadd.f32 %v3372, %v3468
      %v3470 = vpop.f32.mrf.mxu0
      %3471 = vmatprep.mubr.bf16.mxu0 0
      %3472 = vmatmul.mubr.bf16.gmra.mxu0 %v2191
      %v3473 = vpop.f32.mrf.mxu0
      %v3474 = vadd.f32 %v3377, %v3473
      %v3475 = vpop.f32.mrf.mxu0
      %v3476 = vpop.f32.mrf.mxu0
      %v3477 = vadd.f32 %v3380, %v3476
      %v3478 = vpop.f32.mrf.mxu0
      %3479 = vmatprep.mubr.bf16.mxu0 0
      %3480 = vmatmul.mubr.bf16.gmra.mxu0 %v2194
      %v3481 = vpop.f32.mrf.mxu0
      %v3482 = vadd.f32 %v3385, %v3481
      %v3483 = vpop.f32.mrf.mxu0
      %v3484 = vpop.f32.mrf.mxu0
      %v3485 = vadd.f32 %v3388, %v3484
      %v3486 = vpop.f32.mrf.mxu0
      %3487 = vdwg.mxu0
      %v3488 = vsub.f32 0.0, %v2570
      %v3489 = vsub.f32 0.0, %v2572
      %v3490 = vsub.f32 0.0, %v3022
      %v3491 = vsub.f32 0.0, %v3024
      %v3492 = vsub.f32 0.0, %v3426
      %v3493 = vsub.f32 0.0, %v2574
      %v3494 = vsub.f32 0.0, %v2576
      %v3495 = vsub.f32 0.0, %v3026
      %v3496 = vsub.f32 0.0, %v3028
      %v3497 = vsub.f32 0.0, %v3429
      %v3498 = vsub.f32 0.0, %v2580
      %v3499 = vsub.f32 0.0, %v2582
      %v3500 = vsub.f32 0.0, %v3032
      %v3501 = vsub.f32 0.0, %v3034
      %v3502 = vsub.f32 0.0, %v3434
      %v3503 = vsub.f32 0.0, %v2584
      %v3504 = vsub.f32 0.0, %v2586
      %v3505 = vsub.f32 0.0, %v3036
      %v3506 = vsub.f32 0.0, %v3038
      %v3507 = vsub.f32 0.0, %v3437
      %v3508 = vsub.f32 0.0, %v2590
      %v3509 = vsub.f32 0.0, %v2592
      %v3510 = vsub.f32 0.0, %v3042
      %v3511 = vsub.f32 0.0, %v3044
      %v3512 = vsub.f32 0.0, %v3442
      %v3513 = vsub.f32 0.0, %v2594
      %v3514 = vsub.f32 0.0, %v2596
      %v3515 = vsub.f32 0.0, %v3046
      %v3516 = vsub.f32 0.0, %v3048
      %v3517 = vsub.f32 0.0, %v3445
      %v3518 = vsub.f32 0.0, %v2600
      %v3519 = vsub.f32 0.0, %v2602
      %v3520 = vsub.f32 0.0, %v3052
      %v3521 = vsub.f32 0.0, %v3054
      %v3522 = vsub.f32 0.0, %v3450
      %v3523 = vsub.f32 0.0, %v2604
      %v3524 = vsub.f32 0.0, %v2606
      %v3525 = vsub.f32 0.0, %v3056
      %v3526 = vsub.f32 0.0, %v3058
      %v3527 = vsub.f32 0.0, %v3453
      %v3528 = vsub.f32 0.0, %v2610
      %v3529 = vsub.f32 0.0, %v2612
      %v3530 = vsub.f32 0.0, %v3062
      %v3531 = vsub.f32 0.0, %v3064
      %v3532 = vsub.f32 0.0, %v3458
      %v3533 = vsub.f32 0.0, %v2614
      %v3534 = vsub.f32 0.0, %v2616
      %v3535 = vsub.f32 0.0, %v3066
      %v3536 = vsub.f32 0.0, %v3068
      %v3537 = vsub.f32 0.0, %v3461
      %v3538 = vsub.f32 0.0, %v2620
      %v3539 = vsub.f32 0.0, %v2622
      %v3540 = vsub.f32 0.0, %v3072
      %v3541 = vsub.f32 0.0, %v3074
      %v3542 = vsub.f32 0.0, %v3466
      %v3543 = vsub.f32 0.0, %v2624
      %v3544 = vsub.f32 0.0, %v2626
      %v3545 = vsub.f32 0.0, %v3076
      %v3546 = vsub.f32 0.0, %v3078
      %v3547 = vsub.f32 0.0, %v3469
      %v3548 = vsub.f32 0.0, %v2630
      %v3549 = vsub.f32 0.0, %v2632
      %v3550 = vsub.f32 0.0, %v3082
      %v3551 = vsub.f32 0.0, %v3084
      %v3552 = vsub.f32 0.0, %v3474
      %v3553 = vsub.f32 0.0, %v2634
      %v3554 = vsub.f32 0.0, %v2636
      %v3555 = vsub.f32 0.0, %v3086
      %v3556 = vsub.f32 0.0, %v3088
      %v3557 = vsub.f32 0.0, %v3477
      %v3558 = vsub.f32 0.0, %v2640
      %v3559 = vsub.f32 0.0, %v2642
      %v3560 = vsub.f32 0.0, %v3092
      %v3561 = vsub.f32 0.0, %v3094
      %v3562 = vsub.f32 0.0, %v3482
      %v3563 = vsub.f32 0.0, %v2644
      %v3564 = vsub.f32 0.0, %v2646
      %v3565 = vsub.f32 0.0, %v3096
      %v3566 = vsub.f32 0.0, %v3098
      %v3567 = vsub.f32 0.0, %v3485
      %v3568 = vmul.f32 %v3488, 1.442695
      %v3569 = vpow.pop %v3568
      %v3570 = vmul.f32 %v3489, 1.442695
      %v3571 = vpow.pop %v3570
      %v3572 = vmul.f32 %v3490, 1.442695
      %v3573 = vpow.pop %v3572
      %v3574 = vmul.f32 %v3491, 1.442695
      %v3575 = vpow.pop %v3574
      %v3576 = vmul.f32 %v3492, 1.442695
      %v3577 = vpow.pop %v3576
      %v3578 = vmul.f32 %v3493, 1.442695
      %v3579 = vpow.pop %v3578
      %v3580 = vmul.f32 %v3494, 1.442695
      %v3581 = vpow.pop %v3580
      %v3582 = vmul.f32 %v3495, 1.442695
      %v3583 = vpow.pop %v3582
      %v3584 = vmul.f32 %v3496, 1.442695
      %v3585 = vpow.pop %v3584
      %v3586 = vmul.f32 %v3497, 1.442695
      %v3587 = vpow.pop %v3586
      %v3588 = vmul.f32 %v3498, 1.442695
      %v3589 = vpow.pop %v3588
      %v3590 = vmul.f32 %v3499, 1.442695
      %v3591 = vpow.pop %v3590
      %v3592 = vmul.f32 %v3500, 1.442695
      %v3593 = vpow.pop %v3592
      %v3594 = vmul.f32 %v3501, 1.442695
      %v3595 = vpow.pop %v3594
      %v3596 = vmul.f32 %v3502, 1.442695
      %v3597 = vpow.pop %v3596
      %v3598 = vmul.f32 %v3503, 1.442695
      %v3599 = vpow.pop %v3598
      %v3600 = vmul.f32 %v3504, 1.442695
      %v3601 = vpow.pop %v3600
      %v3602 = vmul.f32 %v3505, 1.442695
      %v3603 = vpow.pop %v3602
      %v3604 = vmul.f32 %v3506, 1.442695
      %v3605 = vpow.pop %v3604
      %v3606 = vmul.f32 %v3507, 1.442695
      %v3607 = vpow.pop %v3606
      %v3608 = vmul.f32 %v3508, 1.442695
      %v3609 = vpow.pop %v3608
      %v3610 = vmul.f32 %v3509, 1.442695
      %v3611 = vpow.pop %v3610
      %v3612 = vmul.f32 %v3510, 1.442695
      %v3613 = vpow.pop %v3612
      %v3614 = vmul.f32 %v3511, 1.442695
      %v3615 = vpow.pop %v3614
      %v3616 = vmul.f32 %v3512, 1.442695
      %v3617 = vpow.pop %v3616
      %v3618 = vmul.f32 %v3513, 1.442695
      %v3619 = vpow.pop %v3618
      %v3620 = vmul.f32 %v3514, 1.442695
      %v3621 = vpow.pop %v3620
      %v3622 = vmul.f32 %v3515, 1.442695
      %v3623 = vpow.pop %v3622
      %v3624 = vmul.f32 %v3516, 1.442695
      %v3625 = vpow.pop %v3624
      %v3626 = vmul.f32 %v3517, 1.442695
      %v3627 = vpow.pop %v3626
      %v3628 = vmul.f32 %v3518, 1.442695
      %v3629 = vpow.pop %v3628
      %v3630 = vmul.f32 %v3519, 1.442695
      %v3631 = vpow.pop %v3630
      %v3632 = vmul.f32 %v3520, 1.442695
      %v3633 = vpow.pop %v3632
      %v3634 = vmul.f32 %v3521, 1.442695
      %v3635 = vpow.pop %v3634
      %v3636 = vmul.f32 %v3522, 1.442695
      %v3637 = vpow.pop %v3636
      %v3638 = vmul.f32 %v3523, 1.442695
      %v3639 = vpow.pop %v3638
      %v3640 = vmul.f32 %v3524, 1.442695
      %v3641 = vpow.pop %v3640
      %v3642 = vmul.f32 %v3525, 1.442695
      %v3643 = vpow.pop %v3642
      %v3644 = vmul.f32 %v3526, 1.442695
      %v3645 = vpow.pop %v3644
      %v3646 = vmul.f32 %v3527, 1.442695
      %v3647 = vpow.pop %v3646
      %v3648 = vmul.f32 %v3528, 1.442695
      %v3649 = vpow.pop %v3648
      %v3650 = vmul.f32 %v3529, 1.442695
      %v3651 = vpow.pop %v3650
      %v3652 = vmul.f32 %v3530, 1.442695
      %v3653 = vpow.pop %v3652
      %v3654 = vmul.f32 %v3531, 1.442695
      %v3655 = vpow.pop %v3654
      %v3656 = vmul.f32 %v3532, 1.442695
      %v3657 = vpow.pop %v3656
      %v3658 = vmul.f32 %v3533, 1.442695
      %v3659 = vpow.pop %v3658
      %v3660 = vmul.f32 %v3534, 1.442695
      %v3661 = vpow.pop %v3660
      %v3662 = vmul.f32 %v3535, 1.442695
      %v3663 = vpow.pop %v3662
      %v3664 = vmul.f32 %v3536, 1.442695
      %v3665 = vpow.pop %v3664
      %v3666 = vmul.f32 %v3537, 1.442695
      %v3667 = vpow.pop %v3666
      %v3668 = vmul.f32 %v3538, 1.442695
      %v3669 = vpow.pop %v3668
      %v3670 = vmul.f32 %v3539, 1.442695
      %v3671 = vpow.pop %v3670
      %v3672 = vmul.f32 %v3540, 1.442695
      %v3673 = vpow.pop %v3672
      %v3674 = vmul.f32 %v3541, 1.442695
      %v3675 = vpow.pop %v3674
      %v3676 = vmul.f32 %v3542, 1.442695
      %v3677 = vpow.pop %v3676
      %v3678 = vmul.f32 %v3543, 1.442695
      %v3679 = vpow.pop %v3678
      %v3680 = vmul.f32 %v3544, 1.442695
      %v3681 = vpow.pop %v3680
      %v3682 = vmul.f32 %v3545, 1.442695
      %v3683 = vpow.pop %v3682
      %v3684 = vmul.f32 %v3546, 1.442695
      %v3685 = vpow.pop %v3684
      %v3686 = vmul.f32 %v3547, 1.442695
      %v3687 = vpow.pop %v3686
      %v3688 = vmul.f32 %v3548, 1.442695
      %v3689 = vpow.pop %v3688
      %v3690 = vmul.f32 %v3549, 1.442695
      %v3691 = vpow.pop %v3690
      %v3692 = vmul.f32 %v3550, 1.442695
      %v3693 = vpow.pop %v3692
      %v3694 = vmul.f32 %v3551, 1.442695
      %v3695 = vpow.pop %v3694
      %v3696 = vmul.f32 %v3552, 1.442695
      %v3697 = vpow.pop %v3696
      %v3698 = vmul.f32 %v3553, 1.442695
      %v3699 = vpow.pop %v3698
      %v3700 = vmul.f32 %v3554, 1.442695
      %v3701 = vpow.pop %v3700
      %v3702 = vmul.f32 %v3555, 1.442695
      %v3703 = vpow.pop %v3702
      %v3704 = vmul.f32 %v3556, 1.442695
      %v3705 = vpow.pop %v3704
      %v3706 = vmul.f32 %v3557, 1.442695
      %v3707 = vpow.pop %v3706
      %v3708 = vmul.f32 %v3558, 1.442695
      %v3709 = vpow.pop %v3708
      %v3710 = vmul.f32 %v3559, 1.442695
      %v3711 = vpow.pop %v3710
      %v3712 = vmul.f32 %v3560, 1.442695
      %v3713 = vpow.pop %v3712
      %v3714 = vmul.f32 %v3561, 1.442695
      %v3715 = vpow.pop %v3714
      %v3716 = vmul.f32 %v3562, 1.442695
      %v3717 = vpow.pop %v3716
      %v3718 = vmul.f32 %v3563, 1.442695
      %v3719 = vpow.pop %v3718
      %v3720 = vmul.f32 %v3564, 1.442695
      %v3721 = vpow.pop %v3720
      %v3722 = vmul.f32 %v3565, 1.442695
      %v3723 = vpow.pop %v3722
      %v3724 = vmul.f32 %v3566, 1.442695
      %v3725 = vpow.pop %v3724
      %v3726 = vmul.f32 %v3567, 1.442695
      %v3727 = vpow.pop %v3726
      %v3728 = vadd.f32 %v3569, 1.0
      %v3729 = vadd.f32 %v3571, 1.0
      %v3730 = vadd.f32 %v3573, 1.0
      %v3731 = vadd.f32 %v3575, 1.0
      %v3732 = vadd.f32 %v3577, 1.0
      %v3733 = vadd.f32 %v3579, 1.0
      %v3734 = vadd.f32 %v3581, 1.0
      %v3735 = vadd.f32 %v3583, 1.0
      %v3736 = vadd.f32 %v3585, 1.0
      %v3737 = vadd.f32 %v3587, 1.0
      %v3738 = vadd.f32 %v3589, 1.0
      %v3739 = vadd.f32 %v3591, 1.0
      %v3740 = vadd.f32 %v3593, 1.0
      %v3741 = vadd.f32 %v3595, 1.0
      %v3742 = vadd.f32 %v3597, 1.0
      %v3743 = vadd.f32 %v3599, 1.0
      %v3744 = vadd.f32 %v3601, 1.0
      %v3745 = vadd.f32 %v3603, 1.0
      %v3746 = vadd.f32 %v3605, 1.0
      %v3747 = vadd.f32 %v3607, 1.0
      %v3748 = vadd.f32 %v3609, 1.0
      %v3749 = vadd.f32 %v3611, 1.0
      %v3750 = vadd.f32 %v3613, 1.0
      %v3751 = vadd.f32 %v3615, 1.0
      %v3752 = vadd.f32 %v3617, 1.0
      %v3753 = vadd.f32 %v3619, 1.0
      %v3754 = vadd.f32 %v3621, 1.0
      %v3755 = vadd.f32 %v3623, 1.0
      %v3756 = vadd.f32 %v3625, 1.0
      %v3757 = vadd.f32 %v3627, 1.0
      %v3758 = vadd.f32 %v3629, 1.0
      %v3759 = vadd.f32 %v3631, 1.0
      %v3760 = vadd.f32 %v3633, 1.0
      %v3761 = vadd.f32 %v3635, 1.0
      %v3762 = vadd.f32 %v3637, 1.0
      %v3763 = vadd.f32 %v3639, 1.0
      %v3764 = vadd.f32 %v3641, 1.0
      %v3765 = vadd.f32 %v3643, 1.0
      %v3766 = vadd.f32 %v3645, 1.0
      %v3767 = vadd.f32 %v3647, 1.0
      %v3768 = vadd.f32 %v3649, 1.0
      %v3769 = vadd.f32 %v3651, 1.0
      %v3770 = vadd.f32 %v3653, 1.0
      %v3771 = vadd.f32 %v3655, 1.0
      %v3772 = vadd.f32 %v3657, 1.0
      %v3773 = vadd.f32 %v3659, 1.0
      %v3774 = vadd.f32 %v3661, 1.0
      %v3775 = vadd.f32 %v3663, 1.0
      %v3776 = vadd.f32 %v3665, 1.0
      %v3777 = vadd.f32 %v3667, 1.0
      %v3778 = vadd.f32 %v3669, 1.0
      %v3779 = vadd.f32 %v3671, 1.0
      %v3780 = vadd.f32 %v3673, 1.0
      %v3781 = vadd.f32 %v3675, 1.0
      %v3782 = vadd.f32 %v3677, 1.0
      %v3783 = vadd.f32 %v3679, 1.0
      %v3784 = vadd.f32 %v3681, 1.0
      %v3785 = vadd.f32 %v3683, 1.0
      %v3786 = vadd.f32 %v3685, 1.0
      %v3787 = vadd.f32 %v3687, 1.0
      %v3788 = vadd.f32 %v3689, 1.0
      %v3789 = vadd.f32 %v3691, 1.0
      %v3790 = vadd.f32 %v3693, 1.0
      %v3791 = vadd.f32 %v3695, 1.0
      %v3792 = vadd.f32 %v3697, 1.0
      %v3793 = vadd.f32 %v3699, 1.0
      %v3794 = vadd.f32 %v3701, 1.0
      %v3795 = vadd.f32 %v3703, 1.0
      %v3796 = vadd.f32 %v3705, 1.0
      %v3797 = vadd.f32 %v3707, 1.0
      %v3798 = vadd.f32 %v3709, 1.0
      %v3799 = vadd.f32 %v3711, 1.0
      %v3800 = vadd.f32 %v3713, 1.0
      %v3801 = vadd.f32 %v3715, 1.0
      %v3802 = vadd.f32 %v3717, 1.0
      %v3803 = vadd.f32 %v3719, 1.0
      %v3804 = vadd.f32 %v3721, 1.0
      %v3805 = vadd.f32 %v3723, 1.0
      %v3806 = vadd.f32 %v3725, 1.0
      %v3807 = vadd.f32 %v3727, 1.0
      %v3808 = vrcp.pop %v3728
      %v3809 = vrcp.pop %v3729
      %v3810 = vrcp.pop %v3730
      %v3811 = vrcp.pop %v3731
      %v3812 = vrcp.pop %v3732
      %v3813 = vrcp.pop %v3733
      %v3814 = vrcp.pop %v3734
      %v3815 = vrcp.pop %v3735
      %v3816 = vrcp.pop %v3736
      %v3817 = vrcp.pop %v3737
      %v3818 = vrcp.pop %v3738
      %v3819 = vrcp.pop %v3739
      %v3820 = vrcp.pop %v3740
      %v3821 = vrcp.pop %v3741
      %v3822 = vrcp.pop %v3742
      %v3823 = vrcp.pop %v3743
      %v3824 = vrcp.pop %v3744
      %v3825 = vrcp.pop %v3745
      %v3826 = vrcp.pop %v3746
      %v3827 = vrcp.pop %v3747
      %v3828 = vrcp.pop %v3748
      %v3829 = vrcp.pop %v3749
      %v3830 = vrcp.pop %v3750
      %v3831 = vrcp.pop %v3751
      %v3832 = vrcp.pop %v3752
      %v3833 = vrcp.pop %v3753
      %v3834 = vrcp.pop %v3754
      %v3835 = vrcp.pop %v3755
      %v3836 = vrcp.pop %v3756
      %v3837 = vrcp.pop %v3757
      %v3838 = vrcp.pop %v3758
      %v3839 = vrcp.pop %v3759
      %v3840 = vrcp.pop %v3760
      %v3841 = vrcp.pop %v3761
      %v3842 = vrcp.pop %v3762
      %v3843 = vrcp.pop %v3763
      %v3844 = vrcp.pop %v3764
      %v3845 = vrcp.pop %v3765
      %v3846 = vrcp.pop %v3766
      %v3847 = vrcp.pop %v3767
      %v3848 = vrcp.pop %v3768
      %v3849 = vrcp.pop %v3769
      %v3850 = vrcp.pop %v3770
      %v3851 = vrcp.pop %v3771
      %v3852 = vrcp.pop %v3772
      %v3853 = vrcp.pop %v3773
      %v3854 = vrcp.pop %v3774
      %v3855 = vrcp.pop %v3775
      %v3856 = vrcp.pop %v3776
      %v3857 = vrcp.pop %v3777
      %v3858 = vrcp.pop %v3778
      %v3859 = vrcp.pop %v3779
      %v3860 = vrcp.pop %v3780
      %v3861 = vrcp.pop %v3781
      %v3862 = vrcp.pop %v3782
      %v3863 = vrcp.pop %v3783
      %v3864 = vrcp.pop %v3784
      %v3865 = vrcp.pop %v3785
      %v3866 = vrcp.pop %v3786
      %v3867 = vrcp.pop %v3787
      %v3868 = vrcp.pop %v3788
      %v3869 = vrcp.pop %v3789
      %v3870 = vrcp.pop %v3790
      %v3871 = vrcp.pop %v3791
      %v3872 = vrcp.pop %v3792
      %v3873 = vrcp.pop %v3793
      %v3874 = vrcp.pop %v3794
      %v3875 = vrcp.pop %v3795
      %v3876 = vrcp.pop %v3796
      %v3877 = vrcp.pop %v3797
      %v3878 = vrcp.pop %v3798
      %v3879 = vrcp.pop %v3799
      %v3880 = vrcp.pop %v3800
      %v3881 = vrcp.pop %v3801
      %v3882 = vrcp.pop %v3802
      %v3883 = vrcp.pop %v3803
      %v3884 = vrcp.pop %v3804
      %v3885 = vrcp.pop %v3805
      %v3886 = vrcp.pop %v3806
      %v3887 = vrcp.pop %v3807
      %v3888 = vpack.c.bf16 %v3813, %v3808
      %v3889 = vpack.c.bf16 %v3814, %v3809
      %v3890 = vpack.c.bf16 %v3815, %v3810
      %v3891 = vpack.c.bf16 %v3816, %v3811
      %v3892 = vpack.c.bf16 %v3817, %v3812
      %v3893 = vpack.c.bf16 %v3823, %v3818
      %v3894 = vpack.c.bf16 %v3824, %v3819
      %v3895 = vpack.c.bf16 %v3825, %v3820
      %v3896 = vpack.c.bf16 %v3826, %v3821
      %v3897 = vpack.c.bf16 %v3827, %v3822
      %v3898 = vpack.c.bf16 %v3833, %v3828
      %v3899 = vpack.c.bf16 %v3834, %v3829
      %v3900 = vpack.c.bf16 %v3835, %v3830
      %v3901 = vpack.c.bf16 %v3836, %v3831
      %v3902 = vpack.c.bf16 %v3837, %v3832
      %v3903 = vpack.c.bf16 %v3843, %v3838
      %v3904 = vpack.c.bf16 %v3844, %v3839
      %v3905 = vpack.c.bf16 %v3845, %v3840
      %v3906 = vpack.c.bf16 %v3846, %v3841
      %v3907 = vpack.c.bf16 %v3847, %v3842
      %v3908 = vpack.c.bf16 %v3853, %v3848
      %v3909 = vpack.c.bf16 %v3854, %v3849
      %v3910 = vpack.c.bf16 %v3855, %v3850
      %v3911 = vpack.c.bf16 %v3856, %v3851
      %v3912 = vpack.c.bf16 %v3857, %v3852
      %v3913 = vpack.c.bf16 %v3863, %v3858
      %v3914 = vpack.c.bf16 %v3864, %v3859
      %v3915 = vpack.c.bf16 %v3865, %v3860
      %v3916 = vpack.c.bf16 %v3866, %v3861
      %v3917 = vpack.c.bf16 %v3867, %v3862
      %v3918 = vpack.c.bf16 %v3873, %v3868
      %v3919 = vpack.c.bf16 %v3874, %v3869
      %v3920 = vpack.c.bf16 %v3875, %v3870
      %v3921 = vpack.c.bf16 %v3876, %v3871
      %v3922 = vpack.c.bf16 %v3877, %v3872
      %v3923 = vpack.c.bf16 %v3883, %v3878
      %v3924 = vpack.c.bf16 %v3884, %v3879
      %v3925 = vpack.c.bf16 %v3885, %v3880
      %v3926 = vpack.c.bf16 %v3886, %v3881
      %v3927 = vpack.c.bf16 %v3887, %v3882
      %v3928 = vld [vmem:[%s3] sm:$0xf]
      %v3929 = vld [vmem:[%s3 + $0x4] sm:$0xf]
      %v3930 = vld [vmem:[%s3 + $0x8] sm:$0xf]
      %v3931 = vld [vmem:[%s3 + $0xc] sm:$0xf]
      %v3932 = vld [vmem:[%s3 + $0x10] sm:$0xf]
      %v3933 = vld [vmem:[%s3 + $0x14] sm:$0xf]
      %v3934 = vld [vmem:[%s3 + $0x18] sm:$0xf]
      %v3935 = vld [vmem:[%s3 + $0x1c] sm:$0xf]
      %v3936 = vld [vmem:[%s3 + $0x20] sm:$0xf]
      %v3937 = vld [vmem:[%s3 + $0x24] sm:$0xf]
      %v3938 = vld [vmem:[%s3 + $0x28] sm:$0xf]
      %v3939 = vld [vmem:[%s3 + $0x2c] sm:$0xf]
      %v3940 = vld [vmem:[%s3 + $0x30] sm:$0xf]
      %v3941 = vld [vmem:[%s3 + $0x34] sm:$0xf]
      %v3942 = vld [vmem:[%s3 + $0x38] sm:$0xf]
      %v3943 = vld [vmem:[%s3 + $0x3c] sm:$0xf]
      %v3944 = vld [vmem:[%s3 + $0x40] sm:$0xf]
      %v3945 = vld [vmem:[%s3 + $0x44] sm:$0xf]
      %v3946 = vld [vmem:[%s3 + $0x48] sm:$0xf]
      %v3947 = vld [vmem:[%s3 + $0x4c] sm:$0xf]
      %v3948 = vld [vmem:[%s3 + $0x50] sm:$0xf]
      %v3949 = vld [vmem:[%s3 + $0x54] sm:$0xf]
      %v3950 = vld [vmem:[%s3 + $0x58] sm:$0xf]
      %v3951 = vld [vmem:[%s3 + $0x5c] sm:$0xf]
      %v3952 = vld [vmem:[%s3 + $0x60] sm:$0xf]
      %v3953 = vld [vmem:[%s3 + $0x64] sm:$0xf]
      %v3954 = vld [vmem:[%s3 + $0x68] sm:$0xf]
      %v3955 = vld [vmem:[%s3 + $0x6c] sm:$0xf]
      %v3956 = vld [vmem:[%s3 + $0x70] sm:$0xf]
      %v3957 = vld [vmem:[%s3 + $0x74] sm:$0xf]
      %v3958 = vld [vmem:[%s3 + $0x78] sm:$0xf]
      %v3959 = vld [vmem:[%s3 + $0x7c] sm:$0xf]
      %v3960 = vld [vmem:[%s3 + $0x80] sm:$0xf]
      %v3961 = vld [vmem:[%s3 + $0x84] sm:$0xf]
      %v3962 = vld [vmem:[%s3 + $0x88] sm:$0xf]
      %v3963 = vld [vmem:[%s3 + $0x8c] sm:$0xf]
      %v3964 = vld [vmem:[%s3 + $0x90] sm:$0xf]
      %v3965 = vld [vmem:[%s3 + $0x94] sm:$0xf]
      %v3966 = vld [vmem:[%s3 + $0x98] sm:$0xf]
      %v3967 = vld [vmem:[%s3 + $0x9c] sm:$0xf]
      %v3968 = vld [vmem:[%s3 + $0xa0] sm:$0xf]
      %v3969 = vld [vmem:[%s3 + $0xa4] sm:$0xf]
      %v3970 = vld [vmem:[%s3 + $0xa8] sm:$0xf]
      %v3971 = vld [vmem:[%s3 + $0xac] sm:$0xf]
      %v3972 = vld [vmem:[%s3 + $0xb0] sm:$0xf]
      %v3973 = vld [vmem:[%s3 + $0xb4] sm:$0xf]
      %v3974 = vld [vmem:[%s3 + $0xb8] sm:$0xf]
      %v3975 = vld [vmem:[%s3 + $0xbc] sm:$0xf]
      %v3976 = vld [vmem:[%s3 + $0xc0] sm:$0xf]
      %v3977 = vld [vmem:[%s3 + $0xc4] sm:$0xf]
      %v3978 = vld [vmem:[%s3 + $0xc8] sm:$0xf]
      %v3979 = vld [vmem:[%s3 + $0xcc] sm:$0xf]
      %v3980 = vld [vmem:[%s3 + $0xd0] sm:$0xf]
      %v3981 = vld [vmem:[%s3 + $0xd4] sm:$0xf]
      %v3982 = vld [vmem:[%s3 + $0xd8] sm:$0xf]
      %v3983 = vld [vmem:[%s3 + $0xdc] sm:$0xf]
      %v3984 = vld [vmem:[%s3 + $0xe0] sm:$0xf]
      %v3985 = vld [vmem:[%s3 + $0xe4] sm:$0xf]
      %v3986 = vld [vmem:[%s3 + $0xe8] sm:$0xf]
      %v3987 = vld [vmem:[%s3 + $0xec] sm:$0xf]
      %v3988 = vld [vmem:[%s3 + $0xf0] sm:$0xf]
      %v3989 = vld [vmem:[%s3 + $0xf4] sm:$0xf]
      %v3990 = vld [vmem:[%s3 + $0xf8] sm:$0xf]
      %v3991 = vld [vmem:[%s3 + $0xfc] sm:$0xf]
      %v3992 = vld [vmem:[%s3 + $0x100] sm:$0xf]
      %v3993 = vld [vmem:[%s3 + $0x104] sm:$0xf]
      %v3994 = vld [vmem:[%s3 + $0x108] sm:$0xf]
      %v3995 = vld [vmem:[%s3 + $0x10c] sm:$0xf]
      %v3996 = vld [vmem:[%s3 + $0x110] sm:$0xf]
      %v3997 = vld [vmem:[%s3 + $0x114] sm:$0xf]
      %v3998 = vld [vmem:[%s3 + $0x118] sm:$0xf]
      %v3999 = vld [vmem:[%s3 + $0x11c] sm:$0xf]
      %v4000 = vld [vmem:[%s3 + $0x120] sm:$0xf]
      %v4001 = vld [vmem:[%s3 + $0x124] sm:$0xf]
      %v4002 = vld [vmem:[%s3 + $0x128] sm:$0xf]
      %v4003 = vld [vmem:[%s3 + $0x12c] sm:$0xf]
      %v4004 = vld [vmem:[%s3 + $0x130] sm:$0xf]
      %v4005 = vld [vmem:[%s3 + $0x134] sm:$0xf]
      %v4006 = vld [vmem:[%s3 + $0x138] sm:$0xf]
      %v4007 = vld [vmem:[%s3 + $0x13c] sm:$0xf]
      %v4008 = vld [vmem:[%s4] sm:$0x1]
      %v4010 = vlaneseq
      %v4011 = vshrl.u32 %v4010, 7
      %v4012 = vsub.s32 0, %v4011
      %v4013 = vrot.slane %v4008, %v4012
      %v4095 = vunpack.c.l.b16 %v3928
      %v4096 = vunpack.c.l.b16 %v3929
      %v4097 = vunpack.c.l.b16 %v3930
      %v4098 = vunpack.c.l.b16 %v3931
      %v4099 = vunpack.c.l.b16 %v3932
      %v4100 = vunpack.c.l.b16 %v3933
      %v4101 = vunpack.c.l.b16 %v3934
      %v4102 = vunpack.c.l.b16 %v3935
      %v4103 = vunpack.c.l.b16 %v3936
      %v4104 = vunpack.c.l.b16 %v3937
      %v4105 = vunpack.c.l.b16 %v3938
      %v4106 = vunpack.c.l.b16 %v3939
      %v4107 = vunpack.c.l.b16 %v3940
      %v4108 = vunpack.c.l.b16 %v3941
      %v4109 = vunpack.c.l.b16 %v3942
      %v4110 = vunpack.c.l.b16 %v3943
      %v4111 = vunpack.c.l.b16 %v3944
      %v4112 = vunpack.c.l.b16 %v3945
      %v4113 = vunpack.c.l.b16 %v3946
      %v4114 = vunpack.c.l.b16 %v3947
      %v4115 = vunpack.c.l.b16 %v3948
      %v4116 = vunpack.c.l.b16 %v3949
      %v4117 = vunpack.c.l.b16 %v3950
      %v4118 = vunpack.c.l.b16 %v3951
      %v4119 = vunpack.c.l.b16 %v3952
      %v4120 = vunpack.c.l.b16 %v3953
      %v4121 = vunpack.c.l.b16 %v3954
      %v4122 = vunpack.c.l.b16 %v3955
      %v4123 = vunpack.c.l.b16 %v3956
      %v4124 = vunpack.c.l.b16 %v3957
      %v4125 = vunpack.c.l.b16 %v3958
      %v4126 = vunpack.c.l.b16 %v3959
      %v4127 = vunpack.c.l.b16 %v3960
      %v4128 = vunpack.c.l.b16 %v3961
      %v4129 = vunpack.c.l.b16 %v3962
      %v4130 = vunpack.c.l.b16 %v3963
      %v4131 = vunpack.c.l.b16 %v3964
      %v4132 = vunpack.c.l.b16 %v3965
      %v4133 = vunpack.c.l.b16 %v3966
      %v4134 = vunpack.c.l.b16 %v3967
      %v4135 = vunpack.c.l.b16 %v3968
      %v4136 = vunpack.c.l.b16 %v3969
      %v4137 = vunpack.c.l.b16 %v3970
      %v4138 = vunpack.c.l.b16 %v3971
      %v4139 = vunpack.c.l.b16 %v3972
      %v4140 = vunpack.c.l.b16 %v3973
      %v4141 = vunpack.c.l.b16 %v3974
      %v4142 = vunpack.c.l.b16 %v3975
      %v4143 = vunpack.c.l.b16 %v3976
      %v4144 = vunpack.c.l.b16 %v3977
      %v4145 = vunpack.c.l.b16 %v3978
      %v4146 = vunpack.c.l.b16 %v3979
      %v4147 = vunpack.c.l.b16 %v3980
      %v4148 = vunpack.c.l.b16 %v3981
      %v4149 = vunpack.c.l.b16 %v3982
      %v4150 = vunpack.c.l.b16 %v3983
      %v4151 = vunpack.c.l.b16 %v3984
      %v4152 = vunpack.c.l.b16 %v3985
      %v4153 = vunpack.c.l.b16 %v3986
      %v4154 = vunpack.c.l.b16 %v3987
      %v4155 = vunpack.c.l.b16 %v3988
      %v4156 = vunpack.c.l.b16 %v3989
      %v4157 = vunpack.c.l.b16 %v3990
      %v4158 = vunpack.c.l.b16 %v3991
      %v4159 = vunpack.c.l.b16 %v3992
      %v4160 = vunpack.c.l.b16 %v3993
      %v4161 = vunpack.c.l.b16 %v3994
      %v4162 = vunpack.c.l.b16 %v3995
      %v4163 = vunpack.c.l.b16 %v3996
      %v4164 = vunpack.c.l.b16 %v3997
      %v4165 = vunpack.c.l.b16 %v3998
      %v4166 = vunpack.c.l.b16 %v3999
      %v4167 = vunpack.c.l.b16 %v4000
      %v4168 = vunpack.c.l.b16 %v4001
      %v4169 = vunpack.c.l.b16 %v4002
      %v4170 = vunpack.c.l.b16 %v4003
      %v4171 = vunpack.c.l.b16 %v4004
      %v4172 = vunpack.c.l.b16 %v4005
      %v4173 = vunpack.c.l.b16 %v4006
      %v4174 = vunpack.c.l.b16 %v4007
      %v4175 = vpack.c.b16 %v4096, %v4095
      %v4176 = vpack.c.b16 %v4098, %v4097
      %v4177 = vpack.c.b16 %v4100, %v4099
      %v4178 = vpack.c.b16 %v4102, %v4101
      %v4179 = vpack.c.b16 %v4104, %v4103
      %v4180 = vpack.c.b16 %v4106, %v4105
      %v4181 = vpack.c.b16 %v4108, %v4107
      %v4182 = vpack.c.b16 %v4110, %v4109
      %v4183 = vpack.c.b16 %v4112, %v4111
      %v4184 = vpack.c.b16 %v4114, %v4113
      %v4185 = vpack.c.b16 %v4116, %v4115
      %v4186 = vpack.c.b16 %v4118, %v4117
      %v4187 = vpack.c.b16 %v4120, %v4119
      %v4188 = vpack.c.b16 %v4122, %v4121
      %v4189 = vpack.c.b16 %v4124, %v4123
      %v4190 = vpack.c.b16 %v4126, %v4125
      %v4191 = vpack.c.b16 %v4128, %v4127
      %v4192 = vpack.c.b16 %v4130, %v4129
      %v4193 = vpack.c.b16 %v4132, %v4131
      %v4194 = vpack.c.b16 %v4134, %v4133
      %v4195 = vpack.c.b16 %v4136, %v4135
      %v4196 = vpack.c.b16 %v4138, %v4137
      %v4197 = vpack.c.b16 %v4140, %v4139
      %v4198 = vpack.c.b16 %v4142, %v4141
      %v4199 = vpack.c.b16 %v4144, %v4143
      %v4200 = vpack.c.b16 %v4146, %v4145
      %v4201 = vpack.c.b16 %v4148, %v4147
      %v4202 = vpack.c.b16 %v4150, %v4149
      %v4203 = vpack.c.b16 %v4152, %v4151
      %v4204 = vpack.c.b16 %v4154, %v4153
      %v4205 = vpack.c.b16 %v4156, %v4155
      %v4206 = vpack.c.b16 %v4158, %v4157
      %v4207 = vpack.c.b16 %v4160, %v4159
      %v4208 = vpack.c.b16 %v4162, %v4161
      %v4209 = vpack.c.b16 %v4164, %v4163
      %v4210 = vpack.c.b16 %v4166, %v4165
      %v4211 = vpack.c.b16 %v4168, %v4167
      %v4212 = vpack.c.b16 %v4170, %v4169
      %v4213 = vpack.c.b16 %v4172, %v4171
      %v4214 = vpack.c.b16 %v4174, %v4173
      %4255 = vmatprep.subr.bf16.mxu0 0
      %4256 = vmatpush1.bf16.msra.mxu0 %v4182
      %4257 = vmatprep.subr.bf16.mxu0 0
      %4258 = vmatpush1.bf16.msra.mxu0 %v4181
      %4259 = vmatprep.subr.bf16.mxu0 0
      %4260 = vmatpush1.bf16.msra.mxu0 %v4180
      %4261 = vmatprep.subr.bf16.mxu0 0
      %4262 = vmatpush1.bf16.msra.mxu0 %v4179
      %4263 = vmatprep.subr.bf16.mxu0 0
      %4264 = vmatpush1.bf16.msra.mxu0 %v4178
      %4265 = vmatprep.subr.bf16.mxu0 0
      %4266 = vmatpush1.bf16.msra.mxu0 %v4177
      %4267 = vmatprep.subr.bf16.mxu0 0
      %4268 = vmatpush1.bf16.msra.mxu0 %v4176
      %4269 = vmatprep.subr.bf16.mxu0 0
      %4270 = vmatpush1.bf16.msra.mxu0 %v4175
      %4271 = vmatprep.subr.bf16.mxu0 0
      %4272 = vmatpush2.bf16.msra.mxu0 %v4190
      %4273 = vmatprep.subr.bf16.mxu0 0
      %4274 = vmatpush2.bf16.msra.mxu0 %v4189
      %4275 = vmatprep.subr.bf16.mxu0 0
      %4276 = vmatpush2.bf16.msra.mxu0 %v4188
      %4277 = vmatprep.subr.bf16.mxu0 0
      %4278 = vmatpush2.bf16.msra.mxu0 %v4187
      %4279 = vmatprep.subr.bf16.mxu0 0
      %4280 = vmatpush2.bf16.msra.mxu0 %v4186
      %4281 = vmatprep.subr.bf16.mxu0 0
      %4282 = vmatpush2.bf16.msra.mxu0 %v4185
      %4283 = vmatprep.subr.bf16.mxu0 0
      %4284 = vmatpush2.bf16.msra.mxu0 %v4184
      %4285 = vmatprep.subr.bf16.mxu0 0
      %4286 = vmatpush2.bf16.msra.mxu0 %v4183
      %4287 = vmatprep.mubr.bf16.mxu0 %v3889
      %4288 = vmatmul.mubr.bf16.gmra.mxu0 %v3888
      %v4289 = vpop.f32.mrf.mxu0
      %v4290 = vadd.f32 %v4013, %v4289
      %v4291 = vpop.f32.mrf.mxu0
      %v4292 = vpop.f32.mrf.mxu0
      %v4293 = vadd.f32 %v4013, %v4292
      %v4294 = vpop.f32.mrf.mxu0
      %4295 = vmatprep.mubr.bf16.mxu0 %v3894
      %4296 = vmatmul.mubr.bf16.gmra.mxu0 %v3893
      %v4297 = vpop.f32.mrf.mxu0
      %v4298 = vadd.f32 %v4013, %v4297
      %v4299 = vpop.f32.mrf.mxu0
      %v4300 = vpop.f32.mrf.mxu0
      %v4301 = vadd.f32 %v4013, %v4300
      %v4302 = vpop.f32.mrf.mxu0
      %4303 = vmatprep.mubr.bf16.mxu0 %v3899
      %4304 = vmatmul.mubr.bf16.gmra.mxu0 %v3898
      %v4305 = vpop.f32.mrf.mxu0
      %v4306 = vadd.f32 %v4013, %v4305
      %v4307 = vpop.f32.mrf.mxu0
      %v4308 = vpop.f32.mrf.mxu0
      %v4309 = vadd.f32 %v4013, %v4308
      %v4310 = vpop.f32.mrf.mxu0
      %4311 = vmatprep.mubr.bf16.mxu0 %v3904
      %4312 = vmatmul.mubr.bf16.gmra.mxu0 %v3903
      %v4313 = vpop.f32.mrf.mxu0
      %v4314 = vadd.f32 %v4013, %v4313
      %v4315 = vpop.f32.mrf.mxu0
      %v4316 = vpop.f32.mrf.mxu0
      %v4317 = vadd.f32 %v4013, %v4316
      %v4318 = vpop.f32.mrf.mxu0
      %4319 = vmatprep.mubr.bf16.mxu0 %v3909
      %4320 = vmatmul.mubr.bf16.gmra.mxu0 %v3908
      %v4321 = vpop.f32.mrf.mxu0
      %v4322 = vadd.f32 %v4013, %v4321
      %v4323 = vpop.f32.mrf.mxu0
      %v4324 = vpop.f32.mrf.mxu0
      %v4325 = vadd.f32 %v4013, %v4324
      %v4326 = vpop.f32.mrf.mxu0
      %4327 = vmatprep.mubr.bf16.mxu0 %v3914
      %4328 = vmatmul.mubr.bf16.gmra.mxu0 %v3913
      %v4329 = vpop.f32.mrf.mxu0
      %v4330 = vadd.f32 %v4013, %v4329
      %v4331 = vpop.f32.mrf.mxu0
      %v4332 = vpop.f32.mrf.mxu0
      %v4333 = vadd.f32 %v4013, %v4332
      %v4334 = vpop.f32.mrf.mxu0
      %4335 = vmatprep.mubr.bf16.mxu0 %v3919
      %4336 = vmatmul.mubr.bf16.gmra.mxu0 %v3918
      %v4337 = vpop.f32.mrf.mxu0
      %v4338 = vadd.f32 %v4013, %v4337
      %v4339 = vpop.f32.mrf.mxu0
      %v4340 = vpop.f32.mrf.mxu0
      %v4341 = vadd.f32 %v4013, %v4340
      %v4342 = vpop.f32.mrf.mxu0
      %4343 = vmatprep.mubr.bf16.mxu0 %v3924
      %4344 = vmatmul.mubr.bf16.gmra.mxu0 %v3923
      %v4345 = vpop.f32.mrf.mxu0
      %v4346 = vadd.f32 %v4013, %v4345
      %v4347 = vpop.f32.mrf.mxu0
      %v4348 = vpop.f32.mrf.mxu0
      %v4349 = vadd.f32 %v4013, %v4348
      %v4350 = vpop.f32.mrf.mxu0
      %4351 = vdwg.mxu0
      %4352 = vmatprep.subr.bf16.mxu0 0
      %4353 = vmatpush1.bf16.msra.mxu0 %v4198
      %4354 = vmatprep.subr.bf16.mxu0 0
      %4355 = vmatpush1.bf16.msra.mxu0 %v4197
      %4356 = vmatprep.subr.bf16.mxu0 0
      %4357 = vmatpush1.bf16.msra.mxu0 %v4196
      %4358 = vmatprep.subr.bf16.mxu0 0
      %4359 = vmatpush1.bf16.msra.mxu0 %v4195
      %4360 = vmatprep.subr.bf16.mxu0 0
      %4361 = vmatpush1.bf16.msra.mxu0 %v4194
      %4362 = vmatprep.subr.bf16.mxu0 0
      %4363 = vmatpush1.bf16.msra.mxu0 %v4193
      %4364 = vmatprep.subr.bf16.mxu0 0
      %4365 = vmatpush1.bf16.msra.mxu0 %v4192
      %4366 = vmatprep.subr.bf16.mxu0 0
      %4367 = vmatpush1.bf16.msra.mxu0 %v4191
      %4368 = vmatprep.subr.bf16.mxu0 0
      %4369 = vmatpush2.bf16.msra.mxu0 %v4206
      %4370 = vmatprep.subr.bf16.mxu0 0
      %4371 = vmatpush2.bf16.msra.mxu0 %v4205
      %4372 = vmatprep.subr.bf16.mxu0 0
      %4373 = vmatpush2.bf16.msra.mxu0 %v4204
      %4374 = vmatprep.subr.bf16.mxu0 0
      %4375 = vmatpush2.bf16.msra.mxu0 %v4203
      %4376 = vmatprep.subr.bf16.mxu0 0
      %4377 = vmatpush2.bf16.msra.mxu0 %v4202
      %4378 = vmatprep.subr.bf16.mxu0 0
      %4379 = vmatpush2.bf16.msra.mxu0 %v4201
      %4380 = vmatprep.subr.bf16.mxu0 0
      %4381 = vmatpush2.bf16.msra.mxu0 %v4200
      %4382 = vmatprep.subr.bf16.mxu0 0
      %4383 = vmatpush2.bf16.msra.mxu0 %v4199
      %4384 = vmatprep.mubr.bf16.mxu0 %v3891
      %4385 = vmatmul.mubr.bf16.gmra.mxu0 %v3890
      %v4386 = vpop.f32.mrf.mxu0
      %v4387 = vadd.f32 %v4290, %v4386
      %v4388 = vpop.f32.mrf.mxu0
      %v4389 = vpop.f32.mrf.mxu0
      %v4390 = vadd.f32 %v4293, %v4389
      %v4391 = vpop.f32.mrf.mxu0
      %4392 = vmatprep.mubr.bf16.mxu0 %v3896
      %4393 = vmatmul.mubr.bf16.gmra.mxu0 %v3895
      %v4394 = vpop.f32.mrf.mxu0
      %v4395 = vadd.f32 %v4298, %v4394
      %v4396 = vpop.f32.mrf.mxu0
      %v4397 = vpop.f32.mrf.mxu0
      %v4398 = vadd.f32 %v4301, %v4397
      %v4399 = vpop.f32.mrf.mxu0
      %4400 = vmatprep.mubr.bf16.mxu0 %v3901
      %4401 = vmatmul.mubr.bf16.gmra.mxu0 %v3900
      %v4402 = vpop.f32.mrf.mxu0
      %v4403 = vadd.f32 %v4306, %v4402
      %v4404 = vpop.f32.mrf.mxu0
      %v4405 = vpop.f32.mrf.mxu0
      %v4406 = vadd.f32 %v4309, %v4405
      %v4407 = vpop.f32.mrf.mxu0
      %4408 = vmatprep.mubr.bf16.mxu0 %v3906
      %4409 = vmatmul.mubr.bf16.gmra.mxu0 %v3905
      %v4410 = vpop.f32.mrf.mxu0
      %v4411 = vadd.f32 %v4314, %v4410
      %v4412 = vpop.f32.mrf.mxu0
      %v4413 = vpop.f32.mrf.mxu0
      %v4414 = vadd.f32 %v4317, %v4413
      %v4415 = vpop.f32.mrf.mxu0
      %4416 = vmatprep.mubr.bf16.mxu0 %v3911
      %4417 = vmatmul.mubr.bf16.gmra.mxu0 %v3910
      %v4418 = vpop.f32.mrf.mxu0
      %v4419 = vadd.f32 %v4322, %v4418
      %v4420 = vpop.f32.mrf.mxu0
      %v4421 = vpop.f32.mrf.mxu0
      %v4422 = vadd.f32 %v4325, %v4421
      %v4423 = vpop.f32.mrf.mxu0
      %4424 = vmatprep.mubr.bf16.mxu0 %v3916
      %4425 = vmatmul.mubr.bf16.gmra.mxu0 %v3915
      %v4426 = vpop.f32.mrf.mxu0
      %v4427 = vadd.f32 %v4330, %v4426
      %v4428 = vpop.f32.mrf.mxu0
      %v4429 = vpop.f32.mrf.mxu0
      %v4430 = vadd.f32 %v4333, %v4429
      %v4431 = vpop.f32.mrf.mxu0
      %4432 = vmatprep.mubr.bf16.mxu0 %v3921
      %4433 = vmatmul.mubr.bf16.gmra.mxu0 %v3920
      %v4434 = vpop.f32.mrf.mxu0
      %v4435 = vadd.f32 %v4338, %v4434
      %v4436 = vpop.f32.mrf.mxu0
      %v4437 = vpop.f32.mrf.mxu0
      %v4438 = vadd.f32 %v4341, %v4437
      %v4439 = vpop.f32.mrf.mxu0
      %4440 = vmatprep.mubr.bf16.mxu0 %v3926
      %4441 = vmatmul.mubr.bf16.gmra.mxu0 %v3925
      %v4442 = vpop.f32.mrf.mxu0
      %v4443 = vadd.f32 %v4346, %v4442
      %v4444 = vpop.f32.mrf.mxu0
      %v4445 = vpop.f32.mrf.mxu0
      %v4446 = vadd.f32 %v4349, %v4445
      %v4447 = vpop.f32.mrf.mxu0
      %4448 = vdwg.mxu0
      %4449 = vmatprep.subr.bf16.mxu0 0
      %4450 = vmatpush1.bf16.msra.mxu0 %v4214
      %4451 = vmatprep.subr.bf16.mxu0 0
      %4452 = vmatpush1.bf16.msra.mxu0 %v4213
      %4453 = vmatprep.subr.bf16.mxu0 0
      %4454 = vmatpush1.bf16.msra.mxu0 %v4212
      %4455 = vmatprep.subr.bf16.mxu0 0
      %4456 = vmatpush1.bf16.msra.mxu0 %v4211
      %4457 = vmatprep.subr.bf16.mxu0 0
      %4458 = vmatpush1.bf16.msra.mxu0 %v4210
      %4459 = vmatprep.subr.bf16.mxu0 0
      %4460 = vmatpush1.bf16.msra.mxu0 %v4209
      %4461 = vmatprep.subr.bf16.mxu0 0
      %4462 = vmatpush1.bf16.msra.mxu0 %v4208
      %4463 = vmatprep.subr.bf16.mxu0 0
      %4464 = vmatpush1.bf16.msra.mxu0 %v4207
      %4465 = vmatprep.subr.bf16.mxu0 0
      %4466 = vmatpush2.bf16.msra.mxu0 0
      %4467 = vmatprep.subr.bf16.mxu0 0
      %4468 = vmatpush2.bf16.msra.mxu0 0
      %4469 = vmatprep.subr.bf16.mxu0 0
      %4470 = vmatpush2.bf16.msra.mxu0 0
      %4471 = vmatprep.subr.bf16.mxu0 0
      %4472 = vmatpush2.bf16.msra.mxu0 0
      %4473 = vmatprep.subr.bf16.mxu0 0
      %4474 = vmatpush2.bf16.msra.mxu0 0
      %4475 = vmatprep.subr.bf16.mxu0 0
      %4476 = vmatpush2.bf16.msra.mxu0 0
      %4477 = vmatprep.subr.bf16.mxu0 0
      %4478 = vmatpush2.bf16.msra.mxu0 0
      %4479 = vmatprep.subr.bf16.mxu0 0
      %4480 = vmatpush2.bf16.msra.mxu0 0
      %4481 = vmatprep.mubr.bf16.mxu0 0
      %4482 = vmatmul.mubr.bf16.gmra.mxu0 %v3892
      %v4483 = vpop.f32.mrf.mxu0
      %v4484 = vadd.f32 %v4387, %v4483
      %v4485 = vpop.f32.mrf.mxu0
      %v4486 = vpop.f32.mrf.mxu0
      %v4487 = vadd.f32 %v4390, %v4486
      %v4488 = vpop.f32.mrf.mxu0
      %4489 = vmatprep.mubr.bf16.mxu0 0
      %4490 = vmatmul.mubr.bf16.gmra.mxu0 %v3897
      %v4491 = vpop.f32.mrf.mxu0
      %v4492 = vadd.f32 %v4395, %v4491
      %v4493 = vpop.f32.mrf.mxu0
      %v4494 = vpop.f32.mrf.mxu0
      %v4495 = vadd.f32 %v4398, %v4494
      %v4496 = vpop.f32.mrf.mxu0
      %4497 = vmatprep.mubr.bf16.mxu0 0
      %4498 = vmatmul.mubr.bf16.gmra.mxu0 %v3902
      %v4499 = vpop.f32.mrf.mxu0
      %v4500 = vadd.f32 %v4403, %v4499
      %v4501 = vpop.f32.mrf.mxu0
      %v4502 = vpop.f32.mrf.mxu0
      %v4503 = vadd.f32 %v4406, %v4502
      %v4504 = vpop.f32.mrf.mxu0
      %4505 = vmatprep.mubr.bf16.mxu0 0
      %4506 = vmatmul.mubr.bf16.gmra.mxu0 %v3907
      %v4507 = vpop.f32.mrf.mxu0
      %v4508 = vadd.f32 %v4411, %v4507
      %v4509 = vpop.f32.mrf.mxu0
      %v4510 = vpop.f32.mrf.mxu0
      %v4511 = vadd.f32 %v4414, %v4510
      %v4512 = vpop.f32.mrf.mxu0
      %4513 = vmatprep.mubr.bf16.mxu0 0
      %4514 = vmatmul.mubr.bf16.gmra.mxu0 %v3912
      %v4515 = vpop.f32.mrf.mxu0
      %v4516 = vadd.f32 %v4419, %v4515
      %v4517 = vpop.f32.mrf.mxu0
      %v4518 = vpop.f32.mrf.mxu0
      %v4519 = vadd.f32 %v4422, %v4518
      %v4520 = vpop.f32.mrf.mxu0
      %4521 = vmatprep.mubr.bf16.mxu0 0
      %4522 = vmatmul.mubr.bf16.gmra.mxu0 %v3917
      %v4523 = vpop.f32.mrf.mxu0
      %v4524 = vadd.f32 %v4427, %v4523
      %v4525 = vpop.f32.mrf.mxu0
      %v4526 = vpop.f32.mrf.mxu0
      %v4527 = vadd.f32 %v4430, %v4526
      %v4528 = vpop.f32.mrf.mxu0
      %4529 = vmatprep.mubr.bf16.mxu0 0
      %4530 = vmatmul.mubr.bf16.gmra.mxu0 %v3922
      %v4531 = vpop.f32.mrf.mxu0
      %v4532 = vadd.f32 %v4435, %v4531
      %v4533 = vpop.f32.mrf.mxu0
      %v4534 = vpop.f32.mrf.mxu0
      %v4535 = vadd.f32 %v4438, %v4534
      %v4536 = vpop.f32.mrf.mxu0
      %4537 = vmatprep.mubr.bf16.mxu0 0
      %4538 = vmatmul.mubr.bf16.gmra.mxu0 %v3927
      %v4539 = vpop.f32.mrf.mxu0
      %v4540 = vadd.f32 %v4443, %v4539
      %v4541 = vpop.f32.mrf.mxu0
      %v4542 = vpop.f32.mrf.mxu0
      %v4543 = vadd.f32 %v4446, %v4542
      %v4544 = vpop.f32.mrf.mxu0
      %4545 = vdwg.mxu0
      %4546 = vmax.xlane.f32.xlu0 %v4484
      %v4547 = vpop.xlane.xlu0 %4546
      %4548 = vmax.xlane.f32.xlu0 %v4487
      %v4549 = vpop.xlane.xlu0 %4548
      %4550 = vmax.xlane.f32.xlu0 %v4492
      %v4551 = vpop.xlane.xlu0 %4550
      %4552 = vmax.xlane.f32.xlu0 %v4495
      %v4553 = vpop.xlane.xlu0 %4552
      %4554 = vmax.xlane.f32.xlu0 %v4500
      %v4555 = vpop.xlane.xlu0 %4554
      %4556 = vmax.xlane.f32.xlu0 %v4503
      %v4557 = vpop.xlane.xlu0 %4556
      %4558 = vmax.xlane.f32.xlu0 %v4508
      %v4559 = vpop.xlane.xlu0 %4558
      %4560 = vmax.xlane.f32.xlu0 %v4511
      %v4561 = vpop.xlane.xlu0 %4560
      %4562 = vmax.xlane.f32.xlu0 %v4516
      %v4563 = vpop.xlane.xlu0 %4562
      %4564 = vmax.xlane.f32.xlu0 %v4519
      %v4565 = vpop.xlane.xlu0 %4564
      %4566 = vmax.xlane.f32.xlu0 %v4524
      %v4567 = vpop.xlane.xlu0 %4566
      %4568 = vmax.xlane.f32.xlu0 %v4527
      %v4569 = vpop.xlane.xlu0 %4568
      %4570 = vmax.xlane.f32.xlu0 %v4532
      %v4571 = vpop.xlane.xlu0 %4570
      %4572 = vmax.xlane.f32.xlu0 %v4535
      %v4573 = vpop.xlane.xlu0 %4572
      %4574 = vmax.xlane.f32.xlu0 %v4540
      %v4575 = vpop.xlane.xlu0 %4574
      %4576 = vmax.xlane.f32.xlu0 %v4543
      %v4577 = vpop.xlane.xlu0 %4576
      %v4578 = vsub.f32 %v4484, %v4547
      %v4579 = vsub.f32 %v4487, %v4549
      %v4580 = vsub.f32 %v4492, %v4551
      %v4581 = vsub.f32 %v4495, %v4553
      %v4582 = vsub.f32 %v4500, %v4555
      %v4583 = vsub.f32 %v4503, %v4557
      %v4584 = vsub.f32 %v4508, %v4559
      %v4585 = vsub.f32 %v4511, %v4561
      %v4586 = vsub.f32 %v4516, %v4563
      %v4587 = vsub.f32 %v4519, %v4565
      %v4588 = vsub.f32 %v4524, %v4567
      %v4589 = vsub.f32 %v4527, %v4569
      %v4590 = vsub.f32 %v4532, %v4571
      %v4591 = vsub.f32 %v4535, %v4573
      %v4592 = vsub.f32 %v4540, %v4575
      %v4593 = vsub.f32 %v4543, %v4577
      %v4594 = vmul.f32 %v4578, 1.442695
      %v4595 = vpow.pop %v4594
      %v4596 = vmul.f32 %v4579, 1.442695
      %v4597 = vpow.pop %v4596
      %v4598 = vmul.f32 %v4580, 1.442695
      %v4599 = vpow.pop %v4598
      %v4600 = vmul.f32 %v4581, 1.442695
      %v4601 = vpow.pop %v4600
      %v4602 = vmul.f32 %v4582, 1.442695
      %v4603 = vpow.pop %v4602
      %v4604 = vmul.f32 %v4583, 1.442695
      %v4605 = vpow.pop %v4604
      %v4606 = vmul.f32 %v4584, 1.442695
      %v4607 = vpow.pop %v4606
      %v4608 = vmul.f32 %v4585, 1.442695
      %v4609 = vpow.pop %v4608
      %v4610 = vmul.f32 %v4586, 1.442695
      %v4611 = vpow.pop %v4610
      %v4612 = vmul.f32 %v4587, 1.442695
      %v4613 = vpow.pop %v4612
      %v4614 = vmul.f32 %v4588, 1.442695
      %v4615 = vpow.pop %v4614
      %v4616 = vmul.f32 %v4589, 1.442695
      %v4617 = vpow.pop %v4616
      %v4618 = vmul.f32 %v4590, 1.442695
      %v4619 = vpow.pop %v4618
      %v4620 = vmul.f32 %v4591, 1.442695
      %v4621 = vpow.pop %v4620
      %v4622 = vmul.f32 %v4592, 1.442695
      %v4623 = vpow.pop %v4622
      %v4624 = vmul.f32 %v4593, 1.442695
      %v4625 = vpow.pop %v4624
      %4626 = vadd.xlane.f32.xlu0 %v4595
      %v4627 = vpop.xlane.xlu0 %4626
      %4628 = vadd.xlane.f32.xlu0 %v4597
      %v4629 = vpop.xlane.xlu0 %4628
      %4630 = vadd.xlane.f32.xlu0 %v4599
      %v4631 = vpop.xlane.xlu0 %4630
      %4632 = vadd.xlane.f32.xlu0 %v4601
      %v4633 = vpop.xlane.xlu0 %4632
      %4634 = vadd.xlane.f32.xlu0 %v4603
      %v4635 = vpop.xlane.xlu0 %4634
      %4636 = vadd.xlane.f32.xlu0 %v4605
      %v4637 = vpop.xlane.xlu0 %4636
      %4638 = vadd.xlane.f32.xlu0 %v4607
      %v4639 = vpop.xlane.xlu0 %4638
      %4640 = vadd.xlane.f32.xlu0 %v4609
      %v4641 = vpop.xlane.xlu0 %4640
      %4642 = vadd.xlane.f32.xlu0 %v4611
      %v4643 = vpop.xlane.xlu0 %4642
      %4644 = vadd.xlane.f32.xlu0 %v4613
      %v4645 = vpop.xlane.xlu0 %4644
      %4646 = vadd.xlane.f32.xlu0 %v4615
      %v4647 = vpop.xlane.xlu0 %4646
      %4648 = vadd.xlane.f32.xlu0 %v4617
      %v4649 = vpop.xlane.xlu0 %4648
      %4650 = vadd.xlane.f32.xlu0 %v4619
      %v4651 = vpop.xlane.xlu0 %4650
      %4652 = vadd.xlane.f32.xlu0 %v4621
      %v4653 = vpop.xlane.xlu0 %4652
      %4654 = vadd.xlane.f32.xlu0 %v4623
      %v4655 = vpop.xlane.xlu0 %4654
      %4656 = vadd.xlane.f32.xlu0 %v4625
      %v4657 = vpop.xlane.xlu0 %4656
      %v4658 = vrcp.pop %v4627
      %v4659 = vrcp.pop %v4629
      %v4660 = vrcp.pop %v4631
      %v4661 = vrcp.pop %v4633
      %v4662 = vrcp.pop %v4635
      %v4663 = vrcp.pop %v4637
      %v4664 = vrcp.pop %v4639
      %v4665 = vrcp.pop %v4641
      %v4666 = vrcp.pop %v4643
      %v4667 = vrcp.pop %v4645
      %v4668 = vrcp.pop %v4647
      %v4669 = vrcp.pop %v4649
      %v4670 = vrcp.pop %v4651
      %v4671 = vrcp.pop %v4653
      %v4672 = vrcp.pop %v4655
      %v4673 = vrcp.pop %v4657
      %v4674 = vmul.f32 %v4595, %v4658
      %v4675 = vmul.f32 %v4597, %v4659
      %v4676 = vmul.f32 %v4599, %v4660
      %v4677 = vmul.f32 %v4601, %v4661
      %v4678 = vmul.f32 %v4603, %v4662
      %v4679 = vmul.f32 %v4605, %v4663
      %v4680 = vmul.f32 %v4607, %v4664
      %v4681 = vmul.f32 %v4609, %v4665
      %v4682 = vmul.f32 %v4611, %v4666
      %v4683 = vmul.f32 %v4613, %v4667
      %v4684 = vmul.f32 %v4615, %v4668
      %v4685 = vmul.f32 %v4617, %v4669
      %v4686 = vmul.f32 %v4619, %v4670
      %v4687 = vmul.f32 %v4621, %v4671
      %v4688 = vmul.f32 %v4623, %v4672
      %v4689 = vmul.f32 %v4625, %v4673
      %4690 = vst [vmem:[%s229] sm:$0xff] %v4674
      %4691 = vst [vmem:[%s229 + $0x8] sm:$0xff] %v4675
      %4692 = vst [vmem:[%s229 + $0x10] sm:$0xff] %v4676
      %4693 = vst [vmem:[%s229 + $0x18] sm:$0xff] %v4677
      %4694 = vst [vmem:[%s229 + $0x20] sm:$0xff] %v4678
      %4695 = vst [vmem:[%s229 + $0x28] sm:$0xff] %v4679
      %4696 = vst [vmem:[%s229 + $0x30] sm:$0xff] %v4680
      %4697 = vst [vmem:[%s229 + $0x38] sm:$0xff] %v4681
      %4698 = vst [vmem:[%s229 + $0x40] sm:$0xff] %v4682
      %4699 = vst [vmem:[%s229 + $0x48] sm:$0xff] %v4683
      %4700 = vst [vmem:[%s229 + $0x50] sm:$0xff] %v4684
      %4701 = vst [vmem:[%s229 + $0x58] sm:$0xff] %v4685
      %4702 = vst [vmem:[%s229 + $0x60] sm:$0xff] %v4686
      %4703 = vst [vmem:[%s229 + $0x68] sm:$0xff] %v4687
      %4704 = vst [vmem:[%s229 + $0x70] sm:$0xff] %v4688
      %4705 = vst [vmem:[%s229 + $0x78] sm:$0xff] %v4689
      %s4706 = smul.u32 16, %s16
      %p4707 = scmp.lt.s32.totalorder %s4706, 31
      %s4708 = scalar_select %p4707, %s4706, 31
      %s4709 = smul.addr %s4708, 8
      %s4710 = scalar_lea.vmem %s5, %s4709
      // Predicated region
      $region41: #{mlp_forward.1} parent=39 // pred_check
        %p4711 = pneg %p144
      $region42: #{mlp_forward.1} parent=39 // pred_check_branch
        %4713 = sbr.rel (%p4711) target = $region44
      $region43: #{mlp_forward.1} parent=39 // pred_region
        %s4714 = smul.u32 16, %s16
      $region44: #{mlp_forward.1} parent=39 // pred_fallthru
        _
    $region40: #{mlp_forward.1} parent=5 // pred_fallthru
      _
    %p4715 = scmp.le.s32.totalorder 2, %s11
    // Predicated region
    $region45: #{mlp_forward.1} parent=5 // pred_check
      %p4716 = pneg %p4715
    $region46: #{mlp_forward.1} parent=5 // pred_check_branch
      %4718 = sbr.rel (%p4716) target = $region48
    $region47: #{mlp_forward.1} parent=5 // pred_region
      %s4719 = ssub.s32 %s11, 2
      // Predicated region
      $region49: #{mlp_forward.1} parent=47 // pred_check
        %p4720 = pneg %p150
      $region50: #{mlp_forward.1} parent=47 // pred_check_branch
        %4722 = sbr.rel (%p4720) target = $region52
      $region51: #{mlp_forward.1} parent=47 // pred_region
        %s4723 = smul.u32 16, %s17
        %p4724 = scmp.lt.s32.totalorder %s4723, 31
        %s4725 = scalar_select %p4724, %s4723, 31
        %s4726 = smul.addr %s4725, 8
        %s4727 = scalar_lea.vmem %s5, %s4726
      $region52: #{mlp_forward.1} parent=47 // pred_fallthru
        _
    $region48: #{mlp_forward.1} parent=5 // pred_fallthru
      _
  $region6: #{mlp_forward.1} parent=0 // loop_footer
    %s15 = sadd.s32 1, %s11
  $region7: #{mlp_forward.1} parent=0 // loop_footer_branch
    %10 = sbr.rel target = $region3
  $region8: #{mlp_forward.1} parent=0 // loop_exit
    _

</llo_original>
